<compile_context>
chip_gen: v7x
topology: tpu7x:2x2x1
jax: 0.10.0
libtpu: 0.0.40
codegen_flags: <defaults>
</compile_context>

<pallas_src>
import jax
import jax.numpy as jnp
from jax.experimental import pallas as pl
from jax.experimental.pallas import tpu as pltpu

# ---- small, TPU-friendly config (stand-in for the argparse defaults) ----
BERT_UNIT_NUM = 32            # opt.BERT_UNIT_NUM (768 in reference)
NUM_QUESTION_GLIMPSE = 2      # opt.NUM_QUESTION_GLIMPSE
IMAGE_CHANNEL = 48            # opt.IMAGE_CHANNEL (1472 in reference)
NUM_IMG_GLIMPSE = 2           # opt.NUM_IMG_GLIMPSE
MFB_FACTOR_NUM = 5            # opt.MFB_FACTOR_NUM
MFB_OUT_DIM = 128             # opt.MFB_OUT_DIM (1000 in reference)
JOINT_EMB_SIZE = MFB_FACTOR_NUM * MFB_OUT_DIM

Q_DIM = BERT_UNIT_NUM * NUM_QUESTION_GLIMPSE      # 64
I_DIM = IMAGE_CHANNEL * NUM_IMG_GLIMPSE           # 96
BATCH = 256                                       # demo batch

WEIGHT_DTYPE = jnp.bfloat16   # weight storage dtype (HBM traffic), f32 MXU accumulate
ACT_DTYPE = jnp.float32       # activations stay f32 (review: traffic is negligible)


def _round_up(x, m):
    return (x + m - 1) // m * m


def _pick_tile_b(batch):
    """v7x has 2 TensorCores -> keep >=2 parallel 128-row tiles; v5e/v6e are single-TC,
    so one bigger tile avoids a redundant grid step + constant-weight-block revisit."""
    try:
        kind = jax.devices()[0].device_kind.lower()
    except Exception:
        kind = ""
    pref = 128 if "7" in kind else 256
    return max(128, min(pref, _round_up(batch, 128)))


def mfb_fusion_kernel(q_ref, wq_ref, bq_ref, i_ref, wi_ref, bi_ref, out_ref):
    """Fused MFB head for one batch tile.

    The element-wise MFB product is fused into the factor sum-pool: for each of the
    MFB_FACTOR_NUM 128-column factor groups we run two small (K x 128) MXU matmuls,
    multiply, and accumulate.  The naive (TILE_B, JOINT_EMB) q_proj / i_proj / mfb
    temporaries are never built, so live vector data stays at 128-lane width.
    """
    q = q_ref[...]       # (TILE_B, Q_DIM) f32
    im = i_ref[...]      # (TILE_B, I_DIM) f32

    pooled = None
    for f in range(MFB_FACTOR_NUM):          # static, unrolled
        lo, hi = f * MFB_OUT_DIM, (f + 1) * MFB_OUT_DIM
        q_proj = jnp.dot(q, wq_ref[:, lo:hi],
                         preferred_element_type=jnp.float32) + bq_ref[:, lo:hi]
        i_proj = jnp.dot(im, wi_ref[:, lo:hi],
                         preferred_element_type=jnp.float32) + bi_ref[:, lo:hi]
        term = q_proj * i_proj               # Dropout_M is identity in eval mode
        pooled = term if pooled is None else pooled + term

    # Signed square root: sqrt(|x|) with the sign bit copied back via a bitmask
    # (two bitwise VALU ops; sqrt stays on the EUP slot). Matches
    # sqrt(relu(x)) - sqrt(relu(-x)) of the reference.
    mag = jnp.sqrt(jnp.abs(pooled))
    sign_bit = pltpu.bitcast(pooled, jnp.uint32) & jnp.uint32(0x80000000)
    signed = pltpu.bitcast(pltpu.bitcast(mag, jnp.uint32) | sign_bit, jnp.float32)

    # L2 normalize (torch F.normalize: p=2, dim=1, eps=1e-12) via one rsqrt-multiply:
    # signed * rsqrt(max(sum(x^2), eps^2)) == signed / max(||x||, eps).
    sumsq = jnp.sum(signed * signed, axis=-1, keepdims=True)
    out_ref[...] = signed * jax.lax.rsqrt(jnp.maximum(sumsq, 1e-24))


def _permute_factor_major(w):
    """Map PyTorch (out_dim, factor)-grouped JOINT_EMB columns -> (factor, out_dim)."""
    lead = w.shape[:-1]
    return (w.reshape(*lead, MFB_OUT_DIM, MFB_FACTOR_NUM)
             .swapaxes(-1, -2)
             .reshape(*lead, JOINT_EMB_SIZE))


def prepare_mfb_params(wq, bq, wi, bi):
    """ONE-TIME model-init parameter prep (hoisted out of the forward path).
    Takes (in_features, out_features)-layout weights (= transpose of PyTorch
    nn.Linear.weight) and returns factor-major bf16 weights + f32 biases."""
    wq_p = _permute_factor_major(jnp.asarray(wq, jnp.float32)).astype(WEIGHT_DTYPE)
    wi_p = _permute_factor_major(jnp.asarray(wi, jnp.float32)).astype(WEIGHT_DTYPE)
    bq_p = _permute_factor_major(jnp.asarray(bq, jnp.float32).reshape(1, JOINT_EMB_SIZE))
    bi_p = _permute_factor_major(jnp.asarray(bi, jnp.float32).reshape(1, JOINT_EMB_SIZE))
    return wq_p, bq_p, wi_p, bi_p


def vqa_mfb_fusion(q_featatt, iatt_feature_concat, params, tile_b=None):
    """q_featatt: (B, Q_DIM) f32, iatt_feature_concat: (B, I_DIM) f32.
    params: output of prepare_mfb_params (called once at init).
    Returns (B, MFB_OUT_DIM) float32, matching the PyTorch forward output."""
    wq_p, bq_p, wi_p, bi_p = params
    B = q_featatt.shape[0]
    if tile_b is None:
        tile_b = _pick_tile_b(B)
    Bp = _round_up(B, tile_b)                 # pad batch to a full MXU tile

    q = q_featatt.astype(ACT_DTYPE)
    im = iatt_feature_concat.astype(ACT_DTYPE)
    if Bp != B:
        q = jnp.pad(q, ((0, Bp - B), (0, 0)))
        im = jnp.pad(im, ((0, Bp - B), (0, 0)))

    # Toy config: all weights (~200 KB bf16) stay VMEM-resident across the batch grid.
    # (At the real 45 MB config this switches to the N-outer streaming layout in the
    #  TODO(synk) header, with pipeline_mode=pl.Buffered(1) on constant-index blocks.)
    out = pl.pallas_call(
        mfb_fusion_kernel,
        out_shape=jax.ShapeDtypeStruct((Bp, MFB_OUT_DIM), jnp.float32),
        grid=(Bp // tile_b,),
        in_specs=[
            pl.BlockSpec((tile_b, Q_DIM), lambda b: (b, 0)),
            pl.BlockSpec((Q_DIM, JOINT_EMB_SIZE), lambda b: (0, 0)),
            pl.BlockSpec((1, JOINT_EMB_SIZE), lambda b: (0, 0)),
            pl.BlockSpec((tile_b, I_DIM), lambda b: (b, 0)),
            pl.BlockSpec((I_DIM, JOINT_EMB_SIZE), lambda b: (0, 0)),
            pl.BlockSpec((1, JOINT_EMB_SIZE), lambda b: (0, 0)),
        ],
        out_specs=pl.BlockSpec((tile_b, MFB_OUT_DIM), lambda b: (b, 0)),
        compiler_params=pltpu.CompilerParams(
            dimension_semantics=("parallel",)),
    )(q, wq_p, bq_p, im, wi_p, bi_p)
    return out[:B] if Bp != B else out


def reference_jax(q_featatt, iatt, wq, bq, wi, bi):
    """Pure-JAX mirror of the PyTorch forward (eval mode). Weights quantized to the
    kernel's bf16 storage dtype; activations stay f32, matmuls at HIGHEST precision."""
    wqq = wq.astype(WEIGHT_DTYPE).astype(jnp.float32)
    wiq = wi.astype(WEIGHT_DTYPE).astype(jnp.float32)
    hi = jax.lax.Precision.HIGHEST
    q_proj = jnp.dot(q_featatt, wqq, precision=hi) + bq
    i_proj = jnp.dot(iatt, wiq, precision=hi) + bi
    mfb = q_proj * i_proj
    pooled = jnp.sum(mfb.reshape(-1, MFB_OUT_DIM, MFB_FACTOR_NUM), axis=-1)
    signed = jnp.sqrt(jnp.maximum(pooled, 0.0)) - jnp.sqrt(jnp.maximum(-pooled, 0.0))
    norm = jnp.sqrt(jnp.sum(signed * signed, axis=-1, keepdims=True))
    return signed / jnp.maximum(norm, 1e-12)


if __name__ == "__main__":
    key = jax.random.PRNGKey(0)
    k1, k2, k3, k4, k5, k6 = jax.random.split(key, 6)

    # TODO(synk): BERTokenizer / BertQstEncoder / QuestionFeatureExtractionAtt /
    # ImageFeatureExtractionAtt are undefined in the reference source; their outputs
    # (q_featatt squeezed to (B, Q_DIM) and iatt_feature_concat (B, I_DIM)) are
    # generated deterministically here and fed straight into the fusion kernel.
    q_featatt = jax.random.normal(k1, (BATCH, Q_DIM), dtype=jnp.float32)
    iatt_feature_concat = jax.random.normal(k2, (BATCH, I_DIM), dtype=jnp.float32)

    # Deterministic parameter init (nn.Linear-shaped: weight stored as (in, out)).
    wq = jax.random.normal(k3, (Q_DIM, JOINT_EMB_SIZE), dtype=jnp.float32) * 0.02
    bq = jax.random.normal(k4, (JOINT_EMB_SIZE,), dtype=jnp.float32) * 0.02
    wi = jax.random.normal(k5, (I_DIM, JOINT_EMB_SIZE), dtype=jnp.float32) * 0.02
    bi = jax.random.normal(k6, (JOINT_EMB_SIZE,), dtype=jnp.float32) * 0.02

    # One-time init-time prep (permutation + bf16 cast hoisted off the forward path).
    params = jax.block_until_ready(prepare_mfb_params(wq, bq, wi, bi))

    out = jax.block_until_ready(vqa_mfb_fusion(q_featatt, iatt_feature_concat, params))

    ref = reference_jax(q_featatt, iatt_feature_concat, wq, bq, wi, bi)
    assert out.shape == (BATCH, MFB_OUT_DIM)
    # Tolerance sized for bf16 weight storage + MXU pass precision on the L2-normalized
    # output (values ~0.1); typical error is a few 1e-4.
    assert jnp.allclose(out, ref, rtol=3e-3, atol=3e-3), "mismatch vs pure-JAX reference"

    print("KERNEL_OK")
</pallas_src>

<mosaic_0001>
module attributes {stable_mosaic.version = 11 : i64} {
  func.func @mfb_fusion_kernel(%arg0: i32, %arg1: memref<256x64xf32, #tpu.memory_space<vmem>>, %arg2: memref<64x640xbf16, #tpu.memory_space<vmem>>, %arg3: memref<1x640xf32, #tpu.memory_space<vmem>>, %arg4: memref<256x96xf32, #tpu.memory_space<vmem>>, %arg5: memref<96x640xbf16, #tpu.memory_space<vmem>>, %arg6: memref<1x640xf32, #tpu.memory_space<vmem>>, %arg7: memref<256x128xf32, #tpu.memory_space<vmem>>) attributes {dimension_semantics = [#tpu.dimension_semantics<parallel>], iteration_bounds = array<i64: 1>, scalar_prefetch = 0 : i64, scratch_operands = 0 : i64, tpu.core_type = #tpu.core_type<tc>, window_params = [{transform_indices = @transform_0, window_bounds = array<i64: 256, 64>}, {pipeline_mode = #tpu.pipeline_mode<synchronous>, transform_indices = @transform_1, window_bounds = array<i64: 64, 640>}, {pipeline_mode = #tpu.pipeline_mode<synchronous>, transform_indices = @transform_2, window_bounds = array<i64: 1, 640>}, {transform_indices = @transform_3, window_bounds = array<i64: 256, 96>}, {pipeline_mode = #tpu.pipeline_mode<synchronous>, transform_indices = @transform_4, window_bounds = array<i64: 96, 640>}, {pipeline_mode = #tpu.pipeline_mode<synchronous>, transform_indices = @transform_5, window_bounds = array<i64: 1, 640>}, {transform_indices = @transform_6, window_bounds = array<i64: 256, 128>}]} {
    %c0 = arith.constant 0 : index
    %c0_0 = arith.constant 0 : index
    %0 = vector.load %arg1[%c0, %c0_0] : memref<256x64xf32, #tpu.memory_space<vmem>>, vector<256x64xf32>
    %c0_1 = arith.constant 0 : index
    %c0_2 = arith.constant 0 : index
    %1 = vector.load %arg4[%c0_1, %c0_2] : memref<256x96xf32, #tpu.memory_space<vmem>>, vector<256x96xf32>
    %c0_3 = arith.constant 0 : index
    %c0_4 = arith.constant 0 : index
    %2 = vector.load %arg2[%c0_3, %c0_4] : memref<64x640xbf16, #tpu.memory_space<vmem>>, vector<64x128xbf16>
    %cst = arith.constant dense<0.000000e+00> : vector<256x128xf32>
    %3 = tpu.matmul %0, %2, %cst {dimension_numbers = #tpu.dot_dimension_numbers<[1], [0], [0], [1], [0, 0, 1, 1], [], []>} : vector<256x64xf32>, vector<64x128xbf16>, vector<256x128xf32> -> vector<256x128xf32>
    %c0_5 = arith.constant 0 : index
    %c0_6 = arith.constant 0 : index
    %4 = vector.load %arg3[%c0_5, %c0_6] : memref<1x640xf32, #tpu.memory_space<vmem>>, vector<1x128xf32>
    %5 = vector.broadcast %4 : vector<1x128xf32> to vector<256x128xf32>
    %6 = arith.addf %3, %5 : vector<256x128xf32>
    %c0_7 = arith.constant 0 : index
    %c0_8 = arith.constant 0 : index
    %7 = vector.load %arg5[%c0_7, %c0_8] : memref<96x640xbf16, #tpu.memory_space<vmem>>, vector<96x128xbf16>
    %cst_9 = arith.constant dense<0.000000e+00> : vector<256x128xf32>
    %8 = tpu.matmul %1, %7, %cst_9 {dimension_numbers = #tpu.dot_dimension_numbers<[1], [0], [0], [1], [0, 0, 1, 1], [], []>} : vector<256x96xf32>, vector<96x128xbf16>, vector<256x128xf32> -> vector<256x128xf32>
    %c0_10 = arith.constant 0 : index
    %c0_11 = arith.constant 0 : index
    %9 = vector.load %arg6[%c0_10, %c0_11] : memref<1x640xf32, #tpu.memory_space<vmem>>, vector<1x128xf32>
    %10 = vector.broadcast %9 : vector<1x128xf32> to vector<256x128xf32>
    %11 = arith.addf %8, %10 : vector<256x128xf32>
    %12 = arith.mulf %6, %11 : vector<256x128xf32>
    %c0_12 = arith.constant 0 : index
    %c128 = arith.constant 128 : index
    %13 = vector.load %arg2[%c0_12, %c128] : memref<64x640xbf16, #tpu.memory_space<vmem>>, vector<64x128xbf16>
    %cst_13 = arith.constant dense<0.000000e+00> : vector<256x128xf32>
    %14 = tpu.matmul %0, %13, %cst_13 {dimension_numbers = #tpu.dot_dimension_numbers<[1], [0], [0], [1], [0, 0, 1, 1], [], []>} : vector<256x64xf32>, vector<64x128xbf16>, vector<256x128xf32> -> vector<256x128xf32>
    %c0_14 = arith.constant 0 : index
    %c128_15 = arith.constant 128 : index
    %15 = vector.load %arg3[%c0_14, %c128_15] : memref<1x640xf32, #tpu.memory_space<vmem>>, vector<1x128xf32>
    %16 = vector.broadcast %15 : vector<1x128xf32> to vector<256x128xf32>
    %17 = arith.addf %14, %16 : vector<256x128xf32>
    %c0_16 = arith.constant 0 : index
    %c128_17 = arith.constant 128 : index
    %18 = vector.load %arg5[%c0_16, %c128_17] : memref<96x640xbf16, #tpu.memory_space<vmem>>, vector<96x128xbf16>
    %cst_18 = arith.constant dense<0.000000e+00> : vector<256x128xf32>
    %19 = tpu.matmul %1, %18, %cst_18 {dimension_numbers = #tpu.dot_dimension_numbers<[1], [0], [0], [1], [0, 0, 1, 1], [], []>} : vector<256x96xf32>, vector<96x128xbf16>, vector<256x128xf32> -> vector<256x128xf32>
    %c0_19 = arith.constant 0 : index
    %c128_20 = arith.constant 128 : index
    %20 = vector.load %arg6[%c0_19, %c128_20] : memref<1x640xf32, #tpu.memory_space<vmem>>, vector<1x128xf32>
    %21 = vector.broadcast %20 : vector<1x128xf32> to vector<256x128xf32>
    %22 = arith.addf %19, %21 : vector<256x128xf32>
    %23 = arith.mulf %17, %22 : vector<256x128xf32>
    %24 = arith.addf %12, %23 : vector<256x128xf32>
    %c0_21 = arith.constant 0 : index
    %c256 = arith.constant 256 : index
    %25 = vector.load %arg2[%c0_21, %c256] : memref<64x640xbf16, #tpu.memory_space<vmem>>, vector<64x128xbf16>
    %cst_22 = arith.constant dense<0.000000e+00> : vector<256x128xf32>
    %26 = tpu.matmul %0, %25, %cst_22 {dimension_numbers = #tpu.dot_dimension_numbers<[1], [0], [0], [1], [0, 0, 1, 1], [], []>} : vector<256x64xf32>, vector<64x128xbf16>, vector<256x128xf32> -> vector<256x128xf32>
    %c0_23 = arith.constant 0 : index
    %c256_24 = arith.constant 256 : index
    %27 = vector.load %arg3[%c0_23, %c256_24] : memref<1x640xf32, #tpu.memory_space<vmem>>, vector<1x128xf32>
    %28 = vector.broadcast %27 : vector<1x128xf32> to vector<256x128xf32>
    %29 = arith.addf %26, %28 : vector<256x128xf32>
    %c0_25 = arith.constant 0 : index
    %c256_26 = arith.constant 256 : index
    %30 = vector.load %arg5[%c0_25, %c256_26] : memref<96x640xbf16, #tpu.memory_space<vmem>>, vector<96x128xbf16>
    %cst_27 = arith.constant dense<0.000000e+00> : vector<256x128xf32>
    %31 = tpu.matmul %1, %30, %cst_27 {dimension_numbers = #tpu.dot_dimension_numbers<[1], [0], [0], [1], [0, 0, 1, 1], [], []>} : vector<256x96xf32>, vector<96x128xbf16>, vector<256x128xf32> -> vector<256x128xf32>
    %c0_28 = arith.constant 0 : index
    %c256_29 = arith.constant 256 : index
    %32 = vector.load %arg6[%c0_28, %c256_29] : memref<1x640xf32, #tpu.memory_space<vmem>>, vector<1x128xf32>
    %33 = vector.broadcast %32 : vector<1x128xf32> to vector<256x128xf32>
    %34 = arith.addf %31, %33 : vector<256x128xf32>
    %35 = arith.mulf %29, %34 : vector<256x128xf32>
    %36 = arith.addf %24, %35 : vector<256x128xf32>
    %c0_30 = arith.constant 0 : index
    %c384 = arith.constant 384 : index
    %37 = vector.load %arg2[%c0_30, %c384] : memref<64x640xbf16, #tpu.memory_space<vmem>>, vector<64x128xbf16>
    %cst_31 = arith.constant dense<0.000000e+00> : vector<256x128xf32>
    %38 = tpu.matmul %0, %37, %cst_31 {dimension_numbers = #tpu.dot_dimension_numbers<[1], [0], [0], [1], [0, 0, 1, 1], [], []>} : vector<256x64xf32>, vector<64x128xbf16>, vector<256x128xf32> -> vector<256x128xf32>
    %c0_32 = arith.constant 0 : index
    %c384_33 = arith.constant 384 : index
    %39 = vector.load %arg3[%c0_32, %c384_33] : memref<1x640xf32, #tpu.memory_space<vmem>>, vector<1x128xf32>
    %40 = vector.broadcast %39 : vector<1x128xf32> to vector<256x128xf32>
    %41 = arith.addf %38, %40 : vector<256x128xf32>
    %c0_34 = arith.constant 0 : index
    %c384_35 = arith.constant 384 : index
    %42 = vector.load %arg5[%c0_34, %c384_35] : memref<96x640xbf16, #tpu.memory_space<vmem>>, vector<96x128xbf16>
    %cst_36 = arith.constant dense<0.000000e+00> : vector<256x128xf32>
    %43 = tpu.matmul %1, %42, %cst_36 {dimension_numbers = #tpu.dot_dimension_numbers<[1], [0], [0], [1], [0, 0, 1, 1], [], []>} : vector<256x96xf32>, vector<96x128xbf16>, vector<256x128xf32> -> vector<256x128xf32>
    %c0_37 = arith.constant 0 : index
    %c384_38 = arith.constant 384 : index
    %44 = vector.load %arg6[%c0_37, %c384_38] : memref<1x640xf32, #tpu.memory_space<vmem>>, vector<1x128xf32>
    %45 = vector.broadcast %44 : vector<1x128xf32> to vector<256x128xf32>
    %46 = arith.addf %43, %45 : vector<256x128xf32>
    %47 = arith.mulf %41, %46 : vector<256x128xf32>
    %48 = arith.addf %36, %47 : vector<256x128xf32>
    %c0_39 = arith.constant 0 : index
    %c512 = arith.constant 512 : index
    %49 = vector.load %arg2[%c0_39, %c512] : memref<64x640xbf16, #tpu.memory_space<vmem>>, vector<64x128xbf16>
    %cst_40 = arith.constant dense<0.000000e+00> : vector<256x128xf32>
    %50 = tpu.matmul %0, %49, %cst_40 {dimension_numbers = #tpu.dot_dimension_numbers<[1], [0], [0], [1], [0, 0, 1, 1], [], []>} : vector<256x64xf32>, vector<64x128xbf16>, vector<256x128xf32> -> vector<256x128xf32>
    %c0_41 = arith.constant 0 : index
    %c512_42 = arith.constant 512 : index
    %51 = vector.load %arg3[%c0_41, %c512_42] : memref<1x640xf32, #tpu.memory_space<vmem>>, vector<1x128xf32>
    %52 = vector.broadcast %51 : vector<1x128xf32> to vector<256x128xf32>
    %53 = arith.addf %50, %52 : vector<256x128xf32>
    %c0_43 = arith.constant 0 : index
    %c512_44 = arith.constant 512 : index
    %54 = vector.load %arg5[%c0_43, %c512_44] : memref<96x640xbf16, #tpu.memory_space<vmem>>, vector<96x128xbf16>
    %cst_45 = arith.constant dense<0.000000e+00> : vector<256x128xf32>
    %55 = tpu.matmul %1, %54, %cst_45 {dimension_numbers = #tpu.dot_dimension_numbers<[1], [0], [0], [1], [0, 0, 1, 1], [], []>} : vector<256x96xf32>, vector<96x128xbf16>, vector<256x128xf32> -> vector<256x128xf32>
    %c0_46 = arith.constant 0 : index
    %c512_47 = arith.constant 512 : index
    %56 = vector.load %arg6[%c0_46, %c512_47] : memref<1x640xf32, #tpu.memory_space<vmem>>, vector<1x128xf32>
    %57 = vector.broadcast %56 : vector<1x128xf32> to vector<256x128xf32>
    %58 = arith.addf %55, %57 : vector<256x128xf32>
    %59 = arith.mulf %53, %58 : vector<256x128xf32>
    %60 = arith.addf %48, %59 : vector<256x128xf32>
    %61 = math.absf %60 : vector<256x128xf32>
    %62 = math.sqrt %61 : vector<256x128xf32>
    %63 = tpu.bitcast %60 : vector<256x128xf32> -> vector<256x128xi32>
    %c-2147483648_i32 = arith.constant -2147483648 : i32
    %64 = vector.broadcast %c-2147483648_i32 : i32 to vector<256x128xi32>
    %65 = arith.andi %63, %64 : vector<256x128xi32>
    %66 = tpu.bitcast %62 : vector<256x128xf32> -> vector<256x128xi32>
    %67 = arith.ori %66, %65 : vector<256x128xi32>
    %68 = tpu.bitcast %67 : vector<256x128xi32> -> vector<256x128xf32>
    %69 = arith.mulf %68, %68 : vector<256x128xf32>
    %cst_48 = arith.constant dense<0.000000e+00> : vector<256xf32>
    %70 = vector.multi_reduction <add>, %69, %cst_48 [1] : vector<256x128xf32> to vector<256xf32>
    %71 = vector.shape_cast %70 : vector<256xf32> to vector<256x1xf32>
    %cst_49 = arith.constant 1.000000e-24 : f32
    %72 = vector.broadcast %cst_49 : f32 to vector<256x1xf32>
    %73 = arith.maximumf %71, %72 : vector<256x1xf32>
    %74 = math.rsqrt %73 : vector<256x1xf32>
    %75 = vector.broadcast %74 : vector<256x1xf32> to vector<256x128xf32>
    %76 = arith.mulf %68, %75 : vector<256x128xf32>
    %c0_50 = arith.constant 0 : index
    %c0_51 = arith.constant 0 : index
    %77 = vector.load %arg7[%c0_50, %c0_51] : memref<256x128xf32, #tpu.memory_space<vmem>>, vector<256x128xf32>
    tpu.vector_store %arg7[%c0_50, %c0_51], %76 {strides = array<i32>} : memref<256x128xf32, #tpu.memory_space<vmem>>, vector<256x128xf32>,
    return
  }
  func.func @transform_0(%arg0: i32) -> (i32, i32) {
    %c0_i32 = arith.constant 0 : i32
    %c0_i32_0 = arith.constant 0 : i32
    return %arg0, %c0_i32 : i32, i32
  }
  func.func @transform_1(%arg0: i32) -> (i32, i32) {
    %c0_i32 = arith.constant 0 : i32
    %c0_i32_0 = arith.constant 0 : i32
    %c0_i32_1 = arith.constant 0 : i32
    return %c0_i32, %c0_i32_0 : i32, i32
  }
  func.func @transform_2(%arg0: i32) -> (i32, i32) {
    %c0_i32 = arith.constant 0 : i32
    %c0_i32_0 = arith.constant 0 : i32
    %c0_i32_1 = arith.constant 0 : i32
    return %c0_i32, %c0_i32_0 : i32, i32
  }
  func.func @transform_3(%arg0: i32) -> (i32, i32) {
    %c0_i32 = arith.constant 0 : i32
    %c0_i32_0 = arith.constant 0 : i32
    return %arg0, %c0_i32 : i32, i32
  }
  func.func @transform_4(%arg0: i32) -> (i32, i32) {
    %c0_i32 = arith.constant 0 : i32
    %c0_i32_0 = arith.constant 0 : i32
    %c0_i32_1 = arith.constant 0 : i32
    return %c0_i32, %c0_i32_0 : i32, i32
  }
  func.func @transform_5(%arg0: i32) -> (i32, i32) {
    %c0_i32 = arith.constant 0 : i32
    %c0_i32_0 = arith.constant 0 : i32
    %c0_i32_1 = arith.constant 0 : i32
    return %c0_i32, %c0_i32_0 : i32, i32
  }
  func.func @transform_6(%arg0: i32) -> (i32, i32) {
    %c0_i32 = arith.constant 0 : i32
    %c0_i32_0 = arith.constant 0 : i32
    return %arg0, %c0_i32 : i32, i32
  }
}

</mosaic_0001>

<llo_original>
// kernel: tpu_custom_call.1
$region0: #{tpu_custom_call.1}
  #allocation0 [shape = 'u32[]', space=smem, size = 0x4, offset = 0x4, fixed_abs, tag = 'smem constant byte address 0x4 - core index']
  #allocation1 [shape = 'u32[144,128]{1,0:T(1,128)}', space=vmem, size = 0x12000, scoped, tag = 'internal scratch']
  %s0 = inlined_call_operand.vmem [shape: f32[256,64], index: 0, kind: input, shape index: {}]
  %s1 = inlined_call_operand.vmem [shape: bf16[64,640], index: 1, kind: input, shape index: {}]
  %s2 = inlined_call_operand.vmem [shape: f32[1,640], index: 2, kind: input, shape index: {}]
  %s3 = inlined_call_operand.vmem [shape: f32[256,96], index: 3, kind: input, shape index: {}]
  %s4 = inlined_call_operand.vmem [shape: bf16[96,640], index: 4, kind: input, shape index: {}]
  %s5 = inlined_call_operand.vmem [shape: f32[1,640], index: 5, kind: input, shape index: {}]
  %s6 = inlined_call_operand.hbm [shape: f32[256,128], index: 6, kind: output, shape index: {}]
  %s7 = sld [smem:[#allocation0]]
  $region34: #{tpu_custom_call.1} parent=0
    _
  %s9 = ssub.s32 1, %s7
  %s10 = scalar_select 0, %s9, %s7
  $region1: #{tpu_custom_call.1} parent=0
    #allocation2 [shape = 'u8[131072]{0}', space=vmem, size = 0x20000, scoped, tag = 'output window, operand 0, single buffered']
    #allocation3 [shape = 's32[1]{0}', space=sflag, size = 0x4, scoped, tag = 'scoped memory for tpu_custom_call.1']
    %11 = vsyncpa [#allocation3], 0
    // Predicated region
    $region2: #{tpu_custom_call.1} parent=1 // pred_check
      _
    $region3: #{tpu_custom_call.1} parent=1 // pred_check_branch
      %13 = sbr.rel (0) target = $region5
    $region4: #{tpu_custom_call.1} parent=1 // pred_region
      _
    $region5: #{tpu_custom_call.1} parent=1 // pred_fallthru
      _
    // Predicated region
    $region6: #{tpu_custom_call.1} parent=1 // pred_check
      _
    $region7: #{tpu_custom_call.1} parent=1 // pred_check_branch
      %15 = sbr.rel (0) target = $region9
    $region8: #{tpu_custom_call.1} parent=1 // pred_region
      _
    $region9: #{tpu_custom_call.1} parent=1 // pred_fallthru
      _
    // Predicated region
    $region10: #{tpu_custom_call.1} parent=1 // pred_check
      _
    $region11: #{tpu_custom_call.1} parent=1 // pred_check_branch
      %17 = sbr.rel (0) target = $region13
    $region12: #{tpu_custom_call.1} parent=1 // pred_region
      _
    $region13: #{tpu_custom_call.1} parent=1 // pred_fallthru
      _
    // Predicated region
    $region14: #{tpu_custom_call.1} parent=1 // pred_check
      _
    $region15: #{tpu_custom_call.1} parent=1 // pred_check_branch
      %19 = sbr.rel (0) target = $region17
    $region16: #{tpu_custom_call.1} parent=1 // pred_region
      _
    $region17: #{tpu_custom_call.1} parent=1 // pred_fallthru
      _
    // Predicated region
    $region18: #{tpu_custom_call.1} parent=1 // pred_check
      _
    $region19: #{tpu_custom_call.1} parent=1 // pred_check_branch
      %21 = sbr.rel (0) target = $region21
    $region20: #{tpu_custom_call.1} parent=1 // pred_region
      _
    $region21: #{tpu_custom_call.1} parent=1 // pred_fallthru
      _
    // Predicated region
    $region22: #{tpu_custom_call.1} parent=1 // pred_check
      _
    $region23: #{tpu_custom_call.1} parent=1 // pred_check_branch
      %23 = sbr.rel (0) target = $region25
    $region24: #{tpu_custom_call.1} parent=1 // pred_region
      _
    $region25: #{tpu_custom_call.1} parent=1 // pred_fallthru
      _
    %v25 = vld [vmem:[%s0] sm:$0xff]
    %v26 = vld [vmem:[%s0 + $0x8] sm:$0xff]
    %v27 = vld [vmem:[%s0 + $0x10] sm:$0xff]
    %v28 = vld [vmem:[%s0 + $0x18] sm:$0xff]
    %v29 = vld [vmem:[%s0 + $0x20] sm:$0xff]
    %v30 = vld [vmem:[%s0 + $0x28] sm:$0xff]
    %v31 = vld [vmem:[%s0 + $0x30] sm:$0xff]
    %v32 = vld [vmem:[%s0 + $0x38] sm:$0xff]
    %v33 = vld [vmem:[%s0 + $0x40] sm:$0xff]
    %v34 = vld [vmem:[%s0 + $0x48] sm:$0xff]
    %v35 = vld [vmem:[%s0 + $0x50] sm:$0xff]
    %v36 = vld [vmem:[%s0 + $0x58] sm:$0xff]
    %v37 = vld [vmem:[%s0 + $0x60] sm:$0xff]
    %v38 = vld [vmem:[%s0 + $0x68] sm:$0xff]
    %v39 = vld [vmem:[%s0 + $0x70] sm:$0xff]
    %v40 = vld [vmem:[%s0 + $0x78] sm:$0xff]
    %v41 = vld [vmem:[%s0 + $0x80] sm:$0xff]
    %v42 = vld [vmem:[%s0 + $0x88] sm:$0xff]
    %v43 = vld [vmem:[%s0 + $0x90] sm:$0xff]
    %v44 = vld [vmem:[%s0 + $0x98] sm:$0xff]
    %v45 = vld [vmem:[%s0 + $0xa0] sm:$0xff]
    %v46 = vld [vmem:[%s0 + $0xa8] sm:$0xff]
    %v47 = vld [vmem:[%s0 + $0xb0] sm:$0xff]
    %v48 = vld [vmem:[%s0 + $0xb8] sm:$0xff]
    %v49 = vld [vmem:[%s0 + $0xc0] sm:$0xff]
    %v50 = vld [vmem:[%s0 + $0xc8] sm:$0xff]
    %v51 = vld [vmem:[%s0 + $0xd0] sm:$0xff]
    %v52 = vld [vmem:[%s0 + $0xd8] sm:$0xff]
    %v53 = vld [vmem:[%s0 + $0xe0] sm:$0xff]
    %v54 = vld [vmem:[%s0 + $0xe8] sm:$0xff]
    %v55 = vld [vmem:[%s0 + $0xf0] sm:$0xff]
    %v56 = vld [vmem:[%s0 + $0xf8] sm:$0xff]
    %v57 = vld [vmem:[%s3] sm:$0xff]
    %v58 = vld [vmem:[%s3 + $0x8] sm:$0xff]
    %v59 = vld [vmem:[%s3 + $0x10] sm:$0xff]
    %v60 = vld [vmem:[%s3 + $0x18] sm:$0xff]
    %v61 = vld [vmem:[%s3 + $0x20] sm:$0xff]
    %v62 = vld [vmem:[%s3 + $0x28] sm:$0xff]
    %v63 = vld [vmem:[%s3 + $0x30] sm:$0xff]
    %v64 = vld [vmem:[%s3 + $0x38] sm:$0xff]
    %v65 = vld [vmem:[%s3 + $0x40] sm:$0xff]
    %v66 = vld [vmem:[%s3 + $0x48] sm:$0xff]
    %v67 = vld [vmem:[%s3 + $0x50] sm:$0xff]
    %v68 = vld [vmem:[%s3 + $0x58] sm:$0xff]
    %v69 = vld [vmem:[%s3 + $0x60] sm:$0xff]
    %v70 = vld [vmem:[%s3 + $0x68] sm:$0xff]
    %v71 = vld [vmem:[%s3 + $0x70] sm:$0xff]
    %v72 = vld [vmem:[%s3 + $0x78] sm:$0xff]
    %v73 = vld [vmem:[%s3 + $0x80] sm:$0xff]
    %v74 = vld [vmem:[%s3 + $0x88] sm:$0xff]
    %v75 = vld [vmem:[%s3 + $0x90] sm:$0xff]
    %v76 = vld [vmem:[%s3 + $0x98] sm:$0xff]
    %v77 = vld [vmem:[%s3 + $0xa0] sm:$0xff]
    %v78 = vld [vmem:[%s3 + $0xa8] sm:$0xff]
    %v79 = vld [vmem:[%s3 + $0xb0] sm:$0xff]
    %v80 = vld [vmem:[%s3 + $0xb8] sm:$0xff]
    %v81 = vld [vmem:[%s3 + $0xc0] sm:$0xff]
    %v82 = vld [vmem:[%s3 + $0xc8] sm:$0xff]
    %v83 = vld [vmem:[%s3 + $0xd0] sm:$0xff]
    %v84 = vld [vmem:[%s3 + $0xd8] sm:$0xff]
    %v85 = vld [vmem:[%s3 + $0xe0] sm:$0xff]
    %v86 = vld [vmem:[%s3 + $0xe8] sm:$0xff]
    %v87 = vld [vmem:[%s3 + $0xf0] sm:$0xff]
    %v88 = vld [vmem:[%s3 + $0xf8] sm:$0xff]
    %v89 = vld [vmem:[%s1] sm:$0xf]
    %v90 = vld [vmem:[%s1 + $0x14] sm:$0xf]
    %v91 = vld [vmem:[%s1 + $0x28] sm:$0xf]
    %v92 = vld [vmem:[%s1 + $0x3c] sm:$0xf]
    %v93 = vld [vmem:[%s1 + $0x50] sm:$0xf]
    %v94 = vld [vmem:[%s1 + $0x64] sm:$0xf]
    %v95 = vld [vmem:[%s1 + $0x78] sm:$0xf]
    %v96 = vld [vmem:[%s1 + $0x8c] sm:$0xf]
    %v97 = vld [vmem:[%s2] sm:$0x1]
    %v99 = vlaneseq
    %v100 = vshrl.u32 %v99, 7
    %v101 = vsub.s32 0, %v100
    %v102 = vrot.slane %v97, %v101
    %v112 = vunpack.c.l.b16 %v89
    %v113 = vunpack.c.l.b16 %v90
    %v114 = vunpack.c.l.b16 %v91
    %v115 = vunpack.c.l.b16 %v92
    %v116 = vunpack.c.l.b16 %v93
    %v117 = vunpack.c.l.b16 %v94
    %v118 = vunpack.c.l.b16 %v95
    %v119 = vunpack.c.l.b16 %v96
    %v120 = vpack.c.b16 %v113, %v112
    %v121 = vpack.c.b16 %v115, %v114
    %v122 = vpack.c.b16 %v117, %v116
    %v123 = vpack.c.b16 %v119, %v118
    %vm128 = vcmask 523264
    %v130 = vsel %vm128, %v25, 0
    %v133 = vsel %vm128, %v26, 0
    %v136 = vsel %vm128, %v27, 0
    %v139 = vsel %vm128, %v28, 0
    %v142 = vsel %vm128, %v29, 0
    %v145 = vsel %vm128, %v30, 0
    %v148 = vsel %vm128, %v31, 0
    %v151 = vsel %vm128, %v32, 0
    %v154 = vsel %vm128, %v33, 0
    %v157 = vsel %vm128, %v34, 0
    %v160 = vsel %vm128, %v35, 0
    %v163 = vsel %vm128, %v36, 0
    %v166 = vsel %vm128, %v37, 0
    %v169 = vsel %vm128, %v38, 0
    %v172 = vsel %vm128, %v39, 0
    %v175 = vsel %vm128, %v40, 0
    %v178 = vsel %vm128, %v41, 0
    %v181 = vsel %vm128, %v42, 0
    %v184 = vsel %vm128, %v43, 0
    %v187 = vsel %vm128, %v44, 0
    %v190 = vsel %vm128, %v45, 0
    %v193 = vsel %vm128, %v46, 0
    %v196 = vsel %vm128, %v47, 0
    %v199 = vsel %vm128, %v48, 0
    %v202 = vsel %vm128, %v49, 0
    %v205 = vsel %vm128, %v50, 0
    %v208 = vsel %vm128, %v51, 0
    %v211 = vsel %vm128, %v52, 0
    %v214 = vsel %vm128, %v53, 0
    %v217 = vsel %vm128, %v54, 0
    %v220 = vsel %vm128, %v55, 0
    %v223 = vsel %vm128, %v56, 0
    %225 = vmatprep.subr.bf16.mxu0 0
    %226 = vmatpush1.bf16.msra.mxu0 %v120
    %227 = vmatprep.subr.bf16.mxu0 0
    %228 = vmatpush1.bf16.msra.mxu0 %v121
    %229 = vmatprep.subr.bf16.mxu0 0
    %230 = vmatpush1.bf16.msra.mxu0 %v122
    %231 = vmatprep.subr.bf16.mxu0 0
    %232 = vmatpush1.bf16.msra.mxu0 %v123
    %233 = vmatprep.subr.bf16.mxu0 0
    %234 = vmatpush1.bf16.msra.mxu0 0
    %235 = vmatprep.subr.bf16.mxu0 0
    %236 = vmatpush1.bf16.msra.mxu0 0
    %237 = vmatprep.subr.bf16.mxu0 0
    %238 = vmatpush1.bf16.msra.mxu0 0
    %239 = vmatprep.subr.bf16.mxu0 0
    %240 = vmatpush1.bf16.msra.mxu0 0
    %241 = vmatprep.subr.bf16.mxu0 0
    %242 = vmatpush1.bf16.msra.mxu0 0
    %243 = vmatprep.subr.bf16.mxu0 0
    %244 = vmatpush1.bf16.msra.mxu0 0
    %245 = vmatprep.subr.bf16.mxu0 0
    %246 = vmatpush1.bf16.msra.mxu0 0
    %247 = vmatprep.subr.bf16.mxu0 0
    %248 = vmatpush1.bf16.msra.mxu0 0
    %249 = vmatprep.subr.bf16.mxu0 0
    %250 = vmatpush1.bf16.msra.mxu0 0
    %251 = vmatprep.subr.bf16.mxu0 0
    %252 = vmatpush1.bf16.msra.mxu0 0
    %253 = vmatprep.subr.bf16.mxu0 0
    %254 = vmatpush1.bf16.msra.mxu0 0
    %255 = vmatprep.subr.bf16.mxu0 0
    %256 = vmatpush1.bf16.msra.mxu0 0
    %257 = vmatprep.mubr.f32.mxu0 0.0
    %258 = vmatmul.mubr.f32.gmra.mrb[0].mxu0 %v130
    %v259 = vpop.f32.mrb[0].mxu0
    %v260 = vadd.f32 %v102, %v259
    %v261 = vpop.f32.mrb[0].mxu0
    %262 = vmatprep.mubr.f32.mxu0 0.0
    %263 = vmatmul.mubr.f32.gmra.mrb[0].mxu0 %v133
    %v264 = vpop.f32.mrb[0].mxu0
    %v265 = vadd.f32 %v102, %v264
    %v266 = vpop.f32.mrb[0].mxu0
    %267 = vmatprep.mubr.f32.mxu0 0.0
    %268 = vmatmul.mubr.f32.gmra.mrb[0].mxu0 %v136
    %v269 = vpop.f32.mrb[0].mxu0
    %v270 = vadd.f32 %v102, %v269
    %v271 = vpop.f32.mrb[0].mxu0
    %272 = vmatprep.mubr.f32.mxu0 0.0
    %273 = vmatmul.mubr.f32.gmra.mrb[0].mxu0 %v139
    %v274 = vpop.f32.mrb[0].mxu0
    %v275 = vadd.f32 %v102, %v274
    %v276 = vpop.f32.mrb[0].mxu0
    %277 = vmatprep.mubr.f32.mxu0 0.0
    %278 = vmatmul.mubr.f32.gmra.mrb[0].mxu0 %v142
    %v279 = vpop.f32.mrb[0].mxu0
    %v280 = vadd.f32 %v102, %v279
    %v281 = vpop.f32.mrb[0].mxu0
    %282 = vmatprep.mubr.f32.mxu0 0.0
    %283 = vmatmul.mubr.f32.gmra.mrb[0].mxu0 %v145
    %v284 = vpop.f32.mrb[0].mxu0
    %v285 = vadd.f32 %v102, %v284
    %v286 = vpop.f32.mrb[0].mxu0
    %287 = vmatprep.mubr.f32.mxu0 0.0
    %288 = vmatmul.mubr.f32.gmra.mrb[0].mxu0 %v148
    %v289 = vpop.f32.mrb[0].mxu0
    %v290 = vadd.f32 %v102, %v289
    %v291 = vpop.f32.mrb[0].mxu0
    %292 = vmatprep.mubr.f32.mxu0 0.0
    %293 = vmatmul.mubr.f32.gmra.mrb[0].mxu0 %v151
    %v294 = vpop.f32.mrb[0].mxu0
    %v295 = vadd.f32 %v102, %v294
    %v296 = vpop.f32.mrb[0].mxu0
    %297 = vmatprep.mubr.f32.mxu0 0.0
    %298 = vmatmul.mubr.f32.gmra.mrb[0].mxu0 %v154
    %v299 = vpop.f32.mrb[0].mxu0
    %v300 = vadd.f32 %v102, %v299
    %v301 = vpop.f32.mrb[0].mxu0
    %302 = vmatprep.mubr.f32.mxu0 0.0
    %303 = vmatmul.mubr.f32.gmra.mrb[0].mxu0 %v157
    %v304 = vpop.f32.mrb[0].mxu0
    %v305 = vadd.f32 %v102, %v304
    %v306 = vpop.f32.mrb[0].mxu0
    %307 = vmatprep.mubr.f32.mxu0 0.0
    %308 = vmatmul.mubr.f32.gmra.mrb[0].mxu0 %v160
    %v309 = vpop.f32.mrb[0].mxu0
    %v310 = vadd.f32 %v102, %v309
    %v311 = vpop.f32.mrb[0].mxu0
    %312 = vmatprep.mubr.f32.mxu0 0.0
    %313 = vmatmul.mubr.f32.gmra.mrb[0].mxu0 %v163
    %v314 = vpop.f32.mrb[0].mxu0
    %v315 = vadd.f32 %v102, %v314
    %v316 = vpop.f32.mrb[0].mxu0
    %317 = vmatprep.mubr.f32.mxu0 0.0
    %318 = vmatmul.mubr.f32.gmra.mrb[0].mxu0 %v166
    %v319 = vpop.f32.mrb[0].mxu0
    %v320 = vadd.f32 %v102, %v319
    %v321 = vpop.f32.mrb[0].mxu0
    %322 = vmatprep.mubr.f32.mxu0 0.0
    %323 = vmatmul.mubr.f32.gmra.mrb[0].mxu0 %v169
    %v324 = vpop.f32.mrb[0].mxu0
    %v325 = vadd.f32 %v102, %v324
    %v326 = vpop.f32.mrb[0].mxu0
    %327 = vmatprep.mubr.f32.mxu0 0.0
    %328 = vmatmul.mubr.f32.gmra.mrb[0].mxu0 %v172
    %v329 = vpop.f32.mrb[0].mxu0
    %v330 = vadd.f32 %v102, %v329
    %v331 = vpop.f32.mrb[0].mxu0
    %332 = vmatprep.mubr.f32.mxu0 0.0
    %333 = vmatmul.mubr.f32.gmra.mrb[0].mxu0 %v175
    %v334 = vpop.f32.mrb[0].mxu0
    %v335 = vadd.f32 %v102, %v334
    %v336 = vpop.f32.mrb[0].mxu0
    %337 = vmatprep.mubr.f32.mxu0 0.0
    %338 = vmatmul.mubr.f32.gmra.mrb[0].mxu0 %v178
    %v339 = vpop.f32.mrb[0].mxu0
    %v340 = vadd.f32 %v102, %v339
    %v341 = vpop.f32.mrb[0].mxu0
    %342 = vmatprep.mubr.f32.mxu0 0.0
    %343 = vmatmul.mubr.f32.gmra.mrb[0].mxu0 %v181
    %v344 = vpop.f32.mrb[0].mxu0
    %v345 = vadd.f32 %v102, %v344
    %v346 = vpop.f32.mrb[0].mxu0
    %347 = vmatprep.mubr.f32.mxu0 0.0
    %348 = vmatmul.mubr.f32.gmra.mrb[0].mxu0 %v184
    %v349 = vpop.f32.mrb[0].mxu0
    %v350 = vadd.f32 %v102, %v349
    %v351 = vpop.f32.mrb[0].mxu0
    %352 = vmatprep.mubr.f32.mxu0 0.0
    %353 = vmatmul.mubr.f32.gmra.mrb[0].mxu0 %v187
    %v354 = vpop.f32.mrb[0].mxu0
    %v355 = vadd.f32 %v102, %v354
    %v356 = vpop.f32.mrb[0].mxu0
    %357 = vmatprep.mubr.f32.mxu0 0.0
    %358 = vmatmul.mubr.f32.gmra.mrb[0].mxu0 %v190
    %v359 = vpop.f32.mrb[0].mxu0
    %v360 = vadd.f32 %v102, %v359
    %v361 = vpop.f32.mrb[0].mxu0
    %362 = vmatprep.mubr.f32.mxu0 0.0
    %363 = vmatmul.mubr.f32.gmra.mrb[0].mxu0 %v193
    %v364 = vpop.f32.mrb[0].mxu0
    %v365 = vadd.f32 %v102, %v364
    %v366 = vpop.f32.mrb[0].mxu0
    %367 = vmatprep.mubr.f32.mxu0 0.0
    %368 = vmatmul.mubr.f32.gmra.mrb[0].mxu0 %v196
    %v369 = vpop.f32.mrb[0].mxu0
    %v370 = vadd.f32 %v102, %v369
    %v371 = vpop.f32.mrb[0].mxu0
    %372 = vmatprep.mubr.f32.mxu0 0.0
    %373 = vmatmul.mubr.f32.gmra.mrb[0].mxu0 %v199
    %v374 = vpop.f32.mrb[0].mxu0
    %v375 = vadd.f32 %v102, %v374
    %v376 = vpop.f32.mrb[0].mxu0
    %377 = vmatprep.mubr.f32.mxu0 0.0
    %378 = vmatmul.mubr.f32.gmra.mrb[0].mxu0 %v202
    %v379 = vpop.f32.mrb[0].mxu0
    %v380 = vadd.f32 %v102, %v379
    %v381 = vpop.f32.mrb[0].mxu0
    %382 = vmatprep.mubr.f32.mxu0 0.0
    %383 = vmatmul.mubr.f32.gmra.mrb[0].mxu0 %v205
    %v384 = vpop.f32.mrb[0].mxu0
    %v385 = vadd.f32 %v102, %v384
    %v386 = vpop.f32.mrb[0].mxu0
    %387 = vmatprep.mubr.f32.mxu0 0.0
    %388 = vmatmul.mubr.f32.gmra.mrb[0].mxu0 %v208
    %v389 = vpop.f32.mrb[0].mxu0
    %v390 = vadd.f32 %v102, %v389
    %v391 = vpop.f32.mrb[0].mxu0
    %392 = vmatprep.mubr.f32.mxu0 0.0
    %393 = vmatmul.mubr.f32.gmra.mrb[0].mxu0 %v211
    %v394 = vpop.f32.mrb[0].mxu0
    %v395 = vadd.f32 %v102, %v394
    %v396 = vpop.f32.mrb[0].mxu0
    %397 = vmatprep.mubr.f32.mxu0 0.0
    %398 = vmatmul.mubr.f32.gmra.mrb[0].mxu0 %v214
    %v399 = vpop.f32.mrb[0].mxu0
    %v400 = vadd.f32 %v102, %v399
    %v401 = vpop.f32.mrb[0].mxu0
    %402 = vmatprep.mubr.f32.mxu0 0.0
    %403 = vmatmul.mubr.f32.gmra.mrb[0].mxu0 %v217
    %v404 = vpop.f32.mrb[0].mxu0
    %v405 = vadd.f32 %v102, %v404
    %v406 = vpop.f32.mrb[0].mxu0
    %407 = vmatprep.mubr.f32.mxu0 0.0
    %408 = vmatmul.mubr.f32.gmra.mrb[0].mxu0 %v220
    %v409 = vpop.f32.mrb[0].mxu0
    %v410 = vadd.f32 %v102, %v409
    %v411 = vpop.f32.mrb[0].mxu0
    %412 = vmatprep.mubr.f32.mxu0 0.0
    %413 = vmatmul.mubr.f32.gmra.mrb[0].mxu0 %v223
    %v414 = vpop.f32.mrb[0].mxu0
    %v415 = vadd.f32 %v102, %v414
    %v416 = vpop.f32.mrb[0].mxu0
    %417 = vdwg.mxu0
    %v418 = vld [vmem:[%s4] sm:$0xf]
    %v419 = vld [vmem:[%s4 + $0x14] sm:$0xf]
    %v420 = vld [vmem:[%s4 + $0x28] sm:$0xf]
    %v421 = vld [vmem:[%s4 + $0x3c] sm:$0xf]
    %v422 = vld [vmem:[%s4 + $0x50] sm:$0xf]
    %v423 = vld [vmem:[%s4 + $0x64] sm:$0xf]
    %v424 = vld [vmem:[%s4 + $0x78] sm:$0xf]
    %v425 = vld [vmem:[%s4 + $0x8c] sm:$0xf]
    %v426 = vld [vmem:[%s4 + $0xa0] sm:$0xf]
    %v427 = vld [vmem:[%s4 + $0xb4] sm:$0xf]
    %v428 = vld [vmem:[%s4 + $0xc8] sm:$0xf]
    %v429 = vld [vmem:[%s4 + $0xdc] sm:$0xf]
    %v430 = vld [vmem:[%s5] sm:$0x1]
    %v432 = vlaneseq
    %v433 = vshrl.u32 %v432, 7
    %v434 = vsub.s32 0, %v433
    %v435 = vrot.slane %v430, %v434
    %v449 = vunpack.c.l.b16 %v418
    %v450 = vunpack.c.l.b16 %v419
    %v451 = vunpack.c.l.b16 %v420
    %v452 = vunpack.c.l.b16 %v421
    %v453 = vunpack.c.l.b16 %v422
    %v454 = vunpack.c.l.b16 %v423
    %v455 = vunpack.c.l.b16 %v424
    %v456 = vunpack.c.l.b16 %v425
    %v457 = vunpack.c.l.b16 %v426
    %v458 = vunpack.c.l.b16 %v427
    %v459 = vunpack.c.l.b16 %v428
    %v460 = vunpack.c.l.b16 %v429
    %v461 = vpack.c.b16 %v450, %v449
    %v462 = vpack.c.b16 %v452, %v451
    %v463 = vpack.c.b16 %v454, %v453
    %v464 = vpack.c.b16 %v456, %v455
    %v465 = vpack.c.b16 %v458, %v457
    %v466 = vpack.c.b16 %v460, %v459
    %vm473 = vcmask 785408
    %v475 = vsel %vm473, %v57, 0
    %v478 = vsel %vm473, %v58, 0
    %v481 = vsel %vm473, %v59, 0
    %v484 = vsel %vm473, %v60, 0
    %v487 = vsel %vm473, %v61, 0
    %v490 = vsel %vm473, %v62, 0
    %v493 = vsel %vm473, %v63, 0
    %v496 = vsel %vm473, %v64, 0
    %v499 = vsel %vm473, %v65, 0
    %v502 = vsel %vm473, %v66, 0
    %v505 = vsel %vm473, %v67, 0
    %v508 = vsel %vm473, %v68, 0
    %v511 = vsel %vm473, %v69, 0
    %v514 = vsel %vm473, %v70, 0
    %v517 = vsel %vm473, %v71, 0
    %v520 = vsel %vm473, %v72, 0
    %v523 = vsel %vm473, %v73, 0
    %v526 = vsel %vm473, %v74, 0
    %v529 = vsel %vm473, %v75, 0
    %v532 = vsel %vm473, %v76, 0
    %v535 = vsel %vm473, %v77, 0
    %v538 = vsel %vm473, %v78, 0
    %v541 = vsel %vm473, %v79, 0
    %v544 = vsel %vm473, %v80, 0
    %v547 = vsel %vm473, %v81, 0
    %v550 = vsel %vm473, %v82, 0
    %v553 = vsel %vm473, %v83, 0
    %v556 = vsel %vm473, %v84, 0
    %v559 = vsel %vm473, %v85, 0
    %v562 = vsel %vm473, %v86, 0
    %v565 = vsel %vm473, %v87, 0
    %v568 = vsel %vm473, %v88, 0
    %570 = vmatprep.subr.bf16.mxu0 0
    %571 = vmatpush1.bf16.msra.mxu0 %v461
    %572 = vmatprep.subr.bf16.mxu0 0
    %573 = vmatpush1.bf16.msra.mxu0 %v462
    %574 = vmatprep.subr.bf16.mxu0 0
    %575 = vmatpush1.bf16.msra.mxu0 %v463
    %576 = vmatprep.subr.bf16.mxu0 0
    %577 = vmatpush1.bf16.msra.mxu0 %v464
    %578 = vmatprep.subr.bf16.mxu0 0
    %579 = vmatpush1.bf16.msra.mxu0 %v465
    %580 = vmatprep.subr.bf16.mxu0 0
    %581 = vmatpush1.bf16.msra.mxu0 %v466
    %582 = vmatprep.subr.bf16.mxu0 0
    %583 = vmatpush1.bf16.msra.mxu0 0
    %584 = vmatprep.subr.bf16.mxu0 0
    %585 = vmatpush1.bf16.msra.mxu0 0
    %586 = vmatprep.subr.bf16.mxu0 0
    %587 = vmatpush1.bf16.msra.mxu0 0
    %588 = vmatprep.subr.bf16.mxu0 0
    %589 = vmatpush1.bf16.msra.mxu0 0
    %590 = vmatprep.subr.bf16.mxu0 0
    %591 = vmatpush1.bf16.msra.mxu0 0
    %592 = vmatprep.subr.bf16.mxu0 0
    %593 = vmatpush1.bf16.msra.mxu0 0
    %594 = vmatprep.subr.bf16.mxu0 0
    %595 = vmatpush1.bf16.msra.mxu0 0
    %596 = vmatprep.subr.bf16.mxu0 0
    %597 = vmatpush1.bf16.msra.mxu0 0
    %598 = vmatprep.subr.bf16.mxu0 0
    %599 = vmatpush1.bf16.msra.mxu0 0
    %600 = vmatprep.subr.bf16.mxu0 0
    %601 = vmatpush1.bf16.msra.mxu0 0
    %602 = vmatprep.mubr.f32.mxu0 0.0
    %603 = vmatmul.mubr.f32.gmra.mrb[0].mxu0 %v475
    %v604 = vpop.f32.mrb[0].mxu0
    %v605 = vadd.f32 %v435, %v604
    %v606 = vpop.f32.mrb[0].mxu0
    %607 = vmatprep.mubr.f32.mxu0 0.0
    %608 = vmatmul.mubr.f32.gmra.mrb[0].mxu0 %v478
    %v609 = vpop.f32.mrb[0].mxu0
    %v610 = vadd.f32 %v435, %v609
    %v611 = vpop.f32.mrb[0].mxu0
    %612 = vmatprep.mubr.f32.mxu0 0.0
    %613 = vmatmul.mubr.f32.gmra.mrb[0].mxu0 %v481
    %v614 = vpop.f32.mrb[0].mxu0
    %v615 = vadd.f32 %v435, %v614
    %v616 = vpop.f32.mrb[0].mxu0
    %617 = vmatprep.mubr.f32.mxu0 0.0
    %618 = vmatmul.mubr.f32.gmra.mrb[0].mxu0 %v484
    %v619 = vpop.f32.mrb[0].mxu0
    %v620 = vadd.f32 %v435, %v619
    %v621 = vpop.f32.mrb[0].mxu0
    %622 = vmatprep.mubr.f32.mxu0 0.0
    %623 = vmatmul.mubr.f32.gmra.mrb[0].mxu0 %v487
    %v624 = vpop.f32.mrb[0].mxu0
    %v625 = vadd.f32 %v435, %v624
    %v626 = vpop.f32.mrb[0].mxu0
    %627 = vmatprep.mubr.f32.mxu0 0.0
    %628 = vmatmul.mubr.f32.gmra.mrb[0].mxu0 %v490
    %v629 = vpop.f32.mrb[0].mxu0
    %v630 = vadd.f32 %v435, %v629
    %v631 = vpop.f32.mrb[0].mxu0
    %632 = vmatprep.mubr.f32.mxu0 0.0
    %633 = vmatmul.mubr.f32.gmra.mrb[0].mxu0 %v493
    %v634 = vpop.f32.mrb[0].mxu0
    %v635 = vadd.f32 %v435, %v634
    %v636 = vpop.f32.mrb[0].mxu0
    %637 = vmatprep.mubr.f32.mxu0 0.0
    %638 = vmatmul.mubr.f32.gmra.mrb[0].mxu0 %v496
    %v639 = vpop.f32.mrb[0].mxu0
    %v640 = vadd.f32 %v435, %v639
    %v641 = vpop.f32.mrb[0].mxu0
    %642 = vmatprep.mubr.f32.mxu0 0.0
    %643 = vmatmul.mubr.f32.gmra.mrb[0].mxu0 %v499
    %v644 = vpop.f32.mrb[0].mxu0
    %v645 = vadd.f32 %v435, %v644
    %v646 = vpop.f32.mrb[0].mxu0
    %647 = vmatprep.mubr.f32.mxu0 0.0
    %648 = vmatmul.mubr.f32.gmra.mrb[0].mxu0 %v502
    %v649 = vpop.f32.mrb[0].mxu0
    %v650 = vadd.f32 %v435, %v649
    %v651 = vpop.f32.mrb[0].mxu0
    %652 = vmatprep.mubr.f32.mxu0 0.0
    %653 = vmatmul.mubr.f32.gmra.mrb[0].mxu0 %v505
    %v654 = vpop.f32.mrb[0].mxu0
    %v655 = vadd.f32 %v435, %v654
    %v656 = vpop.f32.mrb[0].mxu0
    %657 = vmatprep.mubr.f32.mxu0 0.0
    %658 = vmatmul.mubr.f32.gmra.mrb[0].mxu0 %v508
    %v659 = vpop.f32.mrb[0].mxu0
    %v660 = vadd.f32 %v435, %v659
    %v661 = vpop.f32.mrb[0].mxu0
    %662 = vmatprep.mubr.f32.mxu0 0.0
    %663 = vmatmul.mubr.f32.gmra.mrb[0].mxu0 %v511
    %v664 = vpop.f32.mrb[0].mxu0
    %v665 = vadd.f32 %v435, %v664
    %v666 = vpop.f32.mrb[0].mxu0
    %667 = vmatprep.mubr.f32.mxu0 0.0
    %668 = vmatmul.mubr.f32.gmra.mrb[0].mxu0 %v514
    %v669 = vpop.f32.mrb[0].mxu0
    %v670 = vadd.f32 %v435, %v669
    %v671 = vpop.f32.mrb[0].mxu0
    %672 = vmatprep.mubr.f32.mxu0 0.0
    %673 = vmatmul.mubr.f32.gmra.mrb[0].mxu0 %v517
    %v674 = vpop.f32.mrb[0].mxu0
    %v675 = vadd.f32 %v435, %v674
    %v676 = vpop.f32.mrb[0].mxu0
    %677 = vmatprep.mubr.f32.mxu0 0.0
    %678 = vmatmul.mubr.f32.gmra.mrb[0].mxu0 %v520
    %v679 = vpop.f32.mrb[0].mxu0
    %v680 = vadd.f32 %v435, %v679
    %v681 = vpop.f32.mrb[0].mxu0
    %682 = vmatprep.mubr.f32.mxu0 0.0
    %683 = vmatmul.mubr.f32.gmra.mrb[0].mxu0 %v523
    %v684 = vpop.f32.mrb[0].mxu0
    %v685 = vadd.f32 %v435, %v684
    %v686 = vpop.f32.mrb[0].mxu0
    %687 = vmatprep.mubr.f32.mxu0 0.0
    %688 = vmatmul.mubr.f32.gmra.mrb[0].mxu0 %v526
    %v689 = vpop.f32.mrb[0].mxu0
    %v690 = vadd.f32 %v435, %v689
    %v691 = vpop.f32.mrb[0].mxu0
    %692 = vmatprep.mubr.f32.mxu0 0.0
    %693 = vmatmul.mubr.f32.gmra.mrb[0].mxu0 %v529
    %v694 = vpop.f32.mrb[0].mxu0
    %v695 = vadd.f32 %v435, %v694
    %v696 = vpop.f32.mrb[0].mxu0
    %697 = vmatprep.mubr.f32.mxu0 0.0
    %698 = vmatmul.mubr.f32.gmra.mrb[0].mxu0 %v532
    %v699 = vpop.f32.mrb[0].mxu0
    %v700 = vadd.f32 %v435, %v699
    %v701 = vpop.f32.mrb[0].mxu0
    %702 = vmatprep.mubr.f32.mxu0 0.0
    %703 = vmatmul.mubr.f32.gmra.mrb[0].mxu0 %v535
    %v704 = vpop.f32.mrb[0].mxu0
    %v705 = vadd.f32 %v435, %v704
    %v706 = vpop.f32.mrb[0].mxu0
    %707 = vmatprep.mubr.f32.mxu0 0.0
    %708 = vmatmul.mubr.f32.gmra.mrb[0].mxu0 %v538
    %v709 = vpop.f32.mrb[0].mxu0
    %v710 = vadd.f32 %v435, %v709
    %v711 = vpop.f32.mrb[0].mxu0
    %712 = vmatprep.mubr.f32.mxu0 0.0
    %713 = vmatmul.mubr.f32.gmra.mrb[0].mxu0 %v541
    %v714 = vpop.f32.mrb[0].mxu0
    %v715 = vadd.f32 %v435, %v714
    %v716 = vpop.f32.mrb[0].mxu0
    %717 = vmatprep.mubr.f32.mxu0 0.0
    %718 = vmatmul.mubr.f32.gmra.mrb[0].mxu0 %v544
    %v719 = vpop.f32.mrb[0].mxu0
    %v720 = vadd.f32 %v435, %v719
    %v721 = vpop.f32.mrb[0].mxu0
    %722 = vmatprep.mubr.f32.mxu0 0.0
    %723 = vmatmul.mubr.f32.gmra.mrb[0].mxu0 %v547
    %v724 = vpop.f32.mrb[0].mxu0
    %v725 = vadd.f32 %v435, %v724
    %v726 = vpop.f32.mrb[0].mxu0
    %727 = vmatprep.mubr.f32.mxu0 0.0
    %728 = vmatmul.mubr.f32.gmra.mrb[0].mxu0 %v550
    %v729 = vpop.f32.mrb[0].mxu0
    %v730 = vadd.f32 %v435, %v729
    %v731 = vpop.f32.mrb[0].mxu0
    %732 = vmatprep.mubr.f32.mxu0 0.0
    %733 = vmatmul.mubr.f32.gmra.mrb[0].mxu0 %v553
    %v734 = vpop.f32.mrb[0].mxu0
    %v735 = vadd.f32 %v435, %v734
    %v736 = vpop.f32.mrb[0].mxu0
    %737 = vmatprep.mubr.f32.mxu0 0.0
    %738 = vmatmul.mubr.f32.gmra.mrb[0].mxu0 %v556
    %v739 = vpop.f32.mrb[0].mxu0
    %v740 = vadd.f32 %v435, %v739
    %v741 = vpop.f32.mrb[0].mxu0
    %742 = vmatprep.mubr.f32.mxu0 0.0
    %743 = vmatmul.mubr.f32.gmra.mrb[0].mxu0 %v559
    %v744 = vpop.f32.mrb[0].mxu0
    %v745 = vadd.f32 %v435, %v744
    %v746 = vpop.f32.mrb[0].mxu0
    %747 = vmatprep.mubr.f32.mxu0 0.0
    %748 = vmatmul.mubr.f32.gmra.mrb[0].mxu0 %v562
    %v749 = vpop.f32.mrb[0].mxu0
    %v750 = vadd.f32 %v435, %v749
    %v751 = vpop.f32.mrb[0].mxu0
    %752 = vmatprep.mubr.f32.mxu0 0.0
    %753 = vmatmul.mubr.f32.gmra.mrb[0].mxu0 %v565
    %v754 = vpop.f32.mrb[0].mxu0
    %v755 = vadd.f32 %v435, %v754
    %v756 = vpop.f32.mrb[0].mxu0
    %757 = vmatprep.mubr.f32.mxu0 0.0
    %758 = vmatmul.mubr.f32.gmra.mrb[0].mxu0 %v568
    %v759 = vpop.f32.mrb[0].mxu0
    %v760 = vadd.f32 %v435, %v759
    %v761 = vpop.f32.mrb[0].mxu0
    %762 = vdwg.mxu0
    %v763 = vmul.f32 %v260, %v605
    %v764 = vmul.f32 %v265, %v610
    %v765 = vmul.f32 %v270, %v615
    %v766 = vmul.f32 %v275, %v620
    %v767 = vmul.f32 %v280, %v625
    %v768 = vmul.f32 %v285, %v630
    %v769 = vmul.f32 %v290, %v635
    %v770 = vmul.f32 %v295, %v640
    %v771 = vmul.f32 %v300, %v645
    %v772 = vmul.f32 %v305, %v650
    %v773 = vmul.f32 %v310, %v655
    %v774 = vmul.f32 %v315, %v660
    %v775 = vmul.f32 %v320, %v665
    %v776 = vmul.f32 %v325, %v670
    %v777 = vmul.f32 %v330, %v675
    %v778 = vmul.f32 %v335, %v680
    %v779 = vmul.f32 %v340, %v685
    %v780 = vmul.f32 %v345, %v690
    %v781 = vmul.f32 %v350, %v695
    %v782 = vmul.f32 %v355, %v700
    %v783 = vmul.f32 %v360, %v705
    %v784 = vmul.f32 %v365, %v710
    %v785 = vmul.f32 %v370, %v715
    %v786 = vmul.f32 %v375, %v720
    %v787 = vmul.f32 %v380, %v725
    %v788 = vmul.f32 %v385, %v730
    %v789 = vmul.f32 %v390, %v735
    %v790 = vmul.f32 %v395, %v740
    %v791 = vmul.f32 %v400, %v745
    %v792 = vmul.f32 %v405, %v750
    %v793 = vmul.f32 %v410, %v755
    %v794 = vmul.f32 %v415, %v760
    %v795 = vld [vmem:[%s1 + $0x4] sm:$0xf]
    %v796 = vld [vmem:[%s1 + $0x18] sm:$0xf]
    %v797 = vld [vmem:[%s1 + $0x2c] sm:$0xf]
    %v798 = vld [vmem:[%s1 + $0x40] sm:$0xf]
    %v799 = vld [vmem:[%s1 + $0x54] sm:$0xf]
    %v800 = vld [vmem:[%s1 + $0x68] sm:$0xf]
    %v801 = vld [vmem:[%s1 + $0x7c] sm:$0xf]
    %v802 = vld [vmem:[%s1 + $0x90] sm:$0xf]
    %v803 = vld [vmem:[%s2 + $0x1] sm:$0x1]
    %v805 = vlaneseq
    %v806 = vshrl.u32 %v805, 7
    %v807 = vsub.s32 0, %v806
    %v808 = vrot.slane %v803, %v807
    %v818 = vunpack.c.l.b16 %v795
    %v819 = vunpack.c.l.b16 %v796
    %v820 = vunpack.c.l.b16 %v797
    %v821 = vunpack.c.l.b16 %v798
    %v822 = vunpack.c.l.b16 %v799
    %v823 = vunpack.c.l.b16 %v800
    %v824 = vunpack.c.l.b16 %v801
    %v825 = vunpack.c.l.b16 %v802
    %v826 = vpack.c.b16 %v819, %v818
    %v827 = vpack.c.b16 %v821, %v820
    %v828 = vpack.c.b16 %v823, %v822
    %v829 = vpack.c.b16 %v825, %v824
    %834 = vmatprep.subr.bf16.mxu0 0
    %835 = vmatpush1.bf16.msra.mxu0 %v826
    %836 = vmatprep.subr.bf16.mxu0 0
    %837 = vmatpush1.bf16.msra.mxu0 %v827
    %838 = vmatprep.subr.bf16.mxu0 0
    %839 = vmatpush1.bf16.msra.mxu0 %v828
    %840 = vmatprep.subr.bf16.mxu0 0
    %841 = vmatpush1.bf16.msra.mxu0 %v829
    %842 = vmatprep.subr.bf16.mxu0 0
    %843 = vmatpush1.bf16.msra.mxu0 0
    %844 = vmatprep.subr.bf16.mxu0 0
    %845 = vmatpush1.bf16.msra.mxu0 0
    %846 = vmatprep.subr.bf16.mxu0 0
    %847 = vmatpush1.bf16.msra.mxu0 0
    %848 = vmatprep.subr.bf16.mxu0 0
    %849 = vmatpush1.bf16.msra.mxu0 0
    %850 = vmatprep.subr.bf16.mxu0 0
    %851 = vmatpush1.bf16.msra.mxu0 0
    %852 = vmatprep.subr.bf16.mxu0 0
    %853 = vmatpush1.bf16.msra.mxu0 0
    %854 = vmatprep.subr.bf16.mxu0 0
    %855 = vmatpush1.bf16.msra.mxu0 0
    %856 = vmatprep.subr.bf16.mxu0 0
    %857 = vmatpush1.bf16.msra.mxu0 0
    %858 = vmatprep.subr.bf16.mxu0 0
    %859 = vmatpush1.bf16.msra.mxu0 0
    %860 = vmatprep.subr.bf16.mxu0 0
    %861 = vmatpush1.bf16.msra.mxu0 0
    %862 = vmatprep.subr.bf16.mxu0 0
    %863 = vmatpush1.bf16.msra.mxu0 0
    %864 = vmatprep.subr.bf16.mxu0 0
    %865 = vmatpush1.bf16.msra.mxu0 0
    %866 = vmatprep.mubr.f32.mxu0 0.0
    %867 = vmatmul.mubr.f32.gmra.mrb[0].mxu0 %v130
    %v868 = vpop.f32.mrb[0].mxu0
    %v869 = vadd.f32 %v808, %v868
    %v870 = vpop.f32.mrb[0].mxu0
    %871 = vmatprep.mubr.f32.mxu0 0.0
    %872 = vmatmul.mubr.f32.gmra.mrb[0].mxu0 %v133
    %v873 = vpop.f32.mrb[0].mxu0
    %v874 = vadd.f32 %v808, %v873
    %v875 = vpop.f32.mrb[0].mxu0
    %876 = vmatprep.mubr.f32.mxu0 0.0
    %877 = vmatmul.mubr.f32.gmra.mrb[0].mxu0 %v136
    %v878 = vpop.f32.mrb[0].mxu0
    %v879 = vadd.f32 %v808, %v878
    %v880 = vpop.f32.mrb[0].mxu0
    %881 = vmatprep.mubr.f32.mxu0 0.0
    %882 = vmatmul.mubr.f32.gmra.mrb[0].mxu0 %v139
    %v883 = vpop.f32.mrb[0].mxu0
    %v884 = vadd.f32 %v808, %v883
    %v885 = vpop.f32.mrb[0].mxu0
    %886 = vmatprep.mubr.f32.mxu0 0.0
    %887 = vmatmul.mubr.f32.gmra.mrb[0].mxu0 %v142
    %v888 = vpop.f32.mrb[0].mxu0
    %v889 = vadd.f32 %v808, %v888
    %v890 = vpop.f32.mrb[0].mxu0
    %891 = vmatprep.mubr.f32.mxu0 0.0
    %892 = vmatmul.mubr.f32.gmra.mrb[0].mxu0 %v145
    %v893 = vpop.f32.mrb[0].mxu0
    %v894 = vadd.f32 %v808, %v893
    %v895 = vpop.f32.mrb[0].mxu0
    %896 = vmatprep.mubr.f32.mxu0 0.0
    %897 = vmatmul.mubr.f32.gmra.mrb[0].mxu0 %v148
    %v898 = vpop.f32.mrb[0].mxu0
    %v899 = vadd.f32 %v808, %v898
    %v900 = vpop.f32.mrb[0].mxu0
    %901 = vmatprep.mubr.f32.mxu0 0.0
    %902 = vmatmul.mubr.f32.gmra.mrb[0].mxu0 %v151
    %v903 = vpop.f32.mrb[0].mxu0
    %v904 = vadd.f32 %v808, %v903
    %v905 = vpop.f32.mrb[0].mxu0
    %906 = vmatprep.mubr.f32.mxu0 0.0
    %907 = vmatmul.mubr.f32.gmra.mrb[0].mxu0 %v154
    %v908 = vpop.f32.mrb[0].mxu0
    %v909 = vadd.f32 %v808, %v908
    %v910 = vpop.f32.mrb[0].mxu0
    %911 = vmatprep.mubr.f32.mxu0 0.0
    %912 = vmatmul.mubr.f32.gmra.mrb[0].mxu0 %v157
    %v913 = vpop.f32.mrb[0].mxu0
    %v914 = vadd.f32 %v808, %v913
    %v915 = vpop.f32.mrb[0].mxu0
    %916 = vmatprep.mubr.f32.mxu0 0.0
    %917 = vmatmul.mubr.f32.gmra.mrb[0].mxu0 %v160
    %v918 = vpop.f32.mrb[0].mxu0
    %v919 = vadd.f32 %v808, %v918
    %v920 = vpop.f32.mrb[0].mxu0
    %921 = vmatprep.mubr.f32.mxu0 0.0
    %922 = vmatmul.mubr.f32.gmra.mrb[0].mxu0 %v163
    %v923 = vpop.f32.mrb[0].mxu0
    %v924 = vadd.f32 %v808, %v923
    %v925 = vpop.f32.mrb[0].mxu0
    %926 = vmatprep.mubr.f32.mxu0 0.0
    %927 = vmatmul.mubr.f32.gmra.mrb[0].mxu0 %v166
    %v928 = vpop.f32.mrb[0].mxu0
    %v929 = vadd.f32 %v808, %v928
    %v930 = vpop.f32.mrb[0].mxu0
    %931 = vmatprep.mubr.f32.mxu0 0.0
    %932 = vmatmul.mubr.f32.gmra.mrb[0].mxu0 %v169
    %v933 = vpop.f32.mrb[0].mxu0
    %v934 = vadd.f32 %v808, %v933
    %v935 = vpop.f32.mrb[0].mxu0
    %936 = vmatprep.mubr.f32.mxu0 0.0
    %937 = vmatmul.mubr.f32.gmra.mrb[0].mxu0 %v172
    %v938 = vpop.f32.mrb[0].mxu0
    %v939 = vadd.f32 %v808, %v938
    %v940 = vpop.f32.mrb[0].mxu0
    %941 = vmatprep.mubr.f32.mxu0 0.0
    %942 = vmatmul.mubr.f32.gmra.mrb[0].mxu0 %v175
    %v943 = vpop.f32.mrb[0].mxu0
    %v944 = vadd.f32 %v808, %v943
    %v945 = vpop.f32.mrb[0].mxu0
    %946 = vmatprep.mubr.f32.mxu0 0.0
    %947 = vmatmul.mubr.f32.gmra.mrb[0].mxu0 %v178
    %v948 = vpop.f32.mrb[0].mxu0
    %v949 = vadd.f32 %v808, %v948
    %v950 = vpop.f32.mrb[0].mxu0
    %951 = vmatprep.mubr.f32.mxu0 0.0
    %952 = vmatmul.mubr.f32.gmra.mrb[0].mxu0 %v181
    %v953 = vpop.f32.mrb[0].mxu0
    %v954 = vadd.f32 %v808, %v953
    %v955 = vpop.f32.mrb[0].mxu0
    %956 = vmatprep.mubr.f32.mxu0 0.0
    %957 = vmatmul.mubr.f32.gmra.mrb[0].mxu0 %v184
    %v958 = vpop.f32.mrb[0].mxu0
    %v959 = vadd.f32 %v808, %v958
    %v960 = vpop.f32.mrb[0].mxu0
    %961 = vmatprep.mubr.f32.mxu0 0.0
    %962 = vmatmul.mubr.f32.gmra.mrb[0].mxu0 %v187
    %v963 = vpop.f32.mrb[0].mxu0
    %v964 = vadd.f32 %v808, %v963
    %v965 = vpop.f32.mrb[0].mxu0
    %966 = vmatprep.mubr.f32.mxu0 0.0
    %967 = vmatmul.mubr.f32.gmra.mrb[0].mxu0 %v190
    %v968 = vpop.f32.mrb[0].mxu0
    %v969 = vadd.f32 %v808, %v968
    %v970 = vpop.f32.mrb[0].mxu0
    %971 = vmatprep.mubr.f32.mxu0 0.0
    %972 = vmatmul.mubr.f32.gmra.mrb[0].mxu0 %v193
    %v973 = vpop.f32.mrb[0].mxu0
    %v974 = vadd.f32 %v808, %v973
    %v975 = vpop.f32.mrb[0].mxu0
    %976 = vmatprep.mubr.f32.mxu0 0.0
    %977 = vmatmul.mubr.f32.gmra.mrb[0].mxu0 %v196
    %v978 = vpop.f32.mrb[0].mxu0
    %v979 = vadd.f32 %v808, %v978
    %v980 = vpop.f32.mrb[0].mxu0
    %981 = vmatprep.mubr.f32.mxu0 0.0
    %982 = vmatmul.mubr.f32.gmra.mrb[0].mxu0 %v199
    %v983 = vpop.f32.mrb[0].mxu0
    %v984 = vadd.f32 %v808, %v983
    %v985 = vpop.f32.mrb[0].mxu0
    %986 = vmatprep.mubr.f32.mxu0 0.0
    %987 = vmatmul.mubr.f32.gmra.mrb[0].mxu0 %v202
    %v988 = vpop.f32.mrb[0].mxu0
    %v989 = vadd.f32 %v808, %v988
    %v990 = vpop.f32.mrb[0].mxu0
    %991 = vmatprep.mubr.f32.mxu0 0.0
    %992 = vmatmul.mubr.f32.gmra.mrb[0].mxu0 %v205
    %v993 = vpop.f32.mrb[0].mxu0
    %v994 = vadd.f32 %v808, %v993
    %v995 = vpop.f32.mrb[0].mxu0
    %996 = vmatprep.mubr.f32.mxu0 0.0
    %997 = vmatmul.mubr.f32.gmra.mrb[0].mxu0 %v208
    %v998 = vpop.f32.mrb[0].mxu0
    %v999 = vadd.f32 %v808, %v998
    %v1000 = vpop.f32.mrb[0].mxu0
    %1001 = vmatprep.mubr.f32.mxu0 0.0
    %1002 = vmatmul.mubr.f32.gmra.mrb[0].mxu0 %v211
    %v1003 = vpop.f32.mrb[0].mxu0
    %v1004 = vadd.f32 %v808, %v1003
    %v1005 = vpop.f32.mrb[0].mxu0
    %1006 = vmatprep.mubr.f32.mxu0 0.0
    %1007 = vmatmul.mubr.f32.gmra.mrb[0].mxu0 %v214
    %v1008 = vpop.f32.mrb[0].mxu0
    %v1009 = vadd.f32 %v808, %v1008
    %v1010 = vpop.f32.mrb[0].mxu0
    %1011 = vmatprep.mubr.f32.mxu0 0.0
    %1012 = vmatmul.mubr.f32.gmra.mrb[0].mxu0 %v217
    %v1013 = vpop.f32.mrb[0].mxu0
    %v1014 = vadd.f32 %v808, %v1013
    %v1015 = vpop.f32.mrb[0].mxu0
    %1016 = vmatprep.mubr.f32.mxu0 0.0
    %1017 = vmatmul.mubr.f32.gmra.mrb[0].mxu0 %v220
    %v1018 = vpop.f32.mrb[0].mxu0
    %v1019 = vadd.f32 %v808, %v1018
    %v1020 = vpop.f32.mrb[0].mxu0
    %1021 = vmatprep.mubr.f32.mxu0 0.0
    %1022 = vmatmul.mubr.f32.gmra.mrb[0].mxu0 %v223
    %v1023 = vpop.f32.mrb[0].mxu0
    %v1024 = vadd.f32 %v808, %v1023
    %v1025 = vpop.f32.mrb[0].mxu0
    %1026 = vdwg.mxu0
    %v1027 = vld [vmem:[%s4 + $0x4] sm:$0xf]
    %v1028 = vld [vmem:[%s4 + $0x18] sm:$0xf]
    %v1029 = vld [vmem:[%s4 + $0x2c] sm:$0xf]
    %v1030 = vld [vmem:[%s4 + $0x40] sm:$0xf]
    %v1031 = vld [vmem:[%s4 + $0x54] sm:$0xf]
    %v1032 = vld [vmem:[%s4 + $0x68] sm:$0xf]
    %v1033 = vld [vmem:[%s4 + $0x7c] sm:$0xf]
    %v1034 = vld [vmem:[%s4 + $0x90] sm:$0xf]
    %v1035 = vld [vmem:[%s4 + $0xa4] sm:$0xf]
    %v1036 = vld [vmem:[%s4 + $0xb8] sm:$0xf]
    %v1037 = vld [vmem:[%s4 + $0xcc] sm:$0xf]
    %v1038 = vld [vmem:[%s4 + $0xe0] sm:$0xf]
    %v1039 = vld [vmem:[%s5 + $0x1] sm:$0x1]
    %v1041 = vlaneseq
    %v1042 = vshrl.u32 %v1041, 7
    %v1043 = vsub.s32 0, %v1042
    %v1044 = vrot.slane %v1039, %v1043
    %v1058 = vunpack.c.l.b16 %v1027
    %v1059 = vunpack.c.l.b16 %v1028
    %v1060 = vunpack.c.l.b16 %v1029
    %v1061 = vunpack.c.l.b16 %v1030
    %v1062 = vunpack.c.l.b16 %v1031
    %v1063 = vunpack.c.l.b16 %v1032
    %v1064 = vunpack.c.l.b16 %v1033
    %v1065 = vunpack.c.l.b16 %v1034
    %v1066 = vunpack.c.l.b16 %v1035
    %v1067 = vunpack.c.l.b16 %v1036
    %v1068 = vunpack.c.l.b16 %v1037
    %v1069 = vunpack.c.l.b16 %v1038
    %v1070 = vpack.c.b16 %v1059, %v1058
    %v1071 = vpack.c.b16 %v1061, %v1060
    %v1072 = vpack.c.b16 %v1063, %v1062
    %v1073 = vpack.c.b16 %v1065, %v1064
    %v1074 = vpack.c.b16 %v1067, %v1066
    %v1075 = vpack.c.b16 %v1069, %v1068
    %1082 = vmatprep.subr.bf16.mxu0 0
    %1083 = vmatpush1.bf16.msra.mxu0 %v1070
    %1084 = vmatprep.subr.bf16.mxu0 0
    %1085 = vmatpush1.bf16.msra.mxu0 %v1071
    %1086 = vmatprep.subr.bf16.mxu0 0
    %1087 = vmatpush1.bf16.msra.mxu0 %v1072
    %1088 = vmatprep.subr.bf16.mxu0 0
    %1089 = vmatpush1.bf16.msra.mxu0 %v1073
    %1090 = vmatprep.subr.bf16.mxu0 0
    %1091 = vmatpush1.bf16.msra.mxu0 %v1074
    %1092 = vmatprep.subr.bf16.mxu0 0
    %1093 = vmatpush1.bf16.msra.mxu0 %v1075
    %1094 = vmatprep.subr.bf16.mxu0 0
    %1095 = vmatpush1.bf16.msra.mxu0 0
    %1096 = vmatprep.subr.bf16.mxu0 0
    %1097 = vmatpush1.bf16.msra.mxu0 0
    %1098 = vmatprep.subr.bf16.mxu0 0
    %1099 = vmatpush1.bf16.msra.mxu0 0
    %1100 = vmatprep.subr.bf16.mxu0 0
    %1101 = vmatpush1.bf16.msra.mxu0 0
    %1102 = vmatprep.subr.bf16.mxu0 0
    %1103 = vmatpush1.bf16.msra.mxu0 0
    %1104 = vmatprep.subr.bf16.mxu0 0
    %1105 = vmatpush1.bf16.msra.mxu0 0
    %1106 = vmatprep.subr.bf16.mxu0 0
    %1107 = vmatpush1.bf16.msra.mxu0 0
    %1108 = vmatprep.subr.bf16.mxu0 0
    %1109 = vmatpush1.bf16.msra.mxu0 0
    %1110 = vmatprep.subr.bf16.mxu0 0
    %1111 = vmatpush1.bf16.msra.mxu0 0
    %1112 = vmatprep.subr.bf16.mxu0 0
    %1113 = vmatpush1.bf16.msra.mxu0 0
    %1114 = vmatprep.mubr.f32.mxu0 0.0
    %1115 = vmatmul.mubr.f32.gmra.mrb[0].mxu0 %v475
    %v1116 = vpop.f32.mrb[0].mxu0
    %v1117 = vadd.f32 %v1044, %v1116
    %v1118 = vpop.f32.mrb[0].mxu0
    %1119 = vmatprep.mubr.f32.mxu0 0.0
    %1120 = vmatmul.mubr.f32.gmra.mrb[0].mxu0 %v478
    %v1121 = vpop.f32.mrb[0].mxu0
    %v1122 = vadd.f32 %v1044, %v1121
    %v1123 = vpop.f32.mrb[0].mxu0
    %1124 = vmatprep.mubr.f32.mxu0 0.0
    %1125 = vmatmul.mubr.f32.gmra.mrb[0].mxu0 %v481
    %v1126 = vpop.f32.mrb[0].mxu0
    %v1127 = vadd.f32 %v1044, %v1126
    %v1128 = vpop.f32.mrb[0].mxu0
    %1129 = vmatprep.mubr.f32.mxu0 0.0
    %1130 = vmatmul.mubr.f32.gmra.mrb[0].mxu0 %v484
    %v1131 = vpop.f32.mrb[0].mxu0
    %v1132 = vadd.f32 %v1044, %v1131
    %v1133 = vpop.f32.mrb[0].mxu0
    %1134 = vmatprep.mubr.f32.mxu0 0.0
    %1135 = vmatmul.mubr.f32.gmra.mrb[0].mxu0 %v487
    %v1136 = vpop.f32.mrb[0].mxu0
    %v1137 = vadd.f32 %v1044, %v1136
    %v1138 = vpop.f32.mrb[0].mxu0
    %1139 = vmatprep.mubr.f32.mxu0 0.0
    %1140 = vmatmul.mubr.f32.gmra.mrb[0].mxu0 %v490
    %v1141 = vpop.f32.mrb[0].mxu0
    %v1142 = vadd.f32 %v1044, %v1141
    %v1143 = vpop.f32.mrb[0].mxu0
    %1144 = vmatprep.mubr.f32.mxu0 0.0
    %1145 = vmatmul.mubr.f32.gmra.mrb[0].mxu0 %v493
    %v1146 = vpop.f32.mrb[0].mxu0
    %v1147 = vadd.f32 %v1044, %v1146
    %v1148 = vpop.f32.mrb[0].mxu0
    %1149 = vmatprep.mubr.f32.mxu0 0.0
    %1150 = vmatmul.mubr.f32.gmra.mrb[0].mxu0 %v496
    %v1151 = vpop.f32.mrb[0].mxu0
    %v1152 = vadd.f32 %v1044, %v1151
    %v1153 = vpop.f32.mrb[0].mxu0
    %1154 = vmatprep.mubr.f32.mxu0 0.0
    %1155 = vmatmul.mubr.f32.gmra.mrb[0].mxu0 %v499
    %v1156 = vpop.f32.mrb[0].mxu0
    %v1157 = vadd.f32 %v1044, %v1156
    %v1158 = vpop.f32.mrb[0].mxu0
    %1159 = vmatprep.mubr.f32.mxu0 0.0
    %1160 = vmatmul.mubr.f32.gmra.mrb[0].mxu0 %v502
    %v1161 = vpop.f32.mrb[0].mxu0
    %v1162 = vadd.f32 %v1044, %v1161
    %v1163 = vpop.f32.mrb[0].mxu0
    %1164 = vmatprep.mubr.f32.mxu0 0.0
    %1165 = vmatmul.mubr.f32.gmra.mrb[0].mxu0 %v505
    %v1166 = vpop.f32.mrb[0].mxu0
    %v1167 = vadd.f32 %v1044, %v1166
    %v1168 = vpop.f32.mrb[0].mxu0
    %1169 = vmatprep.mubr.f32.mxu0 0.0
    %1170 = vmatmul.mubr.f32.gmra.mrb[0].mxu0 %v508
    %v1171 = vpop.f32.mrb[0].mxu0
    %v1172 = vadd.f32 %v1044, %v1171
    %v1173 = vpop.f32.mrb[0].mxu0
    %1174 = vmatprep.mubr.f32.mxu0 0.0
    %1175 = vmatmul.mubr.f32.gmra.mrb[0].mxu0 %v511
    %v1176 = vpop.f32.mrb[0].mxu0
    %v1177 = vadd.f32 %v1044, %v1176
    %v1178 = vpop.f32.mrb[0].mxu0
    %1179 = vmatprep.mubr.f32.mxu0 0.0
    %1180 = vmatmul.mubr.f32.gmra.mrb[0].mxu0 %v514
    %v1181 = vpop.f32.mrb[0].mxu0
    %v1182 = vadd.f32 %v1044, %v1181
    %v1183 = vpop.f32.mrb[0].mxu0
    %1184 = vmatprep.mubr.f32.mxu0 0.0
    %1185 = vmatmul.mubr.f32.gmra.mrb[0].mxu0 %v517
    %v1186 = vpop.f32.mrb[0].mxu0
    %v1187 = vadd.f32 %v1044, %v1186
    %v1188 = vpop.f32.mrb[0].mxu0
    %1189 = vmatprep.mubr.f32.mxu0 0.0
    %1190 = vmatmul.mubr.f32.gmra.mrb[0].mxu0 %v520
    %v1191 = vpop.f32.mrb[0].mxu0
    %v1192 = vadd.f32 %v1044, %v1191
    %v1193 = vpop.f32.mrb[0].mxu0
    %1194 = vmatprep.mubr.f32.mxu0 0.0
    %1195 = vmatmul.mubr.f32.gmra.mrb[0].mxu0 %v523
    %v1196 = vpop.f32.mrb[0].mxu0
    %v1197 = vadd.f32 %v1044, %v1196
    %v1198 = vpop.f32.mrb[0].mxu0
    %1199 = vmatprep.mubr.f32.mxu0 0.0
    %1200 = vmatmul.mubr.f32.gmra.mrb[0].mxu0 %v526
    %v1201 = vpop.f32.mrb[0].mxu0
    %v1202 = vadd.f32 %v1044, %v1201
    %v1203 = vpop.f32.mrb[0].mxu0
    %1204 = vmatprep.mubr.f32.mxu0 0.0
    %1205 = vmatmul.mubr.f32.gmra.mrb[0].mxu0 %v529
    %v1206 = vpop.f32.mrb[0].mxu0
    %v1207 = vadd.f32 %v1044, %v1206
    %v1208 = vpop.f32.mrb[0].mxu0
    %1209 = vmatprep.mubr.f32.mxu0 0.0
    %1210 = vmatmul.mubr.f32.gmra.mrb[0].mxu0 %v532
    %v1211 = vpop.f32.mrb[0].mxu0
    %v1212 = vadd.f32 %v1044, %v1211
    %v1213 = vpop.f32.mrb[0].mxu0
    %1214 = vmatprep.mubr.f32.mxu0 0.0
    %1215 = vmatmul.mubr.f32.gmra.mrb[0].mxu0 %v535
    %v1216 = vpop.f32.mrb[0].mxu0
    %v1217 = vadd.f32 %v1044, %v1216
    %v1218 = vpop.f32.mrb[0].mxu0
    %1219 = vmatprep.mubr.f32.mxu0 0.0
    %1220 = vmatmul.mubr.f32.gmra.mrb[0].mxu0 %v538
    %v1221 = vpop.f32.mrb[0].mxu0
    %v1222 = vadd.f32 %v1044, %v1221
    %v1223 = vpop.f32.mrb[0].mxu0
    %1224 = vmatprep.mubr.f32.mxu0 0.0
    %1225 = vmatmul.mubr.f32.gmra.mrb[0].mxu0 %v541
    %v1226 = vpop.f32.mrb[0].mxu0
    %v1227 = vadd.f32 %v1044, %v1226
    %v1228 = vpop.f32.mrb[0].mxu0
    %1229 = vmatprep.mubr.f32.mxu0 0.0
    %1230 = vmatmul.mubr.f32.gmra.mrb[0].mxu0 %v544
    %v1231 = vpop.f32.mrb[0].mxu0
    %v1232 = vadd.f32 %v1044, %v1231
    %v1233 = vpop.f32.mrb[0].mxu0
    %1234 = vmatprep.mubr.f32.mxu0 0.0
    %1235 = vmatmul.mubr.f32.gmra.mrb[0].mxu0 %v547
    %v1236 = vpop.f32.mrb[0].mxu0
    %v1237 = vadd.f32 %v1044, %v1236
    %v1238 = vpop.f32.mrb[0].mxu0
    %1239 = vmatprep.mubr.f32.mxu0 0.0
    %1240 = vmatmul.mubr.f32.gmra.mrb[0].mxu0 %v550
    %v1241 = vpop.f32.mrb[0].mxu0
    %v1242 = vadd.f32 %v1044, %v1241
    %v1243 = vpop.f32.mrb[0].mxu0
    %1244 = vmatprep.mubr.f32.mxu0 0.0
    %1245 = vmatmul.mubr.f32.gmra.mrb[0].mxu0 %v553
    %v1246 = vpop.f32.mrb[0].mxu0
    %v1247 = vadd.f32 %v1044, %v1246
    %v1248 = vpop.f32.mrb[0].mxu0
    %1249 = vmatprep.mubr.f32.mxu0 0.0
    %1250 = vmatmul.mubr.f32.gmra.mrb[0].mxu0 %v556
    %v1251 = vpop.f32.mrb[0].mxu0
    %v1252 = vadd.f32 %v1044, %v1251
    %v1253 = vpop.f32.mrb[0].mxu0
    %1254 = vmatprep.mubr.f32.mxu0 0.0
    %1255 = vmatmul.mubr.f32.gmra.mrb[0].mxu0 %v559
    %v1256 = vpop.f32.mrb[0].mxu0
    %v1257 = vadd.f32 %v1044, %v1256
    %v1258 = vpop.f32.mrb[0].mxu0
    %1259 = vmatprep.mubr.f32.mxu0 0.0
    %1260 = vmatmul.mubr.f32.gmra.mrb[0].mxu0 %v562
    %v1261 = vpop.f32.mrb[0].mxu0
    %v1262 = vadd.f32 %v1044, %v1261
    %v1263 = vpop.f32.mrb[0].mxu0
    %1264 = vmatprep.mubr.f32.mxu0 0.0
    %1265 = vmatmul.mubr.f32.gmra.mrb[0].mxu0 %v565
    %v1266 = vpop.f32.mrb[0].mxu0
    %v1267 = vadd.f32 %v1044, %v1266
    %v1268 = vpop.f32.mrb[0].mxu0
    %1269 = vmatprep.mubr.f32.mxu0 0.0
    %1270 = vmatmul.mubr.f32.gmra.mrb[0].mxu0 %v568
    %v1271 = vpop.f32.mrb[0].mxu0
    %v1272 = vadd.f32 %v1044, %v1271
    %v1273 = vpop.f32.mrb[0].mxu0
    %1274 = vdwg.mxu0
    %v1275 = vmul.f32 %v869, %v1117
    %v1276 = vmul.f32 %v874, %v1122
    %v1277 = vmul.f32 %v879, %v1127
    %v1278 = vmul.f32 %v884, %v1132
    %v1279 = vmul.f32 %v889, %v1137
    %v1280 = vmul.f32 %v894, %v1142
    %v1281 = vmul.f32 %v899, %v1147
    %v1282 = vmul.f32 %v904, %v1152
    %v1283 = vmul.f32 %v909, %v1157
    %v1284 = vmul.f32 %v914, %v1162
    %v1285 = vmul.f32 %v919, %v1167
    %v1286 = vmul.f32 %v924, %v1172
    %v1287 = vmul.f32 %v929, %v1177
    %v1288 = vmul.f32 %v934, %v1182
    %v1289 = vmul.f32 %v939, %v1187
    %v1290 = vmul.f32 %v944, %v1192
    %v1291 = vmul.f32 %v949, %v1197
    %v1292 = vmul.f32 %v954, %v1202
    %v1293 = vmul.f32 %v959, %v1207
    %v1294 = vmul.f32 %v964, %v1212
    %v1295 = vmul.f32 %v969, %v1217
    %v1296 = vmul.f32 %v974, %v1222
    %v1297 = vmul.f32 %v979, %v1227
    %v1298 = vmul.f32 %v984, %v1232
    %v1299 = vmul.f32 %v989, %v1237
    %v1300 = vmul.f32 %v994, %v1242
    %v1301 = vmul.f32 %v999, %v1247
    %v1302 = vmul.f32 %v1004, %v1252
    %v1303 = vmul.f32 %v1009, %v1257
    %v1304 = vmul.f32 %v1014, %v1262
    %v1305 = vmul.f32 %v1019, %v1267
    %v1306 = vmul.f32 %v1024, %v1272
    %v1307 = vadd.f32 %v763, %v1275
    %v1308 = vadd.f32 %v764, %v1276
    %v1309 = vadd.f32 %v765, %v1277
    %v1310 = vadd.f32 %v766, %v1278
    %v1311 = vadd.f32 %v767, %v1279
    %v1312 = vadd.f32 %v768, %v1280
    %v1313 = vadd.f32 %v769, %v1281
    %v1314 = vadd.f32 %v770, %v1282
    %v1315 = vadd.f32 %v771, %v1283
    %v1316 = vadd.f32 %v772, %v1284
    %v1317 = vadd.f32 %v773, %v1285
    %v1318 = vadd.f32 %v774, %v1286
    %v1319 = vadd.f32 %v775, %v1287
    %v1320 = vadd.f32 %v776, %v1288
    %v1321 = vadd.f32 %v777, %v1289
    %v1322 = vadd.f32 %v778, %v1290
    %v1323 = vadd.f32 %v779, %v1291
    %v1324 = vadd.f32 %v780, %v1292
    %v1325 = vadd.f32 %v781, %v1293
    %v1326 = vadd.f32 %v782, %v1294
    %v1327 = vadd.f32 %v783, %v1295
    %v1328 = vadd.f32 %v784, %v1296
    %v1329 = vadd.f32 %v785, %v1297
    %v1330 = vadd.f32 %v786, %v1298
    %v1331 = vadd.f32 %v787, %v1299
    %v1332 = vadd.f32 %v788, %v1300
    %v1333 = vadd.f32 %v789, %v1301
    %v1334 = vadd.f32 %v790, %v1302
    %v1335 = vadd.f32 %v791, %v1303
    %v1336 = vadd.f32 %v792, %v1304
    %v1337 = vadd.f32 %v793, %v1305
    %v1338 = vadd.f32 %v794, %v1306
    %v1339 = vld [vmem:[%s1 + $0x8] sm:$0xf]
    %v1340 = vld [vmem:[%s1 + $0x1c] sm:$0xf]
    %v1341 = vld [vmem:[%s1 + $0x30] sm:$0xf]
    %v1342 = vld [vmem:[%s1 + $0x44] sm:$0xf]
    %v1343 = vld [vmem:[%s1 + $0x58] sm:$0xf]
    %v1344 = vld [vmem:[%s1 + $0x6c] sm:$0xf]
    %v1345 = vld [vmem:[%s1 + $0x80] sm:$0xf]
    %v1346 = vld [vmem:[%s1 + $0x94] sm:$0xf]
    %v1347 = vld [vmem:[%s2 + $0x2] sm:$0x1]
    %v1349 = vlaneseq
    %v1350 = vshrl.u32 %v1349, 7
    %v1351 = vsub.s32 0, %v1350
    %v1352 = vrot.slane %v1347, %v1351
    %v1362 = vunpack.c.l.b16 %v1339
    %v1363 = vunpack.c.l.b16 %v1340
    %v1364 = vunpack.c.l.b16 %v1341
    %v1365 = vunpack.c.l.b16 %v1342
    %v1366 = vunpack.c.l.b16 %v1343
    %v1367 = vunpack.c.l.b16 %v1344
    %v1368 = vunpack.c.l.b16 %v1345
    %v1369 = vunpack.c.l.b16 %v1346
    %v1370 = vpack.c.b16 %v1363, %v1362
    %v1371 = vpack.c.b16 %v1365, %v1364
    %v1372 = vpack.c.b16 %v1367, %v1366
    %v1373 = vpack.c.b16 %v1369, %v1368
    %1378 = vmatprep.subr.bf16.mxu0 0
    %1379 = vmatpush1.bf16.msra.mxu0 %v1370
    %1380 = vmatprep.subr.bf16.mxu0 0
    %1381 = vmatpush1.bf16.msra.mxu0 %v1371
    %1382 = vmatprep.subr.bf16.mxu0 0
    %1383 = vmatpush1.bf16.msra.mxu0 %v1372
    %1384 = vmatprep.subr.bf16.mxu0 0
    %1385 = vmatpush1.bf16.msra.mxu0 %v1373
    %1386 = vmatprep.subr.bf16.mxu0 0
    %1387 = vmatpush1.bf16.msra.mxu0 0
    %1388 = vmatprep.subr.bf16.mxu0 0
    %1389 = vmatpush1.bf16.msra.mxu0 0
    %1390 = vmatprep.subr.bf16.mxu0 0
    %1391 = vmatpush1.bf16.msra.mxu0 0
    %1392 = vmatprep.subr.bf16.mxu0 0
    %1393 = vmatpush1.bf16.msra.mxu0 0
    %1394 = vmatprep.subr.bf16.mxu0 0
    %1395 = vmatpush1.bf16.msra.mxu0 0
    %1396 = vmatprep.subr.bf16.mxu0 0
    %1397 = vmatpush1.bf16.msra.mxu0 0
    %1398 = vmatprep.subr.bf16.mxu0 0
    %1399 = vmatpush1.bf16.msra.mxu0 0
    %1400 = vmatprep.subr.bf16.mxu0 0
    %1401 = vmatpush1.bf16.msra.mxu0 0
    %1402 = vmatprep.subr.bf16.mxu0 0
    %1403 = vmatpush1.bf16.msra.mxu0 0
    %1404 = vmatprep.subr.bf16.mxu0 0
    %1405 = vmatpush1.bf16.msra.mxu0 0
    %1406 = vmatprep.subr.bf16.mxu0 0
    %1407 = vmatpush1.bf16.msra.mxu0 0
    %1408 = vmatprep.subr.bf16.mxu0 0
    %1409 = vmatpush1.bf16.msra.mxu0 0
    %1410 = vmatprep.mubr.f32.mxu0 0.0
    %1411 = vmatmul.mubr.f32.gmra.mrb[0].mxu0 %v130
    %v1412 = vpop.f32.mrb[0].mxu0
    %v1413 = vadd.f32 %v1352, %v1412
    %v1414 = vpop.f32.mrb[0].mxu0
    %1415 = vmatprep.mubr.f32.mxu0 0.0
    %1416 = vmatmul.mubr.f32.gmra.mrb[0].mxu0 %v133
    %v1417 = vpop.f32.mrb[0].mxu0
    %v1418 = vadd.f32 %v1352, %v1417
    %v1419 = vpop.f32.mrb[0].mxu0
    %1420 = vmatprep.mubr.f32.mxu0 0.0
    %1421 = vmatmul.mubr.f32.gmra.mrb[0].mxu0 %v136
    %v1422 = vpop.f32.mrb[0].mxu0
    %v1423 = vadd.f32 %v1352, %v1422
    %v1424 = vpop.f32.mrb[0].mxu0
    %1425 = vmatprep.mubr.f32.mxu0 0.0
    %1426 = vmatmul.mubr.f32.gmra.mrb[0].mxu0 %v139
    %v1427 = vpop.f32.mrb[0].mxu0
    %v1428 = vadd.f32 %v1352, %v1427
    %v1429 = vpop.f32.mrb[0].mxu0
    %1430 = vmatprep.mubr.f32.mxu0 0.0
    %1431 = vmatmul.mubr.f32.gmra.mrb[0].mxu0 %v142
    %v1432 = vpop.f32.mrb[0].mxu0
    %v1433 = vadd.f32 %v1352, %v1432
    %v1434 = vpop.f32.mrb[0].mxu0
    %1435 = vmatprep.mubr.f32.mxu0 0.0
    %1436 = vmatmul.mubr.f32.gmra.mrb[0].mxu0 %v145
    %v1437 = vpop.f32.mrb[0].mxu0
    %v1438 = vadd.f32 %v1352, %v1437
    %v1439 = vpop.f32.mrb[0].mxu0
    %1440 = vmatprep.mubr.f32.mxu0 0.0
    %1441 = vmatmul.mubr.f32.gmra.mrb[0].mxu0 %v148
    %v1442 = vpop.f32.mrb[0].mxu0
    %v1443 = vadd.f32 %v1352, %v1442
    %v1444 = vpop.f32.mrb[0].mxu0
    %1445 = vmatprep.mubr.f32.mxu0 0.0
    %1446 = vmatmul.mubr.f32.gmra.mrb[0].mxu0 %v151
    %v1447 = vpop.f32.mrb[0].mxu0
    %v1448 = vadd.f32 %v1352, %v1447
    %v1449 = vpop.f32.mrb[0].mxu0
    %1450 = vmatprep.mubr.f32.mxu0 0.0
    %1451 = vmatmul.mubr.f32.gmra.mrb[0].mxu0 %v154
    %v1452 = vpop.f32.mrb[0].mxu0
    %v1453 = vadd.f32 %v1352, %v1452
    %v1454 = vpop.f32.mrb[0].mxu0
    %1455 = vmatprep.mubr.f32.mxu0 0.0
    %1456 = vmatmul.mubr.f32.gmra.mrb[0].mxu0 %v157
    %v1457 = vpop.f32.mrb[0].mxu0
    %v1458 = vadd.f32 %v1352, %v1457
    %v1459 = vpop.f32.mrb[0].mxu0
    %1460 = vmatprep.mubr.f32.mxu0 0.0
    %1461 = vmatmul.mubr.f32.gmra.mrb[0].mxu0 %v160
    %v1462 = vpop.f32.mrb[0].mxu0
    %v1463 = vadd.f32 %v1352, %v1462
    %v1464 = vpop.f32.mrb[0].mxu0
    %1465 = vmatprep.mubr.f32.mxu0 0.0
    %1466 = vmatmul.mubr.f32.gmra.mrb[0].mxu0 %v163
    %v1467 = vpop.f32.mrb[0].mxu0
    %v1468 = vadd.f32 %v1352, %v1467
    %v1469 = vpop.f32.mrb[0].mxu0
    %1470 = vmatprep.mubr.f32.mxu0 0.0
    %1471 = vmatmul.mubr.f32.gmra.mrb[0].mxu0 %v166
    %v1472 = vpop.f32.mrb[0].mxu0
    %v1473 = vadd.f32 %v1352, %v1472
    %v1474 = vpop.f32.mrb[0].mxu0
    %1475 = vmatprep.mubr.f32.mxu0 0.0
    %1476 = vmatmul.mubr.f32.gmra.mrb[0].mxu0 %v169
    %v1477 = vpop.f32.mrb[0].mxu0
    %v1478 = vadd.f32 %v1352, %v1477
    %v1479 = vpop.f32.mrb[0].mxu0
    %1480 = vmatprep.mubr.f32.mxu0 0.0
    %1481 = vmatmul.mubr.f32.gmra.mrb[0].mxu0 %v172
    %v1482 = vpop.f32.mrb[0].mxu0
    %v1483 = vadd.f32 %v1352, %v1482
    %v1484 = vpop.f32.mrb[0].mxu0
    %1485 = vmatprep.mubr.f32.mxu0 0.0
    %1486 = vmatmul.mubr.f32.gmra.mrb[0].mxu0 %v175
    %v1487 = vpop.f32.mrb[0].mxu0
    %v1488 = vadd.f32 %v1352, %v1487
    %v1489 = vpop.f32.mrb[0].mxu0
    %1490 = vmatprep.mubr.f32.mxu0 0.0
    %1491 = vmatmul.mubr.f32.gmra.mrb[0].mxu0 %v178
    %v1492 = vpop.f32.mrb[0].mxu0
    %v1493 = vadd.f32 %v1352, %v1492
    %v1494 = vpop.f32.mrb[0].mxu0
    %1495 = vmatprep.mubr.f32.mxu0 0.0
    %1496 = vmatmul.mubr.f32.gmra.mrb[0].mxu0 %v181
    %v1497 = vpop.f32.mrb[0].mxu0
    %v1498 = vadd.f32 %v1352, %v1497
    %v1499 = vpop.f32.mrb[0].mxu0
    %1500 = vmatprep.mubr.f32.mxu0 0.0
    %1501 = vmatmul.mubr.f32.gmra.mrb[0].mxu0 %v184
    %v1502 = vpop.f32.mrb[0].mxu0
    %v1503 = vadd.f32 %v1352, %v1502
    %v1504 = vpop.f32.mrb[0].mxu0
    %1505 = vmatprep.mubr.f32.mxu0 0.0
    %1506 = vmatmul.mubr.f32.gmra.mrb[0].mxu0 %v187
    %v1507 = vpop.f32.mrb[0].mxu0
    %v1508 = vadd.f32 %v1352, %v1507
    %v1509 = vpop.f32.mrb[0].mxu0
    %1510 = vmatprep.mubr.f32.mxu0 0.0
    %1511 = vmatmul.mubr.f32.gmra.mrb[0].mxu0 %v190
    %v1512 = vpop.f32.mrb[0].mxu0
    %v1513 = vadd.f32 %v1352, %v1512
    %v1514 = vpop.f32.mrb[0].mxu0
    %1515 = vmatprep.mubr.f32.mxu0 0.0
    %1516 = vmatmul.mubr.f32.gmra.mrb[0].mxu0 %v193
    %v1517 = vpop.f32.mrb[0].mxu0
    %v1518 = vadd.f32 %v1352, %v1517
    %v1519 = vpop.f32.mrb[0].mxu0
    %1520 = vmatprep.mubr.f32.mxu0 0.0
    %1521 = vmatmul.mubr.f32.gmra.mrb[0].mxu0 %v196
    %v1522 = vpop.f32.mrb[0].mxu0
    %v1523 = vadd.f32 %v1352, %v1522
    %v1524 = vpop.f32.mrb[0].mxu0
    %1525 = vmatprep.mubr.f32.mxu0 0.0
    %1526 = vmatmul.mubr.f32.gmra.mrb[0].mxu0 %v199
    %v1527 = vpop.f32.mrb[0].mxu0
    %v1528 = vadd.f32 %v1352, %v1527
    %v1529 = vpop.f32.mrb[0].mxu0
    %1530 = vmatprep.mubr.f32.mxu0 0.0
    %1531 = vmatmul.mubr.f32.gmra.mrb[0].mxu0 %v202
    %v1532 = vpop.f32.mrb[0].mxu0
    %v1533 = vadd.f32 %v1352, %v1532
    %v1534 = vpop.f32.mrb[0].mxu0
    %1535 = vmatprep.mubr.f32.mxu0 0.0
    %1536 = vmatmul.mubr.f32.gmra.mrb[0].mxu0 %v205
    %v1537 = vpop.f32.mrb[0].mxu0
    %v1538 = vadd.f32 %v1352, %v1537
    %v1539 = vpop.f32.mrb[0].mxu0
    %1540 = vmatprep.mubr.f32.mxu0 0.0
    %1541 = vmatmul.mubr.f32.gmra.mrb[0].mxu0 %v208
    %v1542 = vpop.f32.mrb[0].mxu0
    %v1543 = vadd.f32 %v1352, %v1542
    %v1544 = vpop.f32.mrb[0].mxu0
    %1545 = vmatprep.mubr.f32.mxu0 0.0
    %1546 = vmatmul.mubr.f32.gmra.mrb[0].mxu0 %v211
    %v1547 = vpop.f32.mrb[0].mxu0
    %v1548 = vadd.f32 %v1352, %v1547
    %v1549 = vpop.f32.mrb[0].mxu0
    %1550 = vmatprep.mubr.f32.mxu0 0.0
    %1551 = vmatmul.mubr.f32.gmra.mrb[0].mxu0 %v214
    %v1552 = vpop.f32.mrb[0].mxu0
    %v1553 = vadd.f32 %v1352, %v1552
    %v1554 = vpop.f32.mrb[0].mxu0
    %1555 = vmatprep.mubr.f32.mxu0 0.0
    %1556 = vmatmul.mubr.f32.gmra.mrb[0].mxu0 %v217
    %v1557 = vpop.f32.mrb[0].mxu0
    %v1558 = vadd.f32 %v1352, %v1557
    %v1559 = vpop.f32.mrb[0].mxu0
    %1560 = vmatprep.mubr.f32.mxu0 0.0
    %1561 = vmatmul.mubr.f32.gmra.mrb[0].mxu0 %v220
    %v1562 = vpop.f32.mrb[0].mxu0
    %v1563 = vadd.f32 %v1352, %v1562
    %v1564 = vpop.f32.mrb[0].mxu0
    %1565 = vmatprep.mubr.f32.mxu0 0.0
    %1566 = vmatmul.mubr.f32.gmra.mrb[0].mxu0 %v223
    %v1567 = vpop.f32.mrb[0].mxu0
    %v1568 = vadd.f32 %v1352, %v1567
    %v1569 = vpop.f32.mrb[0].mxu0
    %1570 = vdwg.mxu0
    %v1571 = vld [vmem:[%s4 + $0x8] sm:$0xf]
    %v1572 = vld [vmem:[%s4 + $0x1c] sm:$0xf]
    %v1573 = vld [vmem:[%s4 + $0x30] sm:$0xf]
    %v1574 = vld [vmem:[%s4 + $0x44] sm:$0xf]
    %v1575 = vld [vmem:[%s4 + $0x58] sm:$0xf]
    %v1576 = vld [vmem:[%s4 + $0x6c] sm:$0xf]
    %v1577 = vld [vmem:[%s4 + $0x80] sm:$0xf]
    %v1578 = vld [vmem:[%s4 + $0x94] sm:$0xf]
    %v1579 = vld [vmem:[%s4 + $0xa8] sm:$0xf]
    %v1580 = vld [vmem:[%s4 + $0xbc] sm:$0xf]
    %v1581 = vld [vmem:[%s4 + $0xd0] sm:$0xf]
    %v1582 = vld [vmem:[%s4 + $0xe4] sm:$0xf]
    %v1583 = vld [vmem:[%s5 + $0x2] sm:$0x1]
    %v1585 = vlaneseq
    %v1586 = vshrl.u32 %v1585, 7
    %v1587 = vsub.s32 0, %v1586
    %v1588 = vrot.slane %v1583, %v1587
    %v1602 = vunpack.c.l.b16 %v1571
    %v1603 = vunpack.c.l.b16 %v1572
    %v1604 = vunpack.c.l.b16 %v1573
    %v1605 = vunpack.c.l.b16 %v1574
    %v1606 = vunpack.c.l.b16 %v1575
    %v1607 = vunpack.c.l.b16 %v1576
    %v1608 = vunpack.c.l.b16 %v1577
    %v1609 = vunpack.c.l.b16 %v1578
    %v1610 = vunpack.c.l.b16 %v1579
    %v1611 = vunpack.c.l.b16 %v1580
    %v1612 = vunpack.c.l.b16 %v1581
    %v1613 = vunpack.c.l.b16 %v1582
    %v1614 = vpack.c.b16 %v1603, %v1602
    %v1615 = vpack.c.b16 %v1605, %v1604
    %v1616 = vpack.c.b16 %v1607, %v1606
    %v1617 = vpack.c.b16 %v1609, %v1608
    %v1618 = vpack.c.b16 %v1611, %v1610
    %v1619 = vpack.c.b16 %v1613, %v1612
    %1626 = vmatprep.subr.bf16.mxu0 0
    %1627 = vmatpush1.bf16.msra.mxu0 %v1614
    %1628 = vmatprep.subr.bf16.mxu0 0
    %1629 = vmatpush1.bf16.msra.mxu0 %v1615
    %1630 = vmatprep.subr.bf16.mxu0 0
    %1631 = vmatpush1.bf16.msra.mxu0 %v1616
    %1632 = vmatprep.subr.bf16.mxu0 0
    %1633 = vmatpush1.bf16.msra.mxu0 %v1617
    %1634 = vmatprep.subr.bf16.mxu0 0
    %1635 = vmatpush1.bf16.msra.mxu0 %v1618
    %1636 = vmatprep.subr.bf16.mxu0 0
    %1637 = vmatpush1.bf16.msra.mxu0 %v1619
    %1638 = vmatprep.subr.bf16.mxu0 0
    %1639 = vmatpush1.bf16.msra.mxu0 0
    %1640 = vmatprep.subr.bf16.mxu0 0
    %1641 = vmatpush1.bf16.msra.mxu0 0
    %1642 = vmatprep.subr.bf16.mxu0 0
    %1643 = vmatpush1.bf16.msra.mxu0 0
    %1644 = vmatprep.subr.bf16.mxu0 0
    %1645 = vmatpush1.bf16.msra.mxu0 0
    %1646 = vmatprep.subr.bf16.mxu0 0
    %1647 = vmatpush1.bf16.msra.mxu0 0
    %1648 = vmatprep.subr.bf16.mxu0 0
    %1649 = vmatpush1.bf16.msra.mxu0 0
    %1650 = vmatprep.subr.bf16.mxu0 0
    %1651 = vmatpush1.bf16.msra.mxu0 0
    %1652 = vmatprep.subr.bf16.mxu0 0
    %1653 = vmatpush1.bf16.msra.mxu0 0
    %1654 = vmatprep.subr.bf16.mxu0 0
    %1655 = vmatpush1.bf16.msra.mxu0 0
    %1656 = vmatprep.subr.bf16.mxu0 0
    %1657 = vmatpush1.bf16.msra.mxu0 0
    %1658 = vmatprep.mubr.f32.mxu0 0.0
    %1659 = vmatmul.mubr.f32.gmra.mrb[0].mxu0 %v475
    %v1660 = vpop.f32.mrb[0].mxu0
    %v1661 = vadd.f32 %v1588, %v1660
    %v1662 = vpop.f32.mrb[0].mxu0
    %1663 = vmatprep.mubr.f32.mxu0 0.0
    %1664 = vmatmul.mubr.f32.gmra.mrb[0].mxu0 %v478
    %v1665 = vpop.f32.mrb[0].mxu0
    %v1666 = vadd.f32 %v1588, %v1665
    %v1667 = vpop.f32.mrb[0].mxu0
    %1668 = vmatprep.mubr.f32.mxu0 0.0
    %1669 = vmatmul.mubr.f32.gmra.mrb[0].mxu0 %v481
    %v1670 = vpop.f32.mrb[0].mxu0
    %v1671 = vadd.f32 %v1588, %v1670
    %v1672 = vpop.f32.mrb[0].mxu0
    %1673 = vmatprep.mubr.f32.mxu0 0.0
    %1674 = vmatmul.mubr.f32.gmra.mrb[0].mxu0 %v484
    %v1675 = vpop.f32.mrb[0].mxu0
    %v1676 = vadd.f32 %v1588, %v1675
    %v1677 = vpop.f32.mrb[0].mxu0
    %1678 = vmatprep.mubr.f32.mxu0 0.0
    %1679 = vmatmul.mubr.f32.gmra.mrb[0].mxu0 %v487
    %v1680 = vpop.f32.mrb[0].mxu0
    %v1681 = vadd.f32 %v1588, %v1680
    %v1682 = vpop.f32.mrb[0].mxu0
    %1683 = vmatprep.mubr.f32.mxu0 0.0
    %1684 = vmatmul.mubr.f32.gmra.mrb[0].mxu0 %v490
    %v1685 = vpop.f32.mrb[0].mxu0
    %v1686 = vadd.f32 %v1588, %v1685
    %v1687 = vpop.f32.mrb[0].mxu0
    %1688 = vmatprep.mubr.f32.mxu0 0.0
    %1689 = vmatmul.mubr.f32.gmra.mrb[0].mxu0 %v493
    %v1690 = vpop.f32.mrb[0].mxu0
    %v1691 = vadd.f32 %v1588, %v1690
    %v1692 = vpop.f32.mrb[0].mxu0
    %1693 = vmatprep.mubr.f32.mxu0 0.0
    %1694 = vmatmul.mubr.f32.gmra.mrb[0].mxu0 %v496
    %v1695 = vpop.f32.mrb[0].mxu0
    %v1696 = vadd.f32 %v1588, %v1695
    %v1697 = vpop.f32.mrb[0].mxu0
    %1698 = vmatprep.mubr.f32.mxu0 0.0
    %1699 = vmatmul.mubr.f32.gmra.mrb[0].mxu0 %v499
    %v1700 = vpop.f32.mrb[0].mxu0
    %v1701 = vadd.f32 %v1588, %v1700
    %v1702 = vpop.f32.mrb[0].mxu0
    %1703 = vmatprep.mubr.f32.mxu0 0.0
    %1704 = vmatmul.mubr.f32.gmra.mrb[0].mxu0 %v502
    %v1705 = vpop.f32.mrb[0].mxu0
    %v1706 = vadd.f32 %v1588, %v1705
    %v1707 = vpop.f32.mrb[0].mxu0
    %1708 = vmatprep.mubr.f32.mxu0 0.0
    %1709 = vmatmul.mubr.f32.gmra.mrb[0].mxu0 %v505
    %v1710 = vpop.f32.mrb[0].mxu0
    %v1711 = vadd.f32 %v1588, %v1710
    %v1712 = vpop.f32.mrb[0].mxu0
    %1713 = vmatprep.mubr.f32.mxu0 0.0
    %1714 = vmatmul.mubr.f32.gmra.mrb[0].mxu0 %v508
    %v1715 = vpop.f32.mrb[0].mxu0
    %v1716 = vadd.f32 %v1588, %v1715
    %v1717 = vpop.f32.mrb[0].mxu0
    %1718 = vmatprep.mubr.f32.mxu0 0.0
    %1719 = vmatmul.mubr.f32.gmra.mrb[0].mxu0 %v511
    %v1720 = vpop.f32.mrb[0].mxu0
    %v1721 = vadd.f32 %v1588, %v1720
    %v1722 = vpop.f32.mrb[0].mxu0
    %1723 = vmatprep.mubr.f32.mxu0 0.0
    %1724 = vmatmul.mubr.f32.gmra.mrb[0].mxu0 %v514
    %v1725 = vpop.f32.mrb[0].mxu0
    %v1726 = vadd.f32 %v1588, %v1725
    %v1727 = vpop.f32.mrb[0].mxu0
    %1728 = vmatprep.mubr.f32.mxu0 0.0
    %1729 = vmatmul.mubr.f32.gmra.mrb[0].mxu0 %v517
    %v1730 = vpop.f32.mrb[0].mxu0
    %v1731 = vadd.f32 %v1588, %v1730
    %v1732 = vpop.f32.mrb[0].mxu0
    %1733 = vmatprep.mubr.f32.mxu0 0.0
    %1734 = vmatmul.mubr.f32.gmra.mrb[0].mxu0 %v520
    %v1735 = vpop.f32.mrb[0].mxu0
    %v1736 = vadd.f32 %v1588, %v1735
    %v1737 = vpop.f32.mrb[0].mxu0
    %1738 = vmatprep.mubr.f32.mxu0 0.0
    %1739 = vmatmul.mubr.f32.gmra.mrb[0].mxu0 %v523
    %v1740 = vpop.f32.mrb[0].mxu0
    %v1741 = vadd.f32 %v1588, %v1740
    %v1742 = vpop.f32.mrb[0].mxu0
    %1743 = vmatprep.mubr.f32.mxu0 0.0
    %1744 = vmatmul.mubr.f32.gmra.mrb[0].mxu0 %v526
    %v1745 = vpop.f32.mrb[0].mxu0
    %v1746 = vadd.f32 %v1588, %v1745
    %v1747 = vpop.f32.mrb[0].mxu0
    %1748 = vmatprep.mubr.f32.mxu0 0.0
    %1749 = vmatmul.mubr.f32.gmra.mrb[0].mxu0 %v529
    %v1750 = vpop.f32.mrb[0].mxu0
    %v1751 = vadd.f32 %v1588, %v1750
    %v1752 = vpop.f32.mrb[0].mxu0
    %1753 = vmatprep.mubr.f32.mxu0 0.0
    %1754 = vmatmul.mubr.f32.gmra.mrb[0].mxu0 %v532
    %v1755 = vpop.f32.mrb[0].mxu0
    %v1756 = vadd.f32 %v1588, %v1755
    %v1757 = vpop.f32.mrb[0].mxu0
    %1758 = vmatprep.mubr.f32.mxu0 0.0
    %1759 = vmatmul.mubr.f32.gmra.mrb[0].mxu0 %v535
    %v1760 = vpop.f32.mrb[0].mxu0
    %v1761 = vadd.f32 %v1588, %v1760
    %v1762 = vpop.f32.mrb[0].mxu0
    %1763 = vmatprep.mubr.f32.mxu0 0.0
    %1764 = vmatmul.mubr.f32.gmra.mrb[0].mxu0 %v538
    %v1765 = vpop.f32.mrb[0].mxu0
    %v1766 = vadd.f32 %v1588, %v1765
    %v1767 = vpop.f32.mrb[0].mxu0
    %1768 = vmatprep.mubr.f32.mxu0 0.0
    %1769 = vmatmul.mubr.f32.gmra.mrb[0].mxu0 %v541
    %v1770 = vpop.f32.mrb[0].mxu0
    %v1771 = vadd.f32 %v1588, %v1770
    %v1772 = vpop.f32.mrb[0].mxu0
    %1773 = vmatprep.mubr.f32.mxu0 0.0
    %1774 = vmatmul.mubr.f32.gmra.mrb[0].mxu0 %v544
    %v1775 = vpop.f32.mrb[0].mxu0
    %v1776 = vadd.f32 %v1588, %v1775
    %v1777 = vpop.f32.mrb[0].mxu0
    %1778 = vmatprep.mubr.f32.mxu0 0.0
    %1779 = vmatmul.mubr.f32.gmra.mrb[0].mxu0 %v547
    %v1780 = vpop.f32.mrb[0].mxu0
    %v1781 = vadd.f32 %v1588, %v1780
    %v1782 = vpop.f32.mrb[0].mxu0
    %1783 = vmatprep.mubr.f32.mxu0 0.0
    %1784 = vmatmul.mubr.f32.gmra.mrb[0].mxu0 %v550
    %v1785 = vpop.f32.mrb[0].mxu0
    %v1786 = vadd.f32 %v1588, %v1785
    %v1787 = vpop.f32.mrb[0].mxu0
    %1788 = vmatprep.mubr.f32.mxu0 0.0
    %1789 = vmatmul.mubr.f32.gmra.mrb[0].mxu0 %v553
    %v1790 = vpop.f32.mrb[0].mxu0
    %v1791 = vadd.f32 %v1588, %v1790
    %v1792 = vpop.f32.mrb[0].mxu0
    %1793 = vmatprep.mubr.f32.mxu0 0.0
    %1794 = vmatmul.mubr.f32.gmra.mrb[0].mxu0 %v556
    %v1795 = vpop.f32.mrb[0].mxu0
    %v1796 = vadd.f32 %v1588, %v1795
    %v1797 = vpop.f32.mrb[0].mxu0
    %1798 = vmatprep.mubr.f32.mxu0 0.0
    %1799 = vmatmul.mubr.f32.gmra.mrb[0].mxu0 %v559
    %v1800 = vpop.f32.mrb[0].mxu0
    %v1801 = vadd.f32 %v1588, %v1800
    %v1802 = vpop.f32.mrb[0].mxu0
    %1803 = vmatprep.mubr.f32.mxu0 0.0
    %1804 = vmatmul.mubr.f32.gmra.mrb[0].mxu0 %v562
    %v1805 = vpop.f32.mrb[0].mxu0
    %v1806 = vadd.f32 %v1588, %v1805
    %v1807 = vpop.f32.mrb[0].mxu0
    %1808 = vmatprep.mubr.f32.mxu0 0.0
    %1809 = vmatmul.mubr.f32.gmra.mrb[0].mxu0 %v565
    %v1810 = vpop.f32.mrb[0].mxu0
    %v1811 = vadd.f32 %v1588, %v1810
    %v1812 = vpop.f32.mrb[0].mxu0
    %1813 = vmatprep.mubr.f32.mxu0 0.0
    %1814 = vmatmul.mubr.f32.gmra.mrb[0].mxu0 %v568
    %v1815 = vpop.f32.mrb[0].mxu0
    %v1816 = vadd.f32 %v1588, %v1815
    %v1817 = vpop.f32.mrb[0].mxu0
    %1818 = vdwg.mxu0
    %v1819 = vmul.f32 %v1413, %v1661
    %v1820 = vmul.f32 %v1418, %v1666
    %v1821 = vmul.f32 %v1423, %v1671
    %v1822 = vmul.f32 %v1428, %v1676
    %v1823 = vmul.f32 %v1433, %v1681
    %v1824 = vmul.f32 %v1438, %v1686
    %v1825 = vmul.f32 %v1443, %v1691
    %v1826 = vmul.f32 %v1448, %v1696
    %v1827 = vmul.f32 %v1453, %v1701
    %v1828 = vmul.f32 %v1458, %v1706
    %v1829 = vmul.f32 %v1463, %v1711
    %v1830 = vmul.f32 %v1468, %v1716
    %v1831 = vmul.f32 %v1473, %v1721
    %v1832 = vmul.f32 %v1478, %v1726
    %v1833 = vmul.f32 %v1483, %v1731
    %v1834 = vmul.f32 %v1488, %v1736
    %v1835 = vmul.f32 %v1493, %v1741
    %v1836 = vmul.f32 %v1498, %v1746
    %v1837 = vmul.f32 %v1503, %v1751
    %v1838 = vmul.f32 %v1508, %v1756
    %v1839 = vmul.f32 %v1513, %v1761
    %v1840 = vmul.f32 %v1518, %v1766
    %v1841 = vmul.f32 %v1523, %v1771
    %v1842 = vmul.f32 %v1528, %v1776
    %v1843 = vmul.f32 %v1533, %v1781
    %v1844 = vmul.f32 %v1538, %v1786
    %v1845 = vmul.f32 %v1543, %v1791
    %v1846 = vmul.f32 %v1548, %v1796
    %v1847 = vmul.f32 %v1553, %v1801
    %v1848 = vmul.f32 %v1558, %v1806
    %v1849 = vmul.f32 %v1563, %v1811
    %v1850 = vmul.f32 %v1568, %v1816
    %v1851 = vadd.f32 %v1307, %v1819
    %v1852 = vadd.f32 %v1308, %v1820
    %v1853 = vadd.f32 %v1309, %v1821
    %v1854 = vadd.f32 %v1310, %v1822
    %v1855 = vadd.f32 %v1311, %v1823
    %v1856 = vadd.f32 %v1312, %v1824
    %v1857 = vadd.f32 %v1313, %v1825
    %v1858 = vadd.f32 %v1314, %v1826
    %v1859 = vadd.f32 %v1315, %v1827
    %v1860 = vadd.f32 %v1316, %v1828
    %v1861 = vadd.f32 %v1317, %v1829
    %v1862 = vadd.f32 %v1318, %v1830
    %v1863 = vadd.f32 %v1319, %v1831
    %v1864 = vadd.f32 %v1320, %v1832
    %v1865 = vadd.f32 %v1321, %v1833
    %v1866 = vadd.f32 %v1322, %v1834
    %v1867 = vadd.f32 %v1323, %v1835
    %v1868 = vadd.f32 %v1324, %v1836
    %v1869 = vadd.f32 %v1325, %v1837
    %v1870 = vadd.f32 %v1326, %v1838
    %v1871 = vadd.f32 %v1327, %v1839
    %v1872 = vadd.f32 %v1328, %v1840
    %v1873 = vadd.f32 %v1329, %v1841
    %v1874 = vadd.f32 %v1330, %v1842
    %v1875 = vadd.f32 %v1331, %v1843
    %v1876 = vadd.f32 %v1332, %v1844
    %v1877 = vadd.f32 %v1333, %v1845
    %v1878 = vadd.f32 %v1334, %v1846
    %v1879 = vadd.f32 %v1335, %v1847
    %v1880 = vadd.f32 %v1336, %v1848
    %v1881 = vadd.f32 %v1337, %v1849
    %v1882 = vadd.f32 %v1338, %v1850
    %v1883 = vld [vmem:[%s1 + $0xc] sm:$0xf]
    %v1884 = vld [vmem:[%s1 + $0x20] sm:$0xf]
    %v1885 = vld [vmem:[%s1 + $0x34] sm:$0xf]
    %v1886 = vld [vmem:[%s1 + $0x48] sm:$0xf]
    %v1887 = vld [vmem:[%s1 + $0x5c] sm:$0xf]
    %v1888 = vld [vmem:[%s1 + $0x70] sm:$0xf]
    %v1889 = vld [vmem:[%s1 + $0x84] sm:$0xf]
    %v1890 = vld [vmem:[%s1 + $0x98] sm:$0xf]
    %v1891 = vld [vmem:[%s2 + $0x3] sm:$0x1]
    %v1893 = vlaneseq
    %v1894 = vshrl.u32 %v1893, 7
    %v1895 = vsub.s32 0, %v1894
    %v1896 = vrot.slane %v1891, %v1895
    %v1906 = vunpack.c.l.b16 %v1883
    %v1907 = vunpack.c.l.b16 %v1884
    %v1908 = vunpack.c.l.b16 %v1885
    %v1909 = vunpack.c.l.b16 %v1886
    %v1910 = vunpack.c.l.b16 %v1887
    %v1911 = vunpack.c.l.b16 %v1888
    %v1912 = vunpack.c.l.b16 %v1889
    %v1913 = vunpack.c.l.b16 %v1890
    %v1914 = vpack.c.b16 %v1907, %v1906
    %v1915 = vpack.c.b16 %v1909, %v1908
    %v1916 = vpack.c.b16 %v1911, %v1910
    %v1917 = vpack.c.b16 %v1913, %v1912
    %1922 = vmatprep.subr.bf16.mxu0 0
    %1923 = vmatpush1.bf16.msra.mxu0 %v1914
    %1924 = vmatprep.subr.bf16.mxu0 0
    %1925 = vmatpush1.bf16.msra.mxu0 %v1915
    %1926 = vmatprep.subr.bf16.mxu0 0
    %1927 = vmatpush1.bf16.msra.mxu0 %v1916
    %1928 = vmatprep.subr.bf16.mxu0 0
    %1929 = vmatpush1.bf16.msra.mxu0 %v1917
    %1930 = vmatprep.subr.bf16.mxu0 0
    %1931 = vmatpush1.bf16.msra.mxu0 0
    %1932 = vmatprep.subr.bf16.mxu0 0
    %1933 = vmatpush1.bf16.msra.mxu0 0
    %1934 = vmatprep.subr.bf16.mxu0 0
    %1935 = vmatpush1.bf16.msra.mxu0 0
    %1936 = vmatprep.subr.bf16.mxu0 0
    %1937 = vmatpush1.bf16.msra.mxu0 0
    %1938 = vmatprep.subr.bf16.mxu0 0
    %1939 = vmatpush1.bf16.msra.mxu0 0
    %1940 = vmatprep.subr.bf16.mxu0 0
    %1941 = vmatpush1.bf16.msra.mxu0 0
    %1942 = vmatprep.subr.bf16.mxu0 0
    %1943 = vmatpush1.bf16.msra.mxu0 0
    %1944 = vmatprep.subr.bf16.mxu0 0
    %1945 = vmatpush1.bf16.msra.mxu0 0
    %1946 = vmatprep.subr.bf16.mxu0 0
    %1947 = vmatpush1.bf16.msra.mxu0 0
    %1948 = vmatprep.subr.bf16.mxu0 0
    %1949 = vmatpush1.bf16.msra.mxu0 0
    %1950 = vmatprep.subr.bf16.mxu0 0
    %1951 = vmatpush1.bf16.msra.mxu0 0
    %1952 = vmatprep.subr.bf16.mxu0 0
    %1953 = vmatpush1.bf16.msra.mxu0 0
    %1954 = vmatprep.mubr.f32.mxu0 0.0
    %1955 = vmatmul.mubr.f32.gmra.mrb[0].mxu0 %v130
    %v1956 = vpop.f32.mrb[0].mxu0
    %v1957 = vadd.f32 %v1896, %v1956
    %v1958 = vpop.f32.mrb[0].mxu0
    %1959 = vmatprep.mubr.f32.mxu0 0.0
    %1960 = vmatmul.mubr.f32.gmra.mrb[0].mxu0 %v133
    %v1961 = vpop.f32.mrb[0].mxu0
    %v1962 = vadd.f32 %v1896, %v1961
    %v1963 = vpop.f32.mrb[0].mxu0
    %1964 = vmatprep.mubr.f32.mxu0 0.0
    %1965 = vmatmul.mubr.f32.gmra.mrb[0].mxu0 %v136
    %v1966 = vpop.f32.mrb[0].mxu0
    %v1967 = vadd.f32 %v1896, %v1966
    %v1968 = vpop.f32.mrb[0].mxu0
    %1969 = vmatprep.mubr.f32.mxu0 0.0
    %1970 = vmatmul.mubr.f32.gmra.mrb[0].mxu0 %v139
    %v1971 = vpop.f32.mrb[0].mxu0
    %v1972 = vadd.f32 %v1896, %v1971
    %v1973 = vpop.f32.mrb[0].mxu0
    %1974 = vmatprep.mubr.f32.mxu0 0.0
    %1975 = vmatmul.mubr.f32.gmra.mrb[0].mxu0 %v142
    %v1976 = vpop.f32.mrb[0].mxu0
    %v1977 = vadd.f32 %v1896, %v1976
    %v1978 = vpop.f32.mrb[0].mxu0
    %1979 = vmatprep.mubr.f32.mxu0 0.0
    %1980 = vmatmul.mubr.f32.gmra.mrb[0].mxu0 %v145
    %v1981 = vpop.f32.mrb[0].mxu0
    %v1982 = vadd.f32 %v1896, %v1981
    %v1983 = vpop.f32.mrb[0].mxu0
    %1984 = vmatprep.mubr.f32.mxu0 0.0
    %1985 = vmatmul.mubr.f32.gmra.mrb[0].mxu0 %v148
    %v1986 = vpop.f32.mrb[0].mxu0
    %v1987 = vadd.f32 %v1896, %v1986
    %v1988 = vpop.f32.mrb[0].mxu0
    %1989 = vmatprep.mubr.f32.mxu0 0.0
    %1990 = vmatmul.mubr.f32.gmra.mrb[0].mxu0 %v151
    %v1991 = vpop.f32.mrb[0].mxu0
    %v1992 = vadd.f32 %v1896, %v1991
    %v1993 = vpop.f32.mrb[0].mxu0
    %1994 = vmatprep.mubr.f32.mxu0 0.0
    %1995 = vmatmul.mubr.f32.gmra.mrb[0].mxu0 %v154
    %v1996 = vpop.f32.mrb[0].mxu0
    %v1997 = vadd.f32 %v1896, %v1996
    %v1998 = vpop.f32.mrb[0].mxu0
    %1999 = vmatprep.mubr.f32.mxu0 0.0
    %2000 = vmatmul.mubr.f32.gmra.mrb[0].mxu0 %v157
    %v2001 = vpop.f32.mrb[0].mxu0
    %v2002 = vadd.f32 %v1896, %v2001
    %v2003 = vpop.f32.mrb[0].mxu0
    %2004 = vmatprep.mubr.f32.mxu0 0.0
    %2005 = vmatmul.mubr.f32.gmra.mrb[0].mxu0 %v160
    %v2006 = vpop.f32.mrb[0].mxu0
    %v2007 = vadd.f32 %v1896, %v2006
    %v2008 = vpop.f32.mrb[0].mxu0
    %2009 = vmatprep.mubr.f32.mxu0 0.0
    %2010 = vmatmul.mubr.f32.gmra.mrb[0].mxu0 %v163
    %v2011 = vpop.f32.mrb[0].mxu0
    %v2012 = vadd.f32 %v1896, %v2011
    %v2013 = vpop.f32.mrb[0].mxu0
    %2014 = vmatprep.mubr.f32.mxu0 0.0
    %2015 = vmatmul.mubr.f32.gmra.mrb[0].mxu0 %v166
    %v2016 = vpop.f32.mrb[0].mxu0
    %v2017 = vadd.f32 %v1896, %v2016
    %v2018 = vpop.f32.mrb[0].mxu0
    %2019 = vmatprep.mubr.f32.mxu0 0.0
    %2020 = vmatmul.mubr.f32.gmra.mrb[0].mxu0 %v169
    %v2021 = vpop.f32.mrb[0].mxu0
    %v2022 = vadd.f32 %v1896, %v2021
    %v2023 = vpop.f32.mrb[0].mxu0
    %2024 = vmatprep.mubr.f32.mxu0 0.0
    %2025 = vmatmul.mubr.f32.gmra.mrb[0].mxu0 %v172
    %v2026 = vpop.f32.mrb[0].mxu0
    %v2027 = vadd.f32 %v1896, %v2026
    %v2028 = vpop.f32.mrb[0].mxu0
    %2029 = vmatprep.mubr.f32.mxu0 0.0
    %2030 = vmatmul.mubr.f32.gmra.mrb[0].mxu0 %v175
    %v2031 = vpop.f32.mrb[0].mxu0
    %v2032 = vadd.f32 %v1896, %v2031
    %v2033 = vpop.f32.mrb[0].mxu0
    %2034 = vmatprep.mubr.f32.mxu0 0.0
    %2035 = vmatmul.mubr.f32.gmra.mrb[0].mxu0 %v178
    %v2036 = vpop.f32.mrb[0].mxu0
    %v2037 = vadd.f32 %v1896, %v2036
    %v2038 = vpop.f32.mrb[0].mxu0
    %2039 = vmatprep.mubr.f32.mxu0 0.0
    %2040 = vmatmul.mubr.f32.gmra.mrb[0].mxu0 %v181
    %v2041 = vpop.f32.mrb[0].mxu0
    %v2042 = vadd.f32 %v1896, %v2041
    %v2043 = vpop.f32.mrb[0].mxu0
    %2044 = vmatprep.mubr.f32.mxu0 0.0
    %2045 = vmatmul.mubr.f32.gmra.mrb[0].mxu0 %v184
    %v2046 = vpop.f32.mrb[0].mxu0
    %v2047 = vadd.f32 %v1896, %v2046
    %v2048 = vpop.f32.mrb[0].mxu0
    %2049 = vmatprep.mubr.f32.mxu0 0.0
    %2050 = vmatmul.mubr.f32.gmra.mrb[0].mxu0 %v187
    %v2051 = vpop.f32.mrb[0].mxu0
    %v2052 = vadd.f32 %v1896, %v2051
    %v2053 = vpop.f32.mrb[0].mxu0
    %2054 = vmatprep.mubr.f32.mxu0 0.0
    %2055 = vmatmul.mubr.f32.gmra.mrb[0].mxu0 %v190
    %v2056 = vpop.f32.mrb[0].mxu0
    %v2057 = vadd.f32 %v1896, %v2056
    %v2058 = vpop.f32.mrb[0].mxu0
    %2059 = vmatprep.mubr.f32.mxu0 0.0
    %2060 = vmatmul.mubr.f32.gmra.mrb[0].mxu0 %v193
    %v2061 = vpop.f32.mrb[0].mxu0
    %v2062 = vadd.f32 %v1896, %v2061
    %v2063 = vpop.f32.mrb[0].mxu0
    %2064 = vmatprep.mubr.f32.mxu0 0.0
    %2065 = vmatmul.mubr.f32.gmra.mrb[0].mxu0 %v196
    %v2066 = vpop.f32.mrb[0].mxu0
    %v2067 = vadd.f32 %v1896, %v2066
    %v2068 = vpop.f32.mrb[0].mxu0
    %2069 = vmatprep.mubr.f32.mxu0 0.0
    %2070 = vmatmul.mubr.f32.gmra.mrb[0].mxu0 %v199
    %v2071 = vpop.f32.mrb[0].mxu0
    %v2072 = vadd.f32 %v1896, %v2071
    %v2073 = vpop.f32.mrb[0].mxu0
    %2074 = vmatprep.mubr.f32.mxu0 0.0
    %2075 = vmatmul.mubr.f32.gmra.mrb[0].mxu0 %v202
    %v2076 = vpop.f32.mrb[0].mxu0
    %v2077 = vadd.f32 %v1896, %v2076
    %v2078 = vpop.f32.mrb[0].mxu0
    %2079 = vmatprep.mubr.f32.mxu0 0.0
    %2080 = vmatmul.mubr.f32.gmra.mrb[0].mxu0 %v205
    %v2081 = vpop.f32.mrb[0].mxu0
    %v2082 = vadd.f32 %v1896, %v2081
    %v2083 = vpop.f32.mrb[0].mxu0
    %2084 = vmatprep.mubr.f32.mxu0 0.0
    %2085 = vmatmul.mubr.f32.gmra.mrb[0].mxu0 %v208
    %v2086 = vpop.f32.mrb[0].mxu0
    %v2087 = vadd.f32 %v1896, %v2086
    %v2088 = vpop.f32.mrb[0].mxu0
    %2089 = vmatprep.mubr.f32.mxu0 0.0
    %2090 = vmatmul.mubr.f32.gmra.mrb[0].mxu0 %v211
    %v2091 = vpop.f32.mrb[0].mxu0
    %v2092 = vadd.f32 %v1896, %v2091
    %v2093 = vpop.f32.mrb[0].mxu0
    %2094 = vmatprep.mubr.f32.mxu0 0.0
    %2095 = vmatmul.mubr.f32.gmra.mrb[0].mxu0 %v214
    %v2096 = vpop.f32.mrb[0].mxu0
    %v2097 = vadd.f32 %v1896, %v2096
    %v2098 = vpop.f32.mrb[0].mxu0
    %2099 = vmatprep.mubr.f32.mxu0 0.0
    %2100 = vmatmul.mubr.f32.gmra.mrb[0].mxu0 %v217
    %v2101 = vpop.f32.mrb[0].mxu0
    %v2102 = vadd.f32 %v1896, %v2101
    %v2103 = vpop.f32.mrb[0].mxu0
    %2104 = vmatprep.mubr.f32.mxu0 0.0
    %2105 = vmatmul.mubr.f32.gmra.mrb[0].mxu0 %v220
    %v2106 = vpop.f32.mrb[0].mxu0
    %v2107 = vadd.f32 %v1896, %v2106
    %v2108 = vpop.f32.mrb[0].mxu0
    %2109 = vmatprep.mubr.f32.mxu0 0.0
    %2110 = vmatmul.mubr.f32.gmra.mrb[0].mxu0 %v223
    %v2111 = vpop.f32.mrb[0].mxu0
    %v2112 = vadd.f32 %v1896, %v2111
    %v2113 = vpop.f32.mrb[0].mxu0
    %2114 = vdwg.mxu0
    %v2115 = vld [vmem:[%s4 + $0xc] sm:$0xf]
    %v2116 = vld [vmem:[%s4 + $0x20] sm:$0xf]
    %v2117 = vld [vmem:[%s4 + $0x34] sm:$0xf]
    %v2118 = vld [vmem:[%s4 + $0x48] sm:$0xf]
    %v2119 = vld [vmem:[%s4 + $0x5c] sm:$0xf]
    %v2120 = vld [vmem:[%s4 + $0x70] sm:$0xf]
    %v2121 = vld [vmem:[%s4 + $0x84] sm:$0xf]
    %v2122 = vld [vmem:[%s4 + $0x98] sm:$0xf]
    %v2123 = vld [vmem:[%s4 + $0xac] sm:$0xf]
    %v2124 = vld [vmem:[%s4 + $0xc0] sm:$0xf]
    %v2125 = vld [vmem:[%s4 + $0xd4] sm:$0xf]
    %v2126 = vld [vmem:[%s4 + $0xe8] sm:$0xf]
    %v2127 = vld [vmem:[%s5 + $0x3] sm:$0x1]
    %v2129 = vlaneseq
    %v2130 = vshrl.u32 %v2129, 7
    %v2131 = vsub.s32 0, %v2130
    %v2132 = vrot.slane %v2127, %v2131
    %v2146 = vunpack.c.l.b16 %v2115
    %v2147 = vunpack.c.l.b16 %v2116
    %v2148 = vunpack.c.l.b16 %v2117
    %v2149 = vunpack.c.l.b16 %v2118
    %v2150 = vunpack.c.l.b16 %v2119
    %v2151 = vunpack.c.l.b16 %v2120
    %v2152 = vunpack.c.l.b16 %v2121
    %v2153 = vunpack.c.l.b16 %v2122
    %v2154 = vunpack.c.l.b16 %v2123
    %v2155 = vunpack.c.l.b16 %v2124
    %v2156 = vunpack.c.l.b16 %v2125
    %v2157 = vunpack.c.l.b16 %v2126
    %v2158 = vpack.c.b16 %v2147, %v2146
    %v2159 = vpack.c.b16 %v2149, %v2148
    %v2160 = vpack.c.b16 %v2151, %v2150
    %v2161 = vpack.c.b16 %v2153, %v2152
    %v2162 = vpack.c.b16 %v2155, %v2154
    %v2163 = vpack.c.b16 %v2157, %v2156
    %2170 = vmatprep.subr.bf16.mxu0 0
    %2171 = vmatpush1.bf16.msra.mxu0 %v2158
    %2172 = vmatprep.subr.bf16.mxu0 0
    %2173 = vmatpush1.bf16.msra.mxu0 %v2159
    %2174 = vmatprep.subr.bf16.mxu0 0
    %2175 = vmatpush1.bf16.msra.mxu0 %v2160
    %2176 = vmatprep.subr.bf16.mxu0 0
    %2177 = vmatpush1.bf16.msra.mxu0 %v2161
    %2178 = vmatprep.subr.bf16.mxu0 0
    %2179 = vmatpush1.bf16.msra.mxu0 %v2162
    %2180 = vmatprep.subr.bf16.mxu0 0
    %2181 = vmatpush1.bf16.msra.mxu0 %v2163
    %2182 = vmatprep.subr.bf16.mxu0 0
    %2183 = vmatpush1.bf16.msra.mxu0 0
    %2184 = vmatprep.subr.bf16.mxu0 0
    %2185 = vmatpush1.bf16.msra.mxu0 0
    %2186 = vmatprep.subr.bf16.mxu0 0
    %2187 = vmatpush1.bf16.msra.mxu0 0
    %2188 = vmatprep.subr.bf16.mxu0 0
    %2189 = vmatpush1.bf16.msra.mxu0 0
    %2190 = vmatprep.subr.bf16.mxu0 0
    %2191 = vmatpush1.bf16.msra.mxu0 0
    %2192 = vmatprep.subr.bf16.mxu0 0
    %2193 = vmatpush1.bf16.msra.mxu0 0
    %2194 = vmatprep.subr.bf16.mxu0 0
    %2195 = vmatpush1.bf16.msra.mxu0 0
    %2196 = vmatprep.subr.bf16.mxu0 0
    %2197 = vmatpush1.bf16.msra.mxu0 0
    %2198 = vmatprep.subr.bf16.mxu0 0
    %2199 = vmatpush1.bf16.msra.mxu0 0
    %2200 = vmatprep.subr.bf16.mxu0 0
    %2201 = vmatpush1.bf16.msra.mxu0 0
    %2202 = vmatprep.mubr.f32.mxu0 0.0
    %2203 = vmatmul.mubr.f32.gmra.mrb[0].mxu0 %v475
    %v2204 = vpop.f32.mrb[0].mxu0
    %v2205 = vadd.f32 %v2132, %v2204
    %v2206 = vpop.f32.mrb[0].mxu0
    %2207 = vmatprep.mubr.f32.mxu0 0.0
    %2208 = vmatmul.mubr.f32.gmra.mrb[0].mxu0 %v478
    %v2209 = vpop.f32.mrb[0].mxu0
    %v2210 = vadd.f32 %v2132, %v2209
    %v2211 = vpop.f32.mrb[0].mxu0
    %2212 = vmatprep.mubr.f32.mxu0 0.0
    %2213 = vmatmul.mubr.f32.gmra.mrb[0].mxu0 %v481
    %v2214 = vpop.f32.mrb[0].mxu0
    %v2215 = vadd.f32 %v2132, %v2214
    %v2216 = vpop.f32.mrb[0].mxu0
    %2217 = vmatprep.mubr.f32.mxu0 0.0
    %2218 = vmatmul.mubr.f32.gmra.mrb[0].mxu0 %v484
    %v2219 = vpop.f32.mrb[0].mxu0
    %v2220 = vadd.f32 %v2132, %v2219
    %v2221 = vpop.f32.mrb[0].mxu0
    %2222 = vmatprep.mubr.f32.mxu0 0.0
    %2223 = vmatmul.mubr.f32.gmra.mrb[0].mxu0 %v487
    %v2224 = vpop.f32.mrb[0].mxu0
    %v2225 = vadd.f32 %v2132, %v2224
    %v2226 = vpop.f32.mrb[0].mxu0
    %2227 = vmatprep.mubr.f32.mxu0 0.0
    %2228 = vmatmul.mubr.f32.gmra.mrb[0].mxu0 %v490
    %v2229 = vpop.f32.mrb[0].mxu0
    %v2230 = vadd.f32 %v2132, %v2229
    %v2231 = vpop.f32.mrb[0].mxu0
    %2232 = vmatprep.mubr.f32.mxu0 0.0
    %2233 = vmatmul.mubr.f32.gmra.mrb[0].mxu0 %v493
    %v2234 = vpop.f32.mrb[0].mxu0
    %v2235 = vadd.f32 %v2132, %v2234
    %v2236 = vpop.f32.mrb[0].mxu0
    %2237 = vmatprep.mubr.f32.mxu0 0.0
    %2238 = vmatmul.mubr.f32.gmra.mrb[0].mxu0 %v496
    %v2239 = vpop.f32.mrb[0].mxu0
    %v2240 = vadd.f32 %v2132, %v2239
    %v2241 = vpop.f32.mrb[0].mxu0
    %2242 = vmatprep.mubr.f32.mxu0 0.0
    %2243 = vmatmul.mubr.f32.gmra.mrb[0].mxu0 %v499
    %v2244 = vpop.f32.mrb[0].mxu0
    %v2245 = vadd.f32 %v2132, %v2244
    %v2246 = vpop.f32.mrb[0].mxu0
    %2247 = vmatprep.mubr.f32.mxu0 0.0
    %2248 = vmatmul.mubr.f32.gmra.mrb[0].mxu0 %v502
    %v2249 = vpop.f32.mrb[0].mxu0
    %v2250 = vadd.f32 %v2132, %v2249
    %v2251 = vpop.f32.mrb[0].mxu0
    %2252 = vmatprep.mubr.f32.mxu0 0.0
    %2253 = vmatmul.mubr.f32.gmra.mrb[0].mxu0 %v505
    %v2254 = vpop.f32.mrb[0].mxu0
    %v2255 = vadd.f32 %v2132, %v2254
    %v2256 = vpop.f32.mrb[0].mxu0
    %2257 = vmatprep.mubr.f32.mxu0 0.0
    %2258 = vmatmul.mubr.f32.gmra.mrb[0].mxu0 %v508
    %v2259 = vpop.f32.mrb[0].mxu0
    %v2260 = vadd.f32 %v2132, %v2259
    %v2261 = vpop.f32.mrb[0].mxu0
    %2262 = vmatprep.mubr.f32.mxu0 0.0
    %2263 = vmatmul.mubr.f32.gmra.mrb[0].mxu0 %v511
    %v2264 = vpop.f32.mrb[0].mxu0
    %v2265 = vadd.f32 %v2132, %v2264
    %v2266 = vpop.f32.mrb[0].mxu0
    %2267 = vmatprep.mubr.f32.mxu0 0.0
    %2268 = vmatmul.mubr.f32.gmra.mrb[0].mxu0 %v514
    %v2269 = vpop.f32.mrb[0].mxu0
    %v2270 = vadd.f32 %v2132, %v2269
    %v2271 = vpop.f32.mrb[0].mxu0
    %2272 = vmatprep.mubr.f32.mxu0 0.0
    %2273 = vmatmul.mubr.f32.gmra.mrb[0].mxu0 %v517
    %v2274 = vpop.f32.mrb[0].mxu0
    %v2275 = vadd.f32 %v2132, %v2274
    %v2276 = vpop.f32.mrb[0].mxu0
    %2277 = vmatprep.mubr.f32.mxu0 0.0
    %2278 = vmatmul.mubr.f32.gmra.mrb[0].mxu0 %v520
    %v2279 = vpop.f32.mrb[0].mxu0
    %v2280 = vadd.f32 %v2132, %v2279
    %v2281 = vpop.f32.mrb[0].mxu0
    %2282 = vmatprep.mubr.f32.mxu0 0.0
    %2283 = vmatmul.mubr.f32.gmra.mrb[0].mxu0 %v523
    %v2284 = vpop.f32.mrb[0].mxu0
    %v2285 = vadd.f32 %v2132, %v2284
    %v2286 = vpop.f32.mrb[0].mxu0
    %2287 = vmatprep.mubr.f32.mxu0 0.0
    %2288 = vmatmul.mubr.f32.gmra.mrb[0].mxu0 %v526
    %v2289 = vpop.f32.mrb[0].mxu0
    %v2290 = vadd.f32 %v2132, %v2289
    %v2291 = vpop.f32.mrb[0].mxu0
    %2292 = vmatprep.mubr.f32.mxu0 0.0
    %2293 = vmatmul.mubr.f32.gmra.mrb[0].mxu0 %v529
    %v2294 = vpop.f32.mrb[0].mxu0
    %v2295 = vadd.f32 %v2132, %v2294
    %v2296 = vpop.f32.mrb[0].mxu0
    %2297 = vmatprep.mubr.f32.mxu0 0.0
    %2298 = vmatmul.mubr.f32.gmra.mrb[0].mxu0 %v532
    %v2299 = vpop.f32.mrb[0].mxu0
    %v2300 = vadd.f32 %v2132, %v2299
    %v2301 = vpop.f32.mrb[0].mxu0
    %2302 = vmatprep.mubr.f32.mxu0 0.0
    %2303 = vmatmul.mubr.f32.gmra.mrb[0].mxu0 %v535
    %v2304 = vpop.f32.mrb[0].mxu0
    %v2305 = vadd.f32 %v2132, %v2304
    %v2306 = vpop.f32.mrb[0].mxu0
    %2307 = vmatprep.mubr.f32.mxu0 0.0
    %2308 = vmatmul.mubr.f32.gmra.mrb[0].mxu0 %v538
    %v2309 = vpop.f32.mrb[0].mxu0
    %v2310 = vadd.f32 %v2132, %v2309
    %v2311 = vpop.f32.mrb[0].mxu0
    %2312 = vmatprep.mubr.f32.mxu0 0.0
    %2313 = vmatmul.mubr.f32.gmra.mrb[0].mxu0 %v541
    %v2314 = vpop.f32.mrb[0].mxu0
    %v2315 = vadd.f32 %v2132, %v2314
    %v2316 = vpop.f32.mrb[0].mxu0
    %2317 = vmatprep.mubr.f32.mxu0 0.0
    %2318 = vmatmul.mubr.f32.gmra.mrb[0].mxu0 %v544
    %v2319 = vpop.f32.mrb[0].mxu0
    %v2320 = vadd.f32 %v2132, %v2319
    %v2321 = vpop.f32.mrb[0].mxu0
    %2322 = vmatprep.mubr.f32.mxu0 0.0
    %2323 = vmatmul.mubr.f32.gmra.mrb[0].mxu0 %v547
    %v2324 = vpop.f32.mrb[0].mxu0
    %v2325 = vadd.f32 %v2132, %v2324
    %v2326 = vpop.f32.mrb[0].mxu0
    %2327 = vmatprep.mubr.f32.mxu0 0.0
    %2328 = vmatmul.mubr.f32.gmra.mrb[0].mxu0 %v550
    %v2329 = vpop.f32.mrb[0].mxu0
    %v2330 = vadd.f32 %v2132, %v2329
    %v2331 = vpop.f32.mrb[0].mxu0
    %2332 = vmatprep.mubr.f32.mxu0 0.0
    %2333 = vmatmul.mubr.f32.gmra.mrb[0].mxu0 %v553
    %v2334 = vpop.f32.mrb[0].mxu0
    %v2335 = vadd.f32 %v2132, %v2334
    %v2336 = vpop.f32.mrb[0].mxu0
    %2337 = vmatprep.mubr.f32.mxu0 0.0
    %2338 = vmatmul.mubr.f32.gmra.mrb[0].mxu0 %v556
    %v2339 = vpop.f32.mrb[0].mxu0
    %v2340 = vadd.f32 %v2132, %v2339
    %v2341 = vpop.f32.mrb[0].mxu0
    %2342 = vmatprep.mubr.f32.mxu0 0.0
    %2343 = vmatmul.mubr.f32.gmra.mrb[0].mxu0 %v559
    %v2344 = vpop.f32.mrb[0].mxu0
    %v2345 = vadd.f32 %v2132, %v2344
    %v2346 = vpop.f32.mrb[0].mxu0
    %2347 = vmatprep.mubr.f32.mxu0 0.0
    %2348 = vmatmul.mubr.f32.gmra.mrb[0].mxu0 %v562
    %v2349 = vpop.f32.mrb[0].mxu0
    %v2350 = vadd.f32 %v2132, %v2349
    %v2351 = vpop.f32.mrb[0].mxu0
    %2352 = vmatprep.mubr.f32.mxu0 0.0
    %2353 = vmatmul.mubr.f32.gmra.mrb[0].mxu0 %v565
    %v2354 = vpop.f32.mrb[0].mxu0
    %v2355 = vadd.f32 %v2132, %v2354
    %v2356 = vpop.f32.mrb[0].mxu0
    %2357 = vmatprep.mubr.f32.mxu0 0.0
    %2358 = vmatmul.mubr.f32.gmra.mrb[0].mxu0 %v568
    %v2359 = vpop.f32.mrb[0].mxu0
    %v2360 = vadd.f32 %v2132, %v2359
    %v2361 = vpop.f32.mrb[0].mxu0
    %2362 = vdwg.mxu0
    %v2363 = vmul.f32 %v1957, %v2205
    %v2364 = vmul.f32 %v1962, %v2210
    %v2365 = vmul.f32 %v1967, %v2215
    %v2366 = vmul.f32 %v1972, %v2220
    %v2367 = vmul.f32 %v1977, %v2225
    %v2368 = vmul.f32 %v1982, %v2230
    %v2369 = vmul.f32 %v1987, %v2235
    %v2370 = vmul.f32 %v1992, %v2240
    %v2371 = vmul.f32 %v1997, %v2245
    %v2372 = vmul.f32 %v2002, %v2250
    %v2373 = vmul.f32 %v2007, %v2255
    %v2374 = vmul.f32 %v2012, %v2260
    %v2375 = vmul.f32 %v2017, %v2265
    %v2376 = vmul.f32 %v2022, %v2270
    %v2377 = vmul.f32 %v2027, %v2275
    %v2378 = vmul.f32 %v2032, %v2280
    %v2379 = vmul.f32 %v2037, %v2285
    %v2380 = vmul.f32 %v2042, %v2290
    %v2381 = vmul.f32 %v2047, %v2295
    %v2382 = vmul.f32 %v2052, %v2300
    %v2383 = vmul.f32 %v2057, %v2305
    %v2384 = vmul.f32 %v2062, %v2310
    %v2385 = vmul.f32 %v2067, %v2315
    %v2386 = vmul.f32 %v2072, %v2320
    %v2387 = vmul.f32 %v2077, %v2325
    %v2388 = vmul.f32 %v2082, %v2330
    %v2389 = vmul.f32 %v2087, %v2335
    %v2390 = vmul.f32 %v2092, %v2340
    %v2391 = vmul.f32 %v2097, %v2345
    %v2392 = vmul.f32 %v2102, %v2350
    %v2393 = vmul.f32 %v2107, %v2355
    %v2394 = vmul.f32 %v2112, %v2360
    %v2395 = vadd.f32 %v1851, %v2363
    %v2396 = vadd.f32 %v1852, %v2364
    %v2397 = vadd.f32 %v1853, %v2365
    %v2398 = vadd.f32 %v1854, %v2366
    %v2399 = vadd.f32 %v1855, %v2367
    %v2400 = vadd.f32 %v1856, %v2368
    %v2401 = vadd.f32 %v1857, %v2369
    %v2402 = vadd.f32 %v1858, %v2370
    %v2403 = vadd.f32 %v1859, %v2371
    %v2404 = vadd.f32 %v1860, %v2372
    %v2405 = vadd.f32 %v1861, %v2373
    %v2406 = vadd.f32 %v1862, %v2374
    %v2407 = vadd.f32 %v1863, %v2375
    %v2408 = vadd.f32 %v1864, %v2376
    %v2409 = vadd.f32 %v1865, %v2377
    %v2410 = vadd.f32 %v1866, %v2378
    %v2411 = vadd.f32 %v1867, %v2379
    %v2412 = vadd.f32 %v1868, %v2380
    %v2413 = vadd.f32 %v1869, %v2381
    %v2414 = vadd.f32 %v1870, %v2382
    %v2415 = vadd.f32 %v1871, %v2383
    %v2416 = vadd.f32 %v1872, %v2384
    %v2417 = vadd.f32 %v1873, %v2385
    %v2418 = vadd.f32 %v1874, %v2386
    %v2419 = vadd.f32 %v1875, %v2387
    %v2420 = vadd.f32 %v1876, %v2388
    %v2421 = vadd.f32 %v1877, %v2389
    %v2422 = vadd.f32 %v1878, %v2390
    %v2423 = vadd.f32 %v1879, %v2391
    %v2424 = vadd.f32 %v1880, %v2392
    %v2425 = vadd.f32 %v1881, %v2393
    %v2426 = vadd.f32 %v1882, %v2394
    %v2427 = vld [vmem:[%s1 + $0x10] sm:$0xf]
    %v2428 = vld [vmem:[%s1 + $0x24] sm:$0xf]
    %v2429 = vld [vmem:[%s1 + $0x38] sm:$0xf]
    %v2430 = vld [vmem:[%s1 + $0x4c] sm:$0xf]
    %v2431 = vld [vmem:[%s1 + $0x60] sm:$0xf]
    %v2432 = vld [vmem:[%s1 + $0x74] sm:$0xf]
    %v2433 = vld [vmem:[%s1 + $0x88] sm:$0xf]
    %v2434 = vld [vmem:[%s1 + $0x9c] sm:$0xf]
    %v2435 = vld [vmem:[%s2 + $0x4] sm:$0x1]
    %v2437 = vlaneseq
    %v2438 = vshrl.u32 %v2437, 7
    %v2439 = vsub.s32 0, %v2438
    %v2440 = vrot.slane %v2435, %v2439
    %v2450 = vunpack.c.l.b16 %v2427
    %v2451 = vunpack.c.l.b16 %v2428
    %v2452 = vunpack.c.l.b16 %v2429
    %v2453 = vunpack.c.l.b16 %v2430
    %v2454 = vunpack.c.l.b16 %v2431
    %v2455 = vunpack.c.l.b16 %v2432
    %v2456 = vunpack.c.l.b16 %v2433
    %v2457 = vunpack.c.l.b16 %v2434
    %v2458 = vpack.c.b16 %v2451, %v2450
    %v2459 = vpack.c.b16 %v2453, %v2452
    %v2460 = vpack.c.b16 %v2455, %v2454
    %v2461 = vpack.c.b16 %v2457, %v2456
    %2466 = vmatprep.subr.bf16.mxu0 0
    %2467 = vmatpush1.bf16.msra.mxu0 %v2458
    %2468 = vmatprep.subr.bf16.mxu0 0
    %2469 = vmatpush1.bf16.msra.mxu0 %v2459
    %2470 = vmatprep.subr.bf16.mxu0 0
    %2471 = vmatpush1.bf16.msra.mxu0 %v2460
    %2472 = vmatprep.subr.bf16.mxu0 0
    %2473 = vmatpush1.bf16.msra.mxu0 %v2461
    %2474 = vmatprep.subr.bf16.mxu0 0
    %2475 = vmatpush1.bf16.msra.mxu0 0
    %2476 = vmatprep.subr.bf16.mxu0 0
    %2477 = vmatpush1.bf16.msra.mxu0 0
    %2478 = vmatprep.subr.bf16.mxu0 0
    %2479 = vmatpush1.bf16.msra.mxu0 0
    %2480 = vmatprep.subr.bf16.mxu0 0
    %2481 = vmatpush1.bf16.msra.mxu0 0
    %2482 = vmatprep.subr.bf16.mxu0 0
    %2483 = vmatpush1.bf16.msra.mxu0 0
    %2484 = vmatprep.subr.bf16.mxu0 0
    %2485 = vmatpush1.bf16.msra.mxu0 0
    %2486 = vmatprep.subr.bf16.mxu0 0
    %2487 = vmatpush1.bf16.msra.mxu0 0
    %2488 = vmatprep.subr.bf16.mxu0 0
    %2489 = vmatpush1.bf16.msra.mxu0 0
    %2490 = vmatprep.subr.bf16.mxu0 0
    %2491 = vmatpush1.bf16.msra.mxu0 0
    %2492 = vmatprep.subr.bf16.mxu0 0
    %2493 = vmatpush1.bf16.msra.mxu0 0
    %2494 = vmatprep.subr.bf16.mxu0 0
    %2495 = vmatpush1.bf16.msra.mxu0 0
    %2496 = vmatprep.subr.bf16.mxu0 0
    %2497 = vmatpush1.bf16.msra.mxu0 0
    %2498 = vmatprep.mubr.f32.mxu0 0.0
    %2499 = vmatmul.mubr.f32.gmra.mrb[0].mxu0 %v130
    %v2500 = vpop.f32.mrb[0].mxu0
    %v2501 = vadd.f32 %v2440, %v2500
    %v2502 = vpop.f32.mrb[0].mxu0
    %2503 = vmatprep.mubr.f32.mxu0 0.0
    %2504 = vmatmul.mubr.f32.gmra.mrb[0].mxu0 %v133
    %v2505 = vpop.f32.mrb[0].mxu0
    %v2506 = vadd.f32 %v2440, %v2505
    %v2507 = vpop.f32.mrb[0].mxu0
    %2508 = vmatprep.mubr.f32.mxu0 0.0
    %2509 = vmatmul.mubr.f32.gmra.mrb[0].mxu0 %v136
    %v2510 = vpop.f32.mrb[0].mxu0
    %v2511 = vadd.f32 %v2440, %v2510
    %v2512 = vpop.f32.mrb[0].mxu0
    %2513 = vmatprep.mubr.f32.mxu0 0.0
    %2514 = vmatmul.mubr.f32.gmra.mrb[0].mxu0 %v139
    %v2515 = vpop.f32.mrb[0].mxu0
    %v2516 = vadd.f32 %v2440, %v2515
    %v2517 = vpop.f32.mrb[0].mxu0
    %2518 = vmatprep.mubr.f32.mxu0 0.0
    %2519 = vmatmul.mubr.f32.gmra.mrb[0].mxu0 %v142
    %v2520 = vpop.f32.mrb[0].mxu0
    %v2521 = vadd.f32 %v2440, %v2520
    %v2522 = vpop.f32.mrb[0].mxu0
    %2523 = vmatprep.mubr.f32.mxu0 0.0
    %2524 = vmatmul.mubr.f32.gmra.mrb[0].mxu0 %v145
    %v2525 = vpop.f32.mrb[0].mxu0
    %v2526 = vadd.f32 %v2440, %v2525
    %v2527 = vpop.f32.mrb[0].mxu0
    %2528 = vmatprep.mubr.f32.mxu0 0.0
    %2529 = vmatmul.mubr.f32.gmra.mrb[0].mxu0 %v148
    %v2530 = vpop.f32.mrb[0].mxu0
    %v2531 = vadd.f32 %v2440, %v2530
    %v2532 = vpop.f32.mrb[0].mxu0
    %2533 = vmatprep.mubr.f32.mxu0 0.0
    %2534 = vmatmul.mubr.f32.gmra.mrb[0].mxu0 %v151
    %v2535 = vpop.f32.mrb[0].mxu0
    %v2536 = vadd.f32 %v2440, %v2535
    %v2537 = vpop.f32.mrb[0].mxu0
    %2538 = vmatprep.mubr.f32.mxu0 0.0
    %2539 = vmatmul.mubr.f32.gmra.mrb[0].mxu0 %v154
    %v2540 = vpop.f32.mrb[0].mxu0
    %v2541 = vadd.f32 %v2440, %v2540
    %v2542 = vpop.f32.mrb[0].mxu0
    %2543 = vmatprep.mubr.f32.mxu0 0.0
    %2544 = vmatmul.mubr.f32.gmra.mrb[0].mxu0 %v157
    %v2545 = vpop.f32.mrb[0].mxu0
    %v2546 = vadd.f32 %v2440, %v2545
    %v2547 = vpop.f32.mrb[0].mxu0
    %2548 = vmatprep.mubr.f32.mxu0 0.0
    %2549 = vmatmul.mubr.f32.gmra.mrb[0].mxu0 %v160
    %v2550 = vpop.f32.mrb[0].mxu0
    %v2551 = vadd.f32 %v2440, %v2550
    %v2552 = vpop.f32.mrb[0].mxu0
    %2553 = vmatprep.mubr.f32.mxu0 0.0
    %2554 = vmatmul.mubr.f32.gmra.mrb[0].mxu0 %v163
    %v2555 = vpop.f32.mrb[0].mxu0
    %v2556 = vadd.f32 %v2440, %v2555
    %v2557 = vpop.f32.mrb[0].mxu0
    %2558 = vmatprep.mubr.f32.mxu0 0.0
    %2559 = vmatmul.mubr.f32.gmra.mrb[0].mxu0 %v166
    %v2560 = vpop.f32.mrb[0].mxu0
    %v2561 = vadd.f32 %v2440, %v2560
    %v2562 = vpop.f32.mrb[0].mxu0
    %2563 = vmatprep.mubr.f32.mxu0 0.0
    %2564 = vmatmul.mubr.f32.gmra.mrb[0].mxu0 %v169
    %v2565 = vpop.f32.mrb[0].mxu0
    %v2566 = vadd.f32 %v2440, %v2565
    %v2567 = vpop.f32.mrb[0].mxu0
    %2568 = vmatprep.mubr.f32.mxu0 0.0
    %2569 = vmatmul.mubr.f32.gmra.mrb[0].mxu0 %v172
    %v2570 = vpop.f32.mrb[0].mxu0
    %v2571 = vadd.f32 %v2440, %v2570
    %v2572 = vpop.f32.mrb[0].mxu0
    %2573 = vmatprep.mubr.f32.mxu0 0.0
    %2574 = vmatmul.mubr.f32.gmra.mrb[0].mxu0 %v175
    %v2575 = vpop.f32.mrb[0].mxu0
    %v2576 = vadd.f32 %v2440, %v2575
    %v2577 = vpop.f32.mrb[0].mxu0
    %2578 = vmatprep.mubr.f32.mxu0 0.0
    %2579 = vmatmul.mubr.f32.gmra.mrb[0].mxu0 %v178
    %v2580 = vpop.f32.mrb[0].mxu0
    %v2581 = vadd.f32 %v2440, %v2580
    %v2582 = vpop.f32.mrb[0].mxu0
    %2583 = vmatprep.mubr.f32.mxu0 0.0
    %2584 = vmatmul.mubr.f32.gmra.mrb[0].mxu0 %v181
    %v2585 = vpop.f32.mrb[0].mxu0
    %v2586 = vadd.f32 %v2440, %v2585
    %v2587 = vpop.f32.mrb[0].mxu0
    %2588 = vmatprep.mubr.f32.mxu0 0.0
    %2589 = vmatmul.mubr.f32.gmra.mrb[0].mxu0 %v184
    %v2590 = vpop.f32.mrb[0].mxu0
    %v2591 = vadd.f32 %v2440, %v2590
    %v2592 = vpop.f32.mrb[0].mxu0
    %2593 = vmatprep.mubr.f32.mxu0 0.0
    %2594 = vmatmul.mubr.f32.gmra.mrb[0].mxu0 %v187
    %v2595 = vpop.f32.mrb[0].mxu0
    %v2596 = vadd.f32 %v2440, %v2595
    %v2597 = vpop.f32.mrb[0].mxu0
    %2598 = vmatprep.mubr.f32.mxu0 0.0
    %2599 = vmatmul.mubr.f32.gmra.mrb[0].mxu0 %v190
    %v2600 = vpop.f32.mrb[0].mxu0
    %v2601 = vadd.f32 %v2440, %v2600
    %v2602 = vpop.f32.mrb[0].mxu0
    %2603 = vmatprep.mubr.f32.mxu0 0.0
    %2604 = vmatmul.mubr.f32.gmra.mrb[0].mxu0 %v193
    %v2605 = vpop.f32.mrb[0].mxu0
    %v2606 = vadd.f32 %v2440, %v2605
    %v2607 = vpop.f32.mrb[0].mxu0
    %2608 = vmatprep.mubr.f32.mxu0 0.0
    %2609 = vmatmul.mubr.f32.gmra.mrb[0].mxu0 %v196
    %v2610 = vpop.f32.mrb[0].mxu0
    %v2611 = vadd.f32 %v2440, %v2610
    %v2612 = vpop.f32.mrb[0].mxu0
    %2613 = vmatprep.mubr.f32.mxu0 0.0
    %2614 = vmatmul.mubr.f32.gmra.mrb[0].mxu0 %v199
    %v2615 = vpop.f32.mrb[0].mxu0
    %v2616 = vadd.f32 %v2440, %v2615
    %v2617 = vpop.f32.mrb[0].mxu0
    %2618 = vmatprep.mubr.f32.mxu0 0.0
    %2619 = vmatmul.mubr.f32.gmra.mrb[0].mxu0 %v202
    %v2620 = vpop.f32.mrb[0].mxu0
    %v2621 = vadd.f32 %v2440, %v2620
    %v2622 = vpop.f32.mrb[0].mxu0
    %2623 = vmatprep.mubr.f32.mxu0 0.0
    %2624 = vmatmul.mubr.f32.gmra.mrb[0].mxu0 %v205
    %v2625 = vpop.f32.mrb[0].mxu0
    %v2626 = vadd.f32 %v2440, %v2625
    %v2627 = vpop.f32.mrb[0].mxu0
    %2628 = vmatprep.mubr.f32.mxu0 0.0
    %2629 = vmatmul.mubr.f32.gmra.mrb[0].mxu0 %v208
    %v2630 = vpop.f32.mrb[0].mxu0
    %v2631 = vadd.f32 %v2440, %v2630
    %v2632 = vpop.f32.mrb[0].mxu0
    %2633 = vmatprep.mubr.f32.mxu0 0.0
    %2634 = vmatmul.mubr.f32.gmra.mrb[0].mxu0 %v211
    %v2635 = vpop.f32.mrb[0].mxu0
    %v2636 = vadd.f32 %v2440, %v2635
    %v2637 = vpop.f32.mrb[0].mxu0
    %2638 = vmatprep.mubr.f32.mxu0 0.0
    %2639 = vmatmul.mubr.f32.gmra.mrb[0].mxu0 %v214
    %v2640 = vpop.f32.mrb[0].mxu0
    %v2641 = vadd.f32 %v2440, %v2640
    %v2642 = vpop.f32.mrb[0].mxu0
    %2643 = vmatprep.mubr.f32.mxu0 0.0
    %2644 = vmatmul.mubr.f32.gmra.mrb[0].mxu0 %v217
    %v2645 = vpop.f32.mrb[0].mxu0
    %v2646 = vadd.f32 %v2440, %v2645
    %v2647 = vpop.f32.mrb[0].mxu0
    %2648 = vmatprep.mubr.f32.mxu0 0.0
    %2649 = vmatmul.mubr.f32.gmra.mrb[0].mxu0 %v220
    %v2650 = vpop.f32.mrb[0].mxu0
    %v2651 = vadd.f32 %v2440, %v2650
    %v2652 = vpop.f32.mrb[0].mxu0
    %2653 = vmatprep.mubr.f32.mxu0 0.0
    %2654 = vmatmul.mubr.f32.gmra.mrb[0].mxu0 %v223
    %v2655 = vpop.f32.mrb[0].mxu0
    %v2656 = vadd.f32 %v2440, %v2655
    %v2657 = vpop.f32.mrb[0].mxu0
    %2658 = vdwg.mxu0
    %v2659 = vld [vmem:[%s4 + $0x10] sm:$0xf]
    %v2660 = vld [vmem:[%s4 + $0x24] sm:$0xf]
    %v2661 = vld [vmem:[%s4 + $0x38] sm:$0xf]
    %v2662 = vld [vmem:[%s4 + $0x4c] sm:$0xf]
    %v2663 = vld [vmem:[%s4 + $0x60] sm:$0xf]
    %v2664 = vld [vmem:[%s4 + $0x74] sm:$0xf]
    %v2665 = vld [vmem:[%s4 + $0x88] sm:$0xf]
    %v2666 = vld [vmem:[%s4 + $0x9c] sm:$0xf]
    %v2667 = vld [vmem:[%s4 + $0xb0] sm:$0xf]
    %v2668 = vld [vmem:[%s4 + $0xc4] sm:$0xf]
    %v2669 = vld [vmem:[%s4 + $0xd8] sm:$0xf]
    %v2670 = vld [vmem:[%s4 + $0xec] sm:$0xf]
    %v2671 = vld [vmem:[%s5 + $0x4] sm:$0x1]
    %v2673 = vlaneseq
    %v2674 = vshrl.u32 %v2673, 7
    %v2675 = vsub.s32 0, %v2674
    %v2676 = vrot.slane %v2671, %v2675
    %v2690 = vunpack.c.l.b16 %v2659
    %v2691 = vunpack.c.l.b16 %v2660
    %v2692 = vunpack.c.l.b16 %v2661
    %v2693 = vunpack.c.l.b16 %v2662
    %v2694 = vunpack.c.l.b16 %v2663
    %v2695 = vunpack.c.l.b16 %v2664
    %v2696 = vunpack.c.l.b16 %v2665
    %v2697 = vunpack.c.l.b16 %v2666
    %v2698 = vunpack.c.l.b16 %v2667
    %v2699 = vunpack.c.l.b16 %v2668
    %v2700 = vunpack.c.l.b16 %v2669
    %v2701 = vunpack.c.l.b16 %v2670
    %v2702 = vpack.c.b16 %v2691, %v2690
    %v2703 = vpack.c.b16 %v2693, %v2692
    %v2704 = vpack.c.b16 %v2695, %v2694
    %v2705 = vpack.c.b16 %v2697, %v2696
    %v2706 = vpack.c.b16 %v2699, %v2698
    %v2707 = vpack.c.b16 %v2701, %v2700
    %2714 = vmatprep.subr.bf16.mxu0 0
    %2715 = vmatpush1.bf16.msra.mxu0 %v2702
    %2716 = vmatprep.subr.bf16.mxu0 0
    %2717 = vmatpush1.bf16.msra.mxu0 %v2703
    %2718 = vmatprep.subr.bf16.mxu0 0
    %2719 = vmatpush1.bf16.msra.mxu0 %v2704
    %2720 = vmatprep.subr.bf16.mxu0 0
    %2721 = vmatpush1.bf16.msra.mxu0 %v2705
    %2722 = vmatprep.subr.bf16.mxu0 0
    %2723 = vmatpush1.bf16.msra.mxu0 %v2706
    %2724 = vmatprep.subr.bf16.mxu0 0
    %2725 = vmatpush1.bf16.msra.mxu0 %v2707
    %2726 = vmatprep.subr.bf16.mxu0 0
    %2727 = vmatpush1.bf16.msra.mxu0 0
    %2728 = vmatprep.subr.bf16.mxu0 0
    %2729 = vmatpush1.bf16.msra.mxu0 0
    %2730 = vmatprep.subr.bf16.mxu0 0
    %2731 = vmatpush1.bf16.msra.mxu0 0
    %2732 = vmatprep.subr.bf16.mxu0 0
    %2733 = vmatpush1.bf16.msra.mxu0 0
    %2734 = vmatprep.subr.bf16.mxu0 0
    %2735 = vmatpush1.bf16.msra.mxu0 0
    %2736 = vmatprep.subr.bf16.mxu0 0
    %2737 = vmatpush1.bf16.msra.mxu0 0
    %2738 = vmatprep.subr.bf16.mxu0 0
    %2739 = vmatpush1.bf16.msra.mxu0 0
    %2740 = vmatprep.subr.bf16.mxu0 0
    %2741 = vmatpush1.bf16.msra.mxu0 0
    %2742 = vmatprep.subr.bf16.mxu0 0
    %2743 = vmatpush1.bf16.msra.mxu0 0
    %2744 = vmatprep.subr.bf16.mxu0 0
    %2745 = vmatpush1.bf16.msra.mxu0 0
    %2746 = vmatprep.mubr.f32.mxu0 0.0
    %2747 = vmatmul.mubr.f32.gmra.mrb[0].mxu0 %v475
    %v2748 = vpop.f32.mrb[0].mxu0
    %v2749 = vadd.f32 %v2676, %v2748
    %v2750 = vpop.f32.mrb[0].mxu0
    %2751 = vmatprep.mubr.f32.mxu0 0.0
    %2752 = vmatmul.mubr.f32.gmra.mrb[0].mxu0 %v478
    %v2753 = vpop.f32.mrb[0].mxu0
    %v2754 = vadd.f32 %v2676, %v2753
    %v2755 = vpop.f32.mrb[0].mxu0
    %2756 = vmatprep.mubr.f32.mxu0 0.0
    %2757 = vmatmul.mubr.f32.gmra.mrb[0].mxu0 %v481
    %v2758 = vpop.f32.mrb[0].mxu0
    %v2759 = vadd.f32 %v2676, %v2758
    %v2760 = vpop.f32.mrb[0].mxu0
    %2761 = vmatprep.mubr.f32.mxu0 0.0
    %2762 = vmatmul.mubr.f32.gmra.mrb[0].mxu0 %v484
    %v2763 = vpop.f32.mrb[0].mxu0
    %v2764 = vadd.f32 %v2676, %v2763
    %v2765 = vpop.f32.mrb[0].mxu0
    %2766 = vmatprep.mubr.f32.mxu0 0.0
    %2767 = vmatmul.mubr.f32.gmra.mrb[0].mxu0 %v487
    %v2768 = vpop.f32.mrb[0].mxu0
    %v2769 = vadd.f32 %v2676, %v2768
    %v2770 = vpop.f32.mrb[0].mxu0
    %2771 = vmatprep.mubr.f32.mxu0 0.0
    %2772 = vmatmul.mubr.f32.gmra.mrb[0].mxu0 %v490
    %v2773 = vpop.f32.mrb[0].mxu0
    %v2774 = vadd.f32 %v2676, %v2773
    %v2775 = vpop.f32.mrb[0].mxu0
    %2776 = vmatprep.mubr.f32.mxu0 0.0
    %2777 = vmatmul.mubr.f32.gmra.mrb[0].mxu0 %v493
    %v2778 = vpop.f32.mrb[0].mxu0
    %v2779 = vadd.f32 %v2676, %v2778
    %v2780 = vpop.f32.mrb[0].mxu0
    %2781 = vmatprep.mubr.f32.mxu0 0.0
    %2782 = vmatmul.mubr.f32.gmra.mrb[0].mxu0 %v496
    %v2783 = vpop.f32.mrb[0].mxu0
    %v2784 = vadd.f32 %v2676, %v2783
    %v2785 = vpop.f32.mrb[0].mxu0
    %2786 = vmatprep.mubr.f32.mxu0 0.0
    %2787 = vmatmul.mubr.f32.gmra.mrb[0].mxu0 %v499
    %v2788 = vpop.f32.mrb[0].mxu0
    %v2789 = vadd.f32 %v2676, %v2788
    %v2790 = vpop.f32.mrb[0].mxu0
    %2791 = vmatprep.mubr.f32.mxu0 0.0
    %2792 = vmatmul.mubr.f32.gmra.mrb[0].mxu0 %v502
    %v2793 = vpop.f32.mrb[0].mxu0
    %v2794 = vadd.f32 %v2676, %v2793
    %v2795 = vpop.f32.mrb[0].mxu0
    %2796 = vmatprep.mubr.f32.mxu0 0.0
    %2797 = vmatmul.mubr.f32.gmra.mrb[0].mxu0 %v505
    %v2798 = vpop.f32.mrb[0].mxu0
    %v2799 = vadd.f32 %v2676, %v2798
    %v2800 = vpop.f32.mrb[0].mxu0
    %2801 = vmatprep.mubr.f32.mxu0 0.0
    %2802 = vmatmul.mubr.f32.gmra.mrb[0].mxu0 %v508
    %v2803 = vpop.f32.mrb[0].mxu0
    %v2804 = vadd.f32 %v2676, %v2803
    %v2805 = vpop.f32.mrb[0].mxu0
    %2806 = vmatprep.mubr.f32.mxu0 0.0
    %2807 = vmatmul.mubr.f32.gmra.mrb[0].mxu0 %v511
    %v2808 = vpop.f32.mrb[0].mxu0
    %v2809 = vadd.f32 %v2676, %v2808
    %v2810 = vpop.f32.mrb[0].mxu0
    %2811 = vmatprep.mubr.f32.mxu0 0.0
    %2812 = vmatmul.mubr.f32.gmra.mrb[0].mxu0 %v514
    %v2813 = vpop.f32.mrb[0].mxu0
    %v2814 = vadd.f32 %v2676, %v2813
    %v2815 = vpop.f32.mrb[0].mxu0
    %2816 = vmatprep.mubr.f32.mxu0 0.0
    %2817 = vmatmul.mubr.f32.gmra.mrb[0].mxu0 %v517
    %v2818 = vpop.f32.mrb[0].mxu0
    %v2819 = vadd.f32 %v2676, %v2818
    %v2820 = vpop.f32.mrb[0].mxu0
    %2821 = vmatprep.mubr.f32.mxu0 0.0
    %2822 = vmatmul.mubr.f32.gmra.mrb[0].mxu0 %v520
    %v2823 = vpop.f32.mrb[0].mxu0
    %v2824 = vadd.f32 %v2676, %v2823
    %v2825 = vpop.f32.mrb[0].mxu0
    %2826 = vmatprep.mubr.f32.mxu0 0.0
    %2827 = vmatmul.mubr.f32.gmra.mrb[0].mxu0 %v523
    %v2828 = vpop.f32.mrb[0].mxu0
    %v2829 = vadd.f32 %v2676, %v2828
    %v2830 = vpop.f32.mrb[0].mxu0
    %2831 = vmatprep.mubr.f32.mxu0 0.0
    %2832 = vmatmul.mubr.f32.gmra.mrb[0].mxu0 %v526
    %v2833 = vpop.f32.mrb[0].mxu0
    %v2834 = vadd.f32 %v2676, %v2833
    %v2835 = vpop.f32.mrb[0].mxu0
    %2836 = vmatprep.mubr.f32.mxu0 0.0
    %2837 = vmatmul.mubr.f32.gmra.mrb[0].mxu0 %v529
    %v2838 = vpop.f32.mrb[0].mxu0
    %v2839 = vadd.f32 %v2676, %v2838
    %v2840 = vpop.f32.mrb[0].mxu0
    %2841 = vmatprep.mubr.f32.mxu0 0.0
    %2842 = vmatmul.mubr.f32.gmra.mrb[0].mxu0 %v532
    %v2843 = vpop.f32.mrb[0].mxu0
    %v2844 = vadd.f32 %v2676, %v2843
    %v2845 = vpop.f32.mrb[0].mxu0
    %2846 = vmatprep.mubr.f32.mxu0 0.0
    %2847 = vmatmul.mubr.f32.gmra.mrb[0].mxu0 %v535
    %v2848 = vpop.f32.mrb[0].mxu0
    %v2849 = vadd.f32 %v2676, %v2848
    %v2850 = vpop.f32.mrb[0].mxu0
    %2851 = vmatprep.mubr.f32.mxu0 0.0
    %2852 = vmatmul.mubr.f32.gmra.mrb[0].mxu0 %v538
    %v2853 = vpop.f32.mrb[0].mxu0
    %v2854 = vadd.f32 %v2676, %v2853
    %v2855 = vpop.f32.mrb[0].mxu0
    %2856 = vmatprep.mubr.f32.mxu0 0.0
    %2857 = vmatmul.mubr.f32.gmra.mrb[0].mxu0 %v541
    %v2858 = vpop.f32.mrb[0].mxu0
    %v2859 = vadd.f32 %v2676, %v2858
    %v2860 = vpop.f32.mrb[0].mxu0
    %2861 = vmatprep.mubr.f32.mxu0 0.0
    %2862 = vmatmul.mubr.f32.gmra.mrb[0].mxu0 %v544
    %v2863 = vpop.f32.mrb[0].mxu0
    %v2864 = vadd.f32 %v2676, %v2863
    %v2865 = vpop.f32.mrb[0].mxu0
    %2866 = vmatprep.mubr.f32.mxu0 0.0
    %2867 = vmatmul.mubr.f32.gmra.mrb[0].mxu0 %v547
    %v2868 = vpop.f32.mrb[0].mxu0
    %v2869 = vadd.f32 %v2676, %v2868
    %v2870 = vpop.f32.mrb[0].mxu0
    %2871 = vmatprep.mubr.f32.mxu0 0.0
    %2872 = vmatmul.mubr.f32.gmra.mrb[0].mxu0 %v550
    %v2873 = vpop.f32.mrb[0].mxu0
    %v2874 = vadd.f32 %v2676, %v2873
    %v2875 = vpop.f32.mrb[0].mxu0
    %2876 = vmatprep.mubr.f32.mxu0 0.0
    %2877 = vmatmul.mubr.f32.gmra.mrb[0].mxu0 %v553
    %v2878 = vpop.f32.mrb[0].mxu0
    %v2879 = vadd.f32 %v2676, %v2878
    %v2880 = vpop.f32.mrb[0].mxu0
    %2881 = vmatprep.mubr.f32.mxu0 0.0
    %2882 = vmatmul.mubr.f32.gmra.mrb[0].mxu0 %v556
    %v2883 = vpop.f32.mrb[0].mxu0
    %v2884 = vadd.f32 %v2676, %v2883
    %v2885 = vpop.f32.mrb[0].mxu0
    %2886 = vmatprep.mubr.f32.mxu0 0.0
    %2887 = vmatmul.mubr.f32.gmra.mrb[0].mxu0 %v559
    %v2888 = vpop.f32.mrb[0].mxu0
    %v2889 = vadd.f32 %v2676, %v2888
    %v2890 = vpop.f32.mrb[0].mxu0
    %2891 = vmatprep.mubr.f32.mxu0 0.0
    %2892 = vmatmul.mubr.f32.gmra.mrb[0].mxu0 %v562
    %v2893 = vpop.f32.mrb[0].mxu0
    %v2894 = vadd.f32 %v2676, %v2893
    %v2895 = vpop.f32.mrb[0].mxu0
    %2896 = vmatprep.mubr.f32.mxu0 0.0
    %2897 = vmatmul.mubr.f32.gmra.mrb[0].mxu0 %v565
    %v2898 = vpop.f32.mrb[0].mxu0
    %v2899 = vadd.f32 %v2676, %v2898
    %v2900 = vpop.f32.mrb[0].mxu0
    %2901 = vmatprep.mubr.f32.mxu0 0.0
    %2902 = vmatmul.mubr.f32.gmra.mrb[0].mxu0 %v568
    %v2903 = vpop.f32.mrb[0].mxu0
    %v2904 = vadd.f32 %v2676, %v2903
    %v2905 = vpop.f32.mrb[0].mxu0
    %2906 = vdwg.mxu0
    %v2907 = vmul.f32 %v2501, %v2749
    %v2908 = vmul.f32 %v2506, %v2754
    %v2909 = vmul.f32 %v2511, %v2759
    %v2910 = vmul.f32 %v2516, %v2764
    %v2911 = vmul.f32 %v2521, %v2769
    %v2912 = vmul.f32 %v2526, %v2774
    %v2913 = vmul.f32 %v2531, %v2779
    %v2914 = vmul.f32 %v2536, %v2784
    %v2915 = vmul.f32 %v2541, %v2789
    %v2916 = vmul.f32 %v2546, %v2794
    %v2917 = vmul.f32 %v2551, %v2799
    %v2918 = vmul.f32 %v2556, %v2804
    %v2919 = vmul.f32 %v2561, %v2809
    %v2920 = vmul.f32 %v2566, %v2814
    %v2921 = vmul.f32 %v2571, %v2819
    %v2922 = vmul.f32 %v2576, %v2824
    %v2923 = vmul.f32 %v2581, %v2829
    %v2924 = vmul.f32 %v2586, %v2834
    %v2925 = vmul.f32 %v2591, %v2839
    %v2926 = vmul.f32 %v2596, %v2844
    %v2927 = vmul.f32 %v2601, %v2849
    %v2928 = vmul.f32 %v2606, %v2854
    %v2929 = vmul.f32 %v2611, %v2859
    %v2930 = vmul.f32 %v2616, %v2864
    %v2931 = vmul.f32 %v2621, %v2869
    %v2932 = vmul.f32 %v2626, %v2874
    %v2933 = vmul.f32 %v2631, %v2879
    %v2934 = vmul.f32 %v2636, %v2884
    %v2935 = vmul.f32 %v2641, %v2889
    %v2936 = vmul.f32 %v2646, %v2894
    %v2937 = vmul.f32 %v2651, %v2899
    %v2938 = vmul.f32 %v2656, %v2904
    %v2939 = vadd.f32 %v2395, %v2907
    %v2940 = vadd.f32 %v2396, %v2908
    %v2941 = vadd.f32 %v2397, %v2909
    %v2942 = vadd.f32 %v2398, %v2910
    %v2943 = vadd.f32 %v2399, %v2911
    %v2944 = vadd.f32 %v2400, %v2912
    %v2945 = vadd.f32 %v2401, %v2913
    %v2946 = vadd.f32 %v2402, %v2914
    %v2947 = vadd.f32 %v2403, %v2915
    %v2948 = vadd.f32 %v2404, %v2916
    %v2949 = vadd.f32 %v2405, %v2917
    %v2950 = vadd.f32 %v2406, %v2918
    %v2951 = vadd.f32 %v2407, %v2919
    %v2952 = vadd.f32 %v2408, %v2920
    %v2953 = vadd.f32 %v2409, %v2921
    %v2954 = vadd.f32 %v2410, %v2922
    %v2955 = vadd.f32 %v2411, %v2923
    %v2956 = vadd.f32 %v2412, %v2924
    %v2957 = vadd.f32 %v2413, %v2925
    %v2958 = vadd.f32 %v2414, %v2926
    %v2959 = vadd.f32 %v2415, %v2927
    %v2960 = vadd.f32 %v2416, %v2928
    %v2961 = vadd.f32 %v2417, %v2929
    %v2962 = vadd.f32 %v2418, %v2930
    %v2963 = vadd.f32 %v2419, %v2931
    %v2964 = vadd.f32 %v2420, %v2932
    %v2965 = vadd.f32 %v2421, %v2933
    %v2966 = vadd.f32 %v2422, %v2934
    %v2967 = vadd.f32 %v2423, %v2935
    %v2968 = vadd.f32 %v2424, %v2936
    %v2969 = vadd.f32 %v2425, %v2937
    %v2970 = vadd.f32 %v2426, %v2938
    %v2971 = vand.u32 2147483647, %v2939
    %v2972 = vand.u32 2147483647, %v2940
    %v2973 = vand.u32 2147483647, %v2941
    %v2974 = vand.u32 2147483647, %v2942
    %v2975 = vand.u32 2147483647, %v2943
    %v2976 = vand.u32 2147483647, %v2944
    %v2977 = vand.u32 2147483647, %v2945
    %v2978 = vand.u32 2147483647, %v2946
    %v2979 = vand.u32 2147483647, %v2947
    %v2980 = vand.u32 2147483647, %v2948
    %v2981 = vand.u32 2147483647, %v2949
    %v2982 = vand.u32 2147483647, %v2950
    %v2983 = vand.u32 2147483647, %v2951
    %v2984 = vand.u32 2147483647, %v2952
    %v2985 = vand.u32 2147483647, %v2953
    %v2986 = vand.u32 2147483647, %v2954
    %v2987 = vand.u32 2147483647, %v2955
    %v2988 = vand.u32 2147483647, %v2956
    %v2989 = vand.u32 2147483647, %v2957
    %v2990 = vand.u32 2147483647, %v2958
    %v2991 = vand.u32 2147483647, %v2959
    %v2992 = vand.u32 2147483647, %v2960
    %v2993 = vand.u32 2147483647, %v2961
    %v2994 = vand.u32 2147483647, %v2962
    %v2995 = vand.u32 2147483647, %v2963
    %v2996 = vand.u32 2147483647, %v2964
    %v2997 = vand.u32 2147483647, %v2965
    %v2998 = vand.u32 2147483647, %v2966
    %v2999 = vand.u32 2147483647, %v2967
    %v3000 = vand.u32 2147483647, %v2968
    %v3001 = vand.u32 2147483647, %v2969
    %v3002 = vand.u32 2147483647, %v2970
    %v3003 = vrsqrt.pop %v2971
    %v3004 = vmul.f32 %v2971, %v3003
    %vm3005 = vcmp.eq.f32.partialorder %v2971, inf
    %v3006 = vsel %vm3005, %v2971, %v3004
    %vm3007 = vcmp.eq.f32.partialorder %v2971, 0.0
    %v3008 = vand.u32 %v2971, 2147483648
    %v3009 = vsel %vm3007, %v3008, %v3006
    %v3010 = vrsqrt.pop %v2972
    %v3011 = vmul.f32 %v2972, %v3010
    %vm3012 = vcmp.eq.f32.partialorder %v2972, inf
    %v3013 = vsel %vm3012, %v2972, %v3011
    %vm3014 = vcmp.eq.f32.partialorder %v2972, 0.0
    %v3015 = vand.u32 %v2972, 2147483648
    %v3016 = vsel %vm3014, %v3015, %v3013
    %v3017 = vrsqrt.pop %v2973
    %v3018 = vmul.f32 %v2973, %v3017
    %vm3019 = vcmp.eq.f32.partialorder %v2973, inf
    %v3020 = vsel %vm3019, %v2973, %v3018
    %vm3021 = vcmp.eq.f32.partialorder %v2973, 0.0
    %v3022 = vand.u32 %v2973, 2147483648
    %v3023 = vsel %vm3021, %v3022, %v3020
    %v3024 = vrsqrt.pop %v2974
    %v3025 = vmul.f32 %v2974, %v3024
    %vm3026 = vcmp.eq.f32.partialorder %v2974, inf
    %v3027 = vsel %vm3026, %v2974, %v3025
    %vm3028 = vcmp.eq.f32.partialorder %v2974, 0.0
    %v3029 = vand.u32 %v2974, 2147483648
    %v3030 = vsel %vm3028, %v3029, %v3027
    %v3031 = vrsqrt.pop %v2975
    %v3032 = vmul.f32 %v2975, %v3031
    %vm3033 = vcmp.eq.f32.partialorder %v2975, inf
    %v3034 = vsel %vm3033, %v2975, %v3032
    %vm3035 = vcmp.eq.f32.partialorder %v2975, 0.0
    %v3036 = vand.u32 %v2975, 2147483648
    %v3037 = vsel %vm3035, %v3036, %v3034
    %v3038 = vrsqrt.pop %v2976
    %v3039 = vmul.f32 %v2976, %v3038
    %vm3040 = vcmp.eq.f32.partialorder %v2976, inf
    %v3041 = vsel %vm3040, %v2976, %v3039
    %vm3042 = vcmp.eq.f32.partialorder %v2976, 0.0
    %v3043 = vand.u32 %v2976, 2147483648
    %v3044 = vsel %vm3042, %v3043, %v3041
    %v3045 = vrsqrt.pop %v2977
    %v3046 = vmul.f32 %v2977, %v3045
    %vm3047 = vcmp.eq.f32.partialorder %v2977, inf
    %v3048 = vsel %vm3047, %v2977, %v3046
    %vm3049 = vcmp.eq.f32.partialorder %v2977, 0.0
    %v3050 = vand.u32 %v2977, 2147483648
    %v3051 = vsel %vm3049, %v3050, %v3048
    %v3052 = vrsqrt.pop %v2978
    %v3053 = vmul.f32 %v2978, %v3052
    %vm3054 = vcmp.eq.f32.partialorder %v2978, inf
    %v3055 = vsel %vm3054, %v2978, %v3053
    %vm3056 = vcmp.eq.f32.partialorder %v2978, 0.0
    %v3057 = vand.u32 %v2978, 2147483648
    %v3058 = vsel %vm3056, %v3057, %v3055
    %v3059 = vrsqrt.pop %v2979
    %v3060 = vmul.f32 %v2979, %v3059
    %vm3061 = vcmp.eq.f32.partialorder %v2979, inf
    %v3062 = vsel %vm3061, %v2979, %v3060
    %vm3063 = vcmp.eq.f32.partialorder %v2979, 0.0
    %v3064 = vand.u32 %v2979, 2147483648
    %v3065 = vsel %vm3063, %v3064, %v3062
    %v3066 = vrsqrt.pop %v2980
    %v3067 = vmul.f32 %v2980, %v3066
    %vm3068 = vcmp.eq.f32.partialorder %v2980, inf
    %v3069 = vsel %vm3068, %v2980, %v3067
    %vm3070 = vcmp.eq.f32.partialorder %v2980, 0.0
    %v3071 = vand.u32 %v2980, 2147483648
    %v3072 = vsel %vm3070, %v3071, %v3069
    %v3073 = vrsqrt.pop %v2981
    %v3074 = vmul.f32 %v2981, %v3073
    %vm3075 = vcmp.eq.f32.partialorder %v2981, inf
    %v3076 = vsel %vm3075, %v2981, %v3074
    %vm3077 = vcmp.eq.f32.partialorder %v2981, 0.0
    %v3078 = vand.u32 %v2981, 2147483648
    %v3079 = vsel %vm3077, %v3078, %v3076
    %v3080 = vrsqrt.pop %v2982
    %v3081 = vmul.f32 %v2982, %v3080
    %vm3082 = vcmp.eq.f32.partialorder %v2982, inf
    %v3083 = vsel %vm3082, %v2982, %v3081
    %vm3084 = vcmp.eq.f32.partialorder %v2982, 0.0
    %v3085 = vand.u32 %v2982, 2147483648
    %v3086 = vsel %vm3084, %v3085, %v3083
    %v3087 = vrsqrt.pop %v2983
    %v3088 = vmul.f32 %v2983, %v3087
    %vm3089 = vcmp.eq.f32.partialorder %v2983, inf
    %v3090 = vsel %vm3089, %v2983, %v3088
    %vm3091 = vcmp.eq.f32.partialorder %v2983, 0.0
    %v3092 = vand.u32 %v2983, 2147483648
    %v3093 = vsel %vm3091, %v3092, %v3090
    %v3094 = vrsqrt.pop %v2984
    %v3095 = vmul.f32 %v2984, %v3094
    %vm3096 = vcmp.eq.f32.partialorder %v2984, inf
    %v3097 = vsel %vm3096, %v2984, %v3095
    %vm3098 = vcmp.eq.f32.partialorder %v2984, 0.0
    %v3099 = vand.u32 %v2984, 2147483648
    %v3100 = vsel %vm3098, %v3099, %v3097
    %v3101 = vrsqrt.pop %v2985
    %v3102 = vmul.f32 %v2985, %v3101
    %vm3103 = vcmp.eq.f32.partialorder %v2985, inf
    %v3104 = vsel %vm3103, %v2985, %v3102
    %vm3105 = vcmp.eq.f32.partialorder %v2985, 0.0
    %v3106 = vand.u32 %v2985, 2147483648
    %v3107 = vsel %vm3105, %v3106, %v3104
    %v3108 = vrsqrt.pop %v2986
    %v3109 = vmul.f32 %v2986, %v3108
    %vm3110 = vcmp.eq.f32.partialorder %v2986, inf
    %v3111 = vsel %vm3110, %v2986, %v3109
    %vm3112 = vcmp.eq.f32.partialorder %v2986, 0.0
    %v3113 = vand.u32 %v2986, 2147483648
    %v3114 = vsel %vm3112, %v3113, %v3111
    %v3115 = vrsqrt.pop %v2987
    %v3116 = vmul.f32 %v2987, %v3115
    %vm3117 = vcmp.eq.f32.partialorder %v2987, inf
    %v3118 = vsel %vm3117, %v2987, %v3116
    %vm3119 = vcmp.eq.f32.partialorder %v2987, 0.0
    %v3120 = vand.u32 %v2987, 2147483648
    %v3121 = vsel %vm3119, %v3120, %v3118
    %v3122 = vrsqrt.pop %v2988
    %v3123 = vmul.f32 %v2988, %v3122
    %vm3124 = vcmp.eq.f32.partialorder %v2988, inf
    %v3125 = vsel %vm3124, %v2988, %v3123
    %vm3126 = vcmp.eq.f32.partialorder %v2988, 0.0
    %v3127 = vand.u32 %v2988, 2147483648
    %v3128 = vsel %vm3126, %v3127, %v3125
    %v3129 = vrsqrt.pop %v2989
    %v3130 = vmul.f32 %v2989, %v3129
    %vm3131 = vcmp.eq.f32.partialorder %v2989, inf
    %v3132 = vsel %vm3131, %v2989, %v3130
    %vm3133 = vcmp.eq.f32.partialorder %v2989, 0.0
    %v3134 = vand.u32 %v2989, 2147483648
    %v3135 = vsel %vm3133, %v3134, %v3132
    %v3136 = vrsqrt.pop %v2990
    %v3137 = vmul.f32 %v2990, %v3136
    %vm3138 = vcmp.eq.f32.partialorder %v2990, inf
    %v3139 = vsel %vm3138, %v2990, %v3137
    %vm3140 = vcmp.eq.f32.partialorder %v2990, 0.0
    %v3141 = vand.u32 %v2990, 2147483648
    %v3142 = vsel %vm3140, %v3141, %v3139
    %v3143 = vrsqrt.pop %v2991
    %v3144 = vmul.f32 %v2991, %v3143
    %vm3145 = vcmp.eq.f32.partialorder %v2991, inf
    %v3146 = vsel %vm3145, %v2991, %v3144
    %vm3147 = vcmp.eq.f32.partialorder %v2991, 0.0
    %v3148 = vand.u32 %v2991, 2147483648
    %v3149 = vsel %vm3147, %v3148, %v3146
    %v3150 = vrsqrt.pop %v2992
    %v3151 = vmul.f32 %v2992, %v3150
    %vm3152 = vcmp.eq.f32.partialorder %v2992, inf
    %v3153 = vsel %vm3152, %v2992, %v3151
    %vm3154 = vcmp.eq.f32.partialorder %v2992, 0.0
    %v3155 = vand.u32 %v2992, 2147483648
    %v3156 = vsel %vm3154, %v3155, %v3153
    %v3157 = vrsqrt.pop %v2993
    %v3158 = vmul.f32 %v2993, %v3157
    %vm3159 = vcmp.eq.f32.partialorder %v2993, inf
    %v3160 = vsel %vm3159, %v2993, %v3158
    %vm3161 = vcmp.eq.f32.partialorder %v2993, 0.0
    %v3162 = vand.u32 %v2993, 2147483648
    %v3163 = vsel %vm3161, %v3162, %v3160
    %v3164 = vrsqrt.pop %v2994
    %v3165 = vmul.f32 %v2994, %v3164
    %vm3166 = vcmp.eq.f32.partialorder %v2994, inf
    %v3167 = vsel %vm3166, %v2994, %v3165
    %vm3168 = vcmp.eq.f32.partialorder %v2994, 0.0
    %v3169 = vand.u32 %v2994, 2147483648
    %v3170 = vsel %vm3168, %v3169, %v3167
    %v3171 = vrsqrt.pop %v2995
    %v3172 = vmul.f32 %v2995, %v3171
    %vm3173 = vcmp.eq.f32.partialorder %v2995, inf
    %v3174 = vsel %vm3173, %v2995, %v3172
    %vm3175 = vcmp.eq.f32.partialorder %v2995, 0.0
    %v3176 = vand.u32 %v2995, 2147483648
    %v3177 = vsel %vm3175, %v3176, %v3174
    %v3178 = vrsqrt.pop %v2996
    %v3179 = vmul.f32 %v2996, %v3178
    %vm3180 = vcmp.eq.f32.partialorder %v2996, inf
    %v3181 = vsel %vm3180, %v2996, %v3179
    %vm3182 = vcmp.eq.f32.partialorder %v2996, 0.0
    %v3183 = vand.u32 %v2996, 2147483648
    %v3184 = vsel %vm3182, %v3183, %v3181
    %v3185 = vrsqrt.pop %v2997
    %v3186 = vmul.f32 %v2997, %v3185
    %vm3187 = vcmp.eq.f32.partialorder %v2997, inf
    %v3188 = vsel %vm3187, %v2997, %v3186
    %vm3189 = vcmp.eq.f32.partialorder %v2997, 0.0
    %v3190 = vand.u32 %v2997, 2147483648
    %v3191 = vsel %vm3189, %v3190, %v3188
    %v3192 = vrsqrt.pop %v2998
    %v3193 = vmul.f32 %v2998, %v3192
    %vm3194 = vcmp.eq.f32.partialorder %v2998, inf
    %v3195 = vsel %vm3194, %v2998, %v3193
    %vm3196 = vcmp.eq.f32.partialorder %v2998, 0.0
    %v3197 = vand.u32 %v2998, 2147483648
    %v3198 = vsel %vm3196, %v3197, %v3195
    %v3199 = vrsqrt.pop %v2999
    %v3200 = vmul.f32 %v2999, %v3199
    %vm3201 = vcmp.eq.f32.partialorder %v2999, inf
    %v3202 = vsel %vm3201, %v2999, %v3200
    %vm3203 = vcmp.eq.f32.partialorder %v2999, 0.0
    %v3204 = vand.u32 %v2999, 2147483648
    %v3205 = vsel %vm3203, %v3204, %v3202
    %v3206 = vrsqrt.pop %v3000
    %v3207 = vmul.f32 %v3000, %v3206
    %vm3208 = vcmp.eq.f32.partialorder %v3000, inf
    %v3209 = vsel %vm3208, %v3000, %v3207
    %vm3210 = vcmp.eq.f32.partialorder %v3000, 0.0
    %v3211 = vand.u32 %v3000, 2147483648
    %v3212 = vsel %vm3210, %v3211, %v3209
    %v3213 = vrsqrt.pop %v3001
    %v3214 = vmul.f32 %v3001, %v3213
    %vm3215 = vcmp.eq.f32.partialorder %v3001, inf
    %v3216 = vsel %vm3215, %v3001, %v3214
    %vm3217 = vcmp.eq.f32.partialorder %v3001, 0.0
    %v3218 = vand.u32 %v3001, 2147483648
    %v3219 = vsel %vm3217, %v3218, %v3216
    %v3220 = vrsqrt.pop %v3002
    %v3221 = vmul.f32 %v3002, %v3220
    %vm3222 = vcmp.eq.f32.partialorder %v3002, inf
    %v3223 = vsel %vm3222, %v3002, %v3221
    %vm3224 = vcmp.eq.f32.partialorder %v3002, 0.0
    %v3225 = vand.u32 %v3002, 2147483648
    %v3226 = vsel %vm3224, %v3225, %v3223
    %v3259 = vand.u32 %v2939, 2147483648
    %v3260 = vand.u32 %v2940, 2147483648
    %v3261 = vand.u32 %v2941, 2147483648
    %v3262 = vand.u32 %v2942, 2147483648
    %v3263 = vand.u32 %v2943, 2147483648
    %v3264 = vand.u32 %v2944, 2147483648
    %v3265 = vand.u32 %v2945, 2147483648
    %v3266 = vand.u32 %v2946, 2147483648
    %v3267 = vand.u32 %v2947, 2147483648
    %v3268 = vand.u32 %v2948, 2147483648
    %v3269 = vand.u32 %v2949, 2147483648
    %v3270 = vand.u32 %v2950, 2147483648
    %v3271 = vand.u32 %v2951, 2147483648
    %v3272 = vand.u32 %v2952, 2147483648
    %v3273 = vand.u32 %v2953, 2147483648
    %v3274 = vand.u32 %v2954, 2147483648
    %v3275 = vand.u32 %v2955, 2147483648
    %v3276 = vand.u32 %v2956, 2147483648
    %v3277 = vand.u32 %v2957, 2147483648
    %v3278 = vand.u32 %v2958, 2147483648
    %v3279 = vand.u32 %v2959, 2147483648
    %v3280 = vand.u32 %v2960, 2147483648
    %v3281 = vand.u32 %v2961, 2147483648
    %v3282 = vand.u32 %v2962, 2147483648
    %v3283 = vand.u32 %v2963, 2147483648
    %v3284 = vand.u32 %v2964, 2147483648
    %v3285 = vand.u32 %v2965, 2147483648
    %v3286 = vand.u32 %v2966, 2147483648
    %v3287 = vand.u32 %v2967, 2147483648
    %v3288 = vand.u32 %v2968, 2147483648
    %v3289 = vand.u32 %v2969, 2147483648
    %v3290 = vand.u32 %v2970, 2147483648
    %v3323 = vor.u32 %v3009, %v3259
    %v3324 = vor.u32 %v3016, %v3260
    %v3325 = vor.u32 %v3023, %v3261
    %v3326 = vor.u32 %v3030, %v3262
    %v3327 = vor.u32 %v3037, %v3263
    %v3328 = vor.u32 %v3044, %v3264
    %v3329 = vor.u32 %v3051, %v3265
    %v3330 = vor.u32 %v3058, %v3266
    %v3331 = vor.u32 %v3065, %v3267
    %v3332 = vor.u32 %v3072, %v3268
    %v3333 = vor.u32 %v3079, %v3269
    %v3334 = vor.u32 %v3086, %v3270
    %v3335 = vor.u32 %v3093, %v3271
    %v3336 = vor.u32 %v3100, %v3272
    %v3337 = vor.u32 %v3107, %v3273
    %v3338 = vor.u32 %v3114, %v3274
    %v3339 = vor.u32 %v3121, %v3275
    %v3340 = vor.u32 %v3128, %v3276
    %v3341 = vor.u32 %v3135, %v3277
    %v3342 = vor.u32 %v3142, %v3278
    %v3343 = vor.u32 %v3149, %v3279
    %v3344 = vor.u32 %v3156, %v3280
    %v3345 = vor.u32 %v3163, %v3281
    %v3346 = vor.u32 %v3170, %v3282
    %v3347 = vor.u32 %v3177, %v3283
    %v3348 = vor.u32 %v3184, %v3284
    %v3349 = vor.u32 %v3191, %v3285
    %v3350 = vor.u32 %v3198, %v3286
    %v3351 = vor.u32 %v3205, %v3287
    %v3352 = vor.u32 %v3212, %v3288
    %v3353 = vor.u32 %v3219, %v3289
    %v3354 = vor.u32 %v3226, %v3290
    %v3387 = vmul.f32 %v3323, %v3323
    %v3388 = vmul.f32 %v3324, %v3324
    %v3389 = vmul.f32 %v3325, %v3325
    %v3390 = vmul.f32 %v3326, %v3326
    %v3391 = vmul.f32 %v3327, %v3327
    %v3392 = vmul.f32 %v3328, %v3328
    %v3393 = vmul.f32 %v3329, %v3329
    %v3394 = vmul.f32 %v3330, %v3330
    %v3395 = vmul.f32 %v3331, %v3331
    %v3396 = vmul.f32 %v3332, %v3332
    %v3397 = vmul.f32 %v3333, %v3333
    %v3398 = vmul.f32 %v3334, %v3334
    %v3399 = vmul.f32 %v3335, %v3335
    %v3400 = vmul.f32 %v3336, %v3336
    %v3401 = vmul.f32 %v3337, %v3337
    %v3402 = vmul.f32 %v3338, %v3338
    %v3403 = vmul.f32 %v3339, %v3339
    %v3404 = vmul.f32 %v3340, %v3340
    %v3405 = vmul.f32 %v3341, %v3341
    %v3406 = vmul.f32 %v3342, %v3342
    %v3407 = vmul.f32 %v3343, %v3343
    %v3408 = vmul.f32 %v3344, %v3344
    %v3409 = vmul.f32 %v3345, %v3345
    %v3410 = vmul.f32 %v3346, %v3346
    %v3411 = vmul.f32 %v3347, %v3347
    %v3412 = vmul.f32 %v3348, %v3348
    %v3413 = vmul.f32 %v3349, %v3349
    %v3414 = vmul.f32 %v3350, %v3350
    %v3415 = vmul.f32 %v3351, %v3351
    %v3416 = vmul.f32 %v3352, %v3352
    %v3417 = vmul.f32 %v3353, %v3353
    %v3418 = vmul.f32 %v3354, %v3354
    %3419 = vadd.xlane.f32.xlu0 %v3387
    %v3420 = vpop.xlane.xlu0 %3419
    %3421 = vadd.xlane.f32.xlu0 %v3388
    %v3422 = vpop.xlane.xlu0 %3421
    %3423 = vadd.xlane.f32.xlu0 %v3389
    %v3424 = vpop.xlane.xlu0 %3423
    %3425 = vadd.xlane.f32.xlu0 %v3390
    %v3426 = vpop.xlane.xlu0 %3425
    %3427 = vadd.xlane.f32.xlu0 %v3391
    %v3428 = vpop.xlane.xlu0 %3427
    %3429 = vadd.xlane.f32.xlu0 %v3392
    %v3430 = vpop.xlane.xlu0 %3429
    %3431 = vadd.xlane.f32.xlu0 %v3393
    %v3432 = vpop.xlane.xlu0 %3431
    %3433 = vadd.xlane.f32.xlu0 %v3394
    %v3434 = vpop.xlane.xlu0 %3433
    %3435 = vadd.xlane.f32.xlu0 %v3395
    %v3436 = vpop.xlane.xlu0 %3435
    %3437 = vadd.xlane.f32.xlu0 %v3396
    %v3438 = vpop.xlane.xlu0 %3437
    %3439 = vadd.xlane.f32.xlu0 %v3397
    %v3440 = vpop.xlane.xlu0 %3439
    %3441 = vadd.xlane.f32.xlu0 %v3398
    %v3442 = vpop.xlane.xlu0 %3441
    %3443 = vadd.xlane.f32.xlu0 %v3399
    %v3444 = vpop.xlane.xlu0 %3443
    %3445 = vadd.xlane.f32.xlu0 %v3400
    %v3446 = vpop.xlane.xlu0 %3445
    %3447 = vadd.xlane.f32.xlu0 %v3401
    %v3448 = vpop.xlane.xlu0 %3447
    %3449 = vadd.xlane.f32.xlu0 %v3402
    %v3450 = vpop.xlane.xlu0 %3449
    %3451 = vadd.xlane.f32.xlu0 %v3403
    %v3452 = vpop.xlane.xlu0 %3451
    %3453 = vadd.xlane.f32.xlu0 %v3404
    %v3454 = vpop.xlane.xlu0 %3453
    %3455 = vadd.xlane.f32.xlu0 %v3405
    %v3456 = vpop.xlane.xlu0 %3455
    %3457 = vadd.xlane.f32.xlu0 %v3406
    %v3458 = vpop.xlane.xlu0 %3457
    %3459 = vadd.xlane.f32.xlu0 %v3407
    %v3460 = vpop.xlane.xlu0 %3459
    %3461 = vadd.xlane.f32.xlu0 %v3408
    %v3462 = vpop.xlane.xlu0 %3461
    %3463 = vadd.xlane.f32.xlu0 %v3409
    %v3464 = vpop.xlane.xlu0 %3463
    %3465 = vadd.xlane.f32.xlu0 %v3410
    %v3466 = vpop.xlane.xlu0 %3465
    %3467 = vadd.xlane.f32.xlu0 %v3411
    %v3468 = vpop.xlane.xlu0 %3467
    %3469 = vadd.xlane.f32.xlu0 %v3412
    %v3470 = vpop.xlane.xlu0 %3469
    %3471 = vadd.xlane.f32.xlu0 %v3413
    %v3472 = vpop.xlane.xlu0 %3471
    %3473 = vadd.xlane.f32.xlu0 %v3414
    %v3474 = vpop.xlane.xlu0 %3473
    %3475 = vadd.xlane.f32.xlu0 %v3415
    %v3476 = vpop.xlane.xlu0 %3475
    %3477 = vadd.xlane.f32.xlu0 %v3416
    %v3478 = vpop.xlane.xlu0 %3477
    %3479 = vadd.xlane.f32.xlu0 %v3417
    %v3480 = vpop.xlane.xlu0 %3479
    %3481 = vadd.xlane.f32.xlu0 %v3418
    %v3482 = vpop.xlane.xlu0 %3481
    %v3483 = vmax.f32 %v3420, 1e-24
    %v3484 = vmax.f32 %v3422, 1e-24
    %v3485 = vmax.f32 %v3424, 1e-24
    %v3486 = vmax.f32 %v3426, 1e-24
    %v3487 = vmax.f32 %v3428, 1e-24
    %v3488 = vmax.f32 %v3430, 1e-24
    %v3489 = vmax.f32 %v3432, 1e-24
    %v3490 = vmax.f32 %v3434, 1e-24
    %v3491 = vmax.f32 %v3436, 1e-24
    %v3492 = vmax.f32 %v3438, 1e-24
    %v3493 = vmax.f32 %v3440, 1e-24
    %v3494 = vmax.f32 %v3442, 1e-24
    %v3495 = vmax.f32 %v3444, 1e-24
    %v3496 = vmax.f32 %v3446, 1e-24
    %v3497 = vmax.f32 %v3448, 1e-24
    %v3498 = vmax.f32 %v3450, 1e-24
    %v3499 = vmax.f32 %v3452, 1e-24
    %v3500 = vmax.f32 %v3454, 1e-24
    %v3501 = vmax.f32 %v3456, 1e-24
    %v3502 = vmax.f32 %v3458, 1e-24
    %v3503 = vmax.f32 %v3460, 1e-24
    %v3504 = vmax.f32 %v3462, 1e-24
    %v3505 = vmax.f32 %v3464, 1e-24
    %v3506 = vmax.f32 %v3466, 1e-24
    %v3507 = vmax.f32 %v3468, 1e-24
    %v3508 = vmax.f32 %v3470, 1e-24
    %v3509 = vmax.f32 %v3472, 1e-24
    %v3510 = vmax.f32 %v3474, 1e-24
    %v3511 = vmax.f32 %v3476, 1e-24
    %v3512 = vmax.f32 %v3478, 1e-24
    %v3513 = vmax.f32 %v3480, 1e-24
    %v3514 = vmax.f32 %v3482, 1e-24
    %v3515 = vrsqrt.pop %v3483
    %v3516 = vrsqrt.pop %v3484
    %v3517 = vrsqrt.pop %v3485
    %v3518 = vrsqrt.pop %v3486
    %v3519 = vrsqrt.pop %v3487
    %v3520 = vrsqrt.pop %v3488
    %v3521 = vrsqrt.pop %v3489
    %v3522 = vrsqrt.pop %v3490
    %v3523 = vrsqrt.pop %v3491
    %v3524 = vrsqrt.pop %v3492
    %v3525 = vrsqrt.pop %v3493
    %v3526 = vrsqrt.pop %v3494
    %v3527 = vrsqrt.pop %v3495
    %v3528 = vrsqrt.pop %v3496
    %v3529 = vrsqrt.pop %v3497
    %v3530 = vrsqrt.pop %v3498
    %v3531 = vrsqrt.pop %v3499
    %v3532 = vrsqrt.pop %v3500
    %v3533 = vrsqrt.pop %v3501
    %v3534 = vrsqrt.pop %v3502
    %v3535 = vrsqrt.pop %v3503
    %v3536 = vrsqrt.pop %v3504
    %v3537 = vrsqrt.pop %v3505
    %v3538 = vrsqrt.pop %v3506
    %v3539 = vrsqrt.pop %v3507
    %v3540 = vrsqrt.pop %v3508
    %v3541 = vrsqrt.pop %v3509
    %v3542 = vrsqrt.pop %v3510
    %v3543 = vrsqrt.pop %v3511
    %v3544 = vrsqrt.pop %v3512
    %v3545 = vrsqrt.pop %v3513
    %v3546 = vrsqrt.pop %v3514
    %v3547 = vmul.f32 %v3323, %v3515
    %v3548 = vmul.f32 %v3324, %v3516
    %v3549 = vmul.f32 %v3325, %v3517
    %v3550 = vmul.f32 %v3326, %v3518
    %v3551 = vmul.f32 %v3327, %v3519
    %v3552 = vmul.f32 %v3328, %v3520
    %v3553 = vmul.f32 %v3329, %v3521
    %v3554 = vmul.f32 %v3330, %v3522
    %v3555 = vmul.f32 %v3331, %v3523
    %v3556 = vmul.f32 %v3332, %v3524
    %v3557 = vmul.f32 %v3333, %v3525
    %v3558 = vmul.f32 %v3334, %v3526
    %v3559 = vmul.f32 %v3335, %v3527
    %v3560 = vmul.f32 %v3336, %v3528
    %v3561 = vmul.f32 %v3337, %v3529
    %v3562 = vmul.f32 %v3338, %v3530
    %v3563 = vmul.f32 %v3339, %v3531
    %v3564 = vmul.f32 %v3340, %v3532
    %v3565 = vmul.f32 %v3341, %v3533
    %v3566 = vmul.f32 %v3342, %v3534
    %v3567 = vmul.f32 %v3343, %v3535
    %v3568 = vmul.f32 %v3344, %v3536
    %v3569 = vmul.f32 %v3345, %v3537
    %v3570 = vmul.f32 %v3346, %v3538
    %v3571 = vmul.f32 %v3347, %v3539
    %v3572 = vmul.f32 %v3348, %v3540
    %v3573 = vmul.f32 %v3349, %v3541
    %v3574 = vmul.f32 %v3350, %v3542
    %v3575 = vmul.f32 %v3351, %v3543
    %v3576 = vmul.f32 %v3352, %v3544
    %v3577 = vmul.f32 %v3353, %v3545
    %v3578 = vmul.f32 %v3354, %v3546
    %3579 = vst [vmem:[#allocation2] sm:$0xff] %v3547
    %3580 = vst [vmem:[#allocation2 + $0x8] sm:$0xff] %v3548
    %3581 = vst [vmem:[#allocation2 + $0x10] sm:$0xff] %v3549
    %3582 = vst [vmem:[#allocation2 + $0x18] sm:$0xff] %v3550
    %3583 = vst [vmem:[#allocation2 + $0x20] sm:$0xff] %v3551
    %3584 = vst [vmem:[#allocation2 + $0x28] sm:$0xff] %v3552
    %3585 = vst [vmem:[#allocation2 + $0x30] sm:$0xff] %v3553
    %3586 = vst [vmem:[#allocation2 + $0x38] sm:$0xff] %v3554
    %3587 = vst [vmem:[#allocation2 + $0x40] sm:$0xff] %v3555
    %3588 = vst [vmem:[#allocation2 + $0x48] sm:$0xff] %v3556
    %3589 = vst [vmem:[#allocation2 + $0x50] sm:$0xff] %v3557
    %3590 = vst [vmem:[#allocation2 + $0x58] sm:$0xff] %v3558
    %3591 = vst [vmem:[#allocation2 + $0x60] sm:$0xff] %v3559
    %3592 = vst [vmem:[#allocation2 + $0x68] sm:$0xff] %v3560
    %3593 = vst [vmem:[#allocation2 + $0x70] sm:$0xff] %v3561
    %3594 = vst [vmem:[#allocation2 + $0x78] sm:$0xff] %v3562
    %3595 = vst [vmem:[#allocation2 + $0x80] sm:$0xff] %v3563
    %3596 = vst [vmem:[#allocation2 + $0x88] sm:$0xff] %v3564
    %3597 = vst [vmem:[#allocation2 + $0x90] sm:$0xff] %v3565
    %3598 = vst [vmem:[#allocation2 + $0x98] sm:$0xff] %v3566
    %3599 = vst [vmem:[#allocation2 + $0xa0] sm:$0xff] %v3567
    %3600 = vst [vmem:[#allocation2 + $0xa8] sm:$0xff] %v3568
    %3601 = vst [vmem:[#allocation2 + $0xb0] sm:$0xff] %v3569
    %3602 = vst [vmem:[#allocation2 + $0xb8] sm:$0xff] %v3570
    %3603 = vst [vmem:[#allocation2 + $0xc0] sm:$0xff] %v3571
    %3604 = vst [vmem:[#allocation2 + $0xc8] sm:$0xff] %v3572
    %3605 = vst [vmem:[#allocation2 + $0xd0] sm:$0xff] %v3573
    %3606 = vst [vmem:[#allocation2 + $0xd8] sm:$0xff] %v3574
    %3607 = vst [vmem:[#allocation2 + $0xe0] sm:$0xff] %v3575
    %3608 = vst [vmem:[#allocation2 + $0xe8] sm:$0xff] %v3576
    %3609 = vst [vmem:[#allocation2 + $0xf0] sm:$0xff] %v3577
    %3610 = vst [vmem:[#allocation2 + $0xf8] sm:$0xff] %v3578
    // Predicated region
    $region26: #{tpu_custom_call.1} parent=1 // pred_check
      _
    $region27: #{tpu_custom_call.1} parent=1 // pred_check_branch
      %3612 = sbr.rel (0) target = $region29
    $region28: #{tpu_custom_call.1} parent=1 // pred_region
      %s3614 = ssub.s32 4096, 4096
      %3615 = vsyncadd [#allocation3], %s3614
      %s3616 = sshll.u32 [#allocation2], 4
      %s3617 = int_to_ptr.vmem [resolvable:$true] %s3616
      %3622 = dma.vmem_to_hbm [thread:$0]  %s3617, 4096, %s6, [#allocation3], 128, 128, 8
    $region29: #{tpu_custom_call.1} parent=1 // pred_fallthru
      _
    // Predicated region
    $region30: #{tpu_custom_call.1} parent=1 // pred_check
      _
    $region31: #{tpu_custom_call.1} parent=1 // pred_check_branch
      %3624 = sbr.rel (0) target = $region33
    $region32: #{tpu_custom_call.1} parent=1 // pred_region
      %3625 = dma.done [#allocation3], 4096
    $region33: #{tpu_custom_call.1} parent=1 // pred_fallthru
      _
    %3626 = vsyncpa [#allocation3], 1

</llo_original>
